<compile_context>
chip_gen: v5e
topology: v5e:2x2
jax: 0.10.0
libtpu: 0.0.40
codegen_flags: <defaults>
</compile_context>

<pallas_src>
import functools

import jax
import jax.numpy as jnp
from jax import lax
from jax.experimental import pallas as pl
from jax.experimental.pallas import tpu as pltpu

K_EPS = 1e-8   # kEpsilon in pytorch3d rasterize_meshes
CAM_Z = 2.732  # look_at_view_transform eye z offset


def _raster_kernel(planes_ref, out_ref, *, H, W, F, NP):
    """Rasterize a full (H, W) image for one batch element.

    planes_ref: SMEM (B*F*12,) f32.  Per face, 12 scalars:
        [sa0,sb0,sc0, sa1,sb1,sc1, sa2,sb2,sc2, az,bz,cz]
      where edge_i(p) = sa_i*x + sb_i*y + sc_i has been pre-multiplied by
      sign(area + eps) so that "inside" <=> all edges > 0 (degenerate /
      behind-camera faces are poisoned with sc_i = -inf), and
      depth(p) = az*x + bz*y + cz  (== bary . z with the same area+eps denom).
    out_ref: VMEM (NP, 128) i32 — pixels flattened row-major so the lane dim
      is a full 128 wide (full vregs, unmasked stores).
    """
    b = pl.program_id(0)

    # Linear pixel index -> (row, col) -> pixel-centre NDC.  Division done in f32
    # (exact: W is a power of two and lin < 2^24), avoiding integer div/shift.
    sub = lax.broadcasted_iota(jnp.int32, (NP, 128), 0)
    lane = lax.broadcasted_iota(jnp.int32, (NP, 128), 1)
    lin = (sub * 128 + lane).astype(jnp.float32)
    yi = jnp.floor(lin * (1.0 / W))
    xi = lin - yi * jnp.float32(W)
    # PyTorch3D NDC convention: +X left, +Y up, pixel (0,0) is top-left.
    yf = (2.0 * (jnp.float32(H - 1) - yi) + 1.0) / jnp.float32(H) - 1.0
    xf = (2.0 * (jnp.float32(W - 1) - xi) + 1.0) / jnp.float32(W) - 1.0

    def body(f, carry):
        best_z, best_f = carry
        row = b * F + f          # packed face index (Meshes packed representation)
        base = row * 12
        sa0 = planes_ref[base + 0]
        sb0 = planes_ref[base + 1]
        sc0 = planes_ref[base + 2]
        sa1 = planes_ref[base + 3]
        sb1 = planes_ref[base + 4]
        sc1 = planes_ref[base + 5]
        sa2 = planes_ref[base + 6]
        sb2 = planes_ref[base + 7]
        sc2 = planes_ref[base + 8]
        az = planes_ref[base + 9]
        bz = planes_ref[base + 10]
        cz = planes_ref[base + 11]

        e0 = sa0 * xf + sb0 * yf + sc0
        e1 = sa1 * xf + sb1 * yf + sc1
        e2 = sa2 * xf + sb2 * yf + sc2
        pz = az * xf + bz * yf + cz                # interpolated depth

        emin = jnp.minimum(jnp.minimum(e0, e1), e2)
        hit = (emin > 0.0) & (pz >= 0.0)
        better = hit & (pz < best_z)               # strict < keeps smallest face idx on ties
        best_z = jnp.where(better, pz, best_z)
        best_f = jnp.where(better, row, best_f)
        return best_z, best_f

    init = (
        jnp.full((NP, 128), jnp.inf, dtype=jnp.float32),
        jnp.full((NP, 128), -1, dtype=jnp.int32),
    )
    # TODO(synk): add a scalar per-face bbox cull (lax.cond) once tiles are smaller
    # than the image / face counts are realistic.
    unroll = True if F <= 64 else 8
    _, best_f = lax.fori_loop(0, F, body, init, unroll=unroll)
    out_ref[...] = best_f


def _face_planes(verts, faces):
    """Camera transform + per-face edge/depth plane coefficients (pure JAX glue)."""
    # look_at_view_transform(eye=(0,0,-2.732)) -> R=I, T=(0,0,2.732); the module then
    # flips R[:,0,0], so world->view/NDC (orthographic, f=1, pp=0) is
    # (x, y, z) -> (-x, y, z + 2.732).
    x, y, z = verts[..., 0], verts[..., 1], verts[..., 2]
    v_ndc = jnp.stack([-x, y, z + CAM_Z], axis=-1).astype(jnp.float32)

    fv = jax.vmap(lambda v, f: v[f])(v_ndc, faces)       # (B, F, 3 verts, 3 coords)
    x0, y0, z0 = fv[..., 0, 0], fv[..., 0, 1], fv[..., 0, 2]
    x1, y1, z1 = fv[..., 1, 0], fv[..., 1, 1], fv[..., 1, 2]
    x2, y2, z2 = fv[..., 2, 0], fv[..., 2, 1], fv[..., 2, 2]

    # edge_function(v2, v0, v1) == 2 * signed area (pytorch3d convention)
    area = (x2 - x0) * (y1 - y0) - (y2 - y0) * (x1 - x0)
    denom = area + K_EPS
    zmax = jnp.maximum(jnp.maximum(z0, z1), z2)
    valid = (jnp.abs(area) > K_EPS) & (zmax >= 0.0)      # non-degenerate & not behind camera

    # Edge functions as affine planes: e_i(p) = a_i*px + b_i*py + c_i.
    a0, b0, c0 = y2 - y1, x1 - x2, x2 * y1 - x1 * y2     # edge_function(p, v1, v2)
    a1, b1, c1 = y0 - y2, x2 - x0, x0 * y2 - x2 * y0     # edge_function(p, v2, v0)
    a2, b2, c2 = y1 - y0, x0 - x1, x1 * y0 - x0 * y1     # edge_function(p, v0, v1)

    # bary_i = e_i / (area + eps) > 0  <=>  e_i * sign(area + eps) > 0; invalid faces
    # get c_i = -inf so they can never produce a hit (keeps the reciprocal off the
    # vector path and away from the |area| ~ eps blow-up).
    s = jnp.sign(denom)
    neg_inf = jnp.float32(-jnp.inf)
    sa0, sb0, sc0 = a0 * s, b0 * s, jnp.where(valid, c0 * s, neg_inf)
    sa1, sb1, sc1 = a1 * s, b1 * s, jnp.where(valid, c1 * s, neg_inf)
    sa2, sb2, sc2 = a2 * s, b2 * s, jnp.where(valid, c2 * s, neg_inf)

    # Interpolated depth as a plane (same area+eps normalization as pytorch3d).
    inv = jnp.where(valid, 1.0 / denom, 0.0)
    az = (a0 * z0 + a1 * z1 + a2 * z2) * inv
    bz = (b0 * z0 + b1 * z1 + b2 * z2) * inv
    cz = (c0 * z0 + c1 * z1 + c2 * z2) * inv

    planes = jnp.stack(
        [sa0, sb0, sc0, sa1, sb1, sc1, sa2, sb2, sc2, az, bz, cz], axis=-1
    )                                                    # (B, F, 12)
    # 1-D SMEM table (2-D SMEM would pad the last dim to 128 words).
    return planes.reshape(-1).astype(jnp.float32)


def of_neural_renderer_forward(verts, faces, img_size=64):
    """Equivalent of OF_NeuralRenderer(img_size).forward(verts, faces) -> pix_to_face."""
    B = verts.shape[0]
    F = faces.shape[1]
    H = W = img_size
    assert img_size >= 16 and (img_size & (img_size - 1)) == 0, "power-of-two img_size"
    NP = (H * W) // 128   # pixel rows of 128 lanes (lane-dense output layout)

    planes = _face_planes(verts, faces)

    kernel = functools.partial(_raster_kernel, H=H, W=W, F=F, NP=NP)
    pix_flat = pl.pallas_call(
        kernel,
        out_shape=jax.ShapeDtypeStruct((B, NP, 128), jnp.int32),
        grid=(B,),  # whole image per step; B >= 2 keeps both v7x TensorCores busy
        in_specs=[pl.BlockSpec(memory_space=pltpu.MemorySpace.SMEM)],
        out_specs=pl.BlockSpec((pl.Squeezed(), NP, 128), lambda b: (b, 0, 0)),
        compiler_params=pltpu.CompilerParams(dimension_semantics=("parallel",)),
    )(planes)

    # TODO(synk): PyTorch3D returns int64 pix_to_face; JAX x64 is off so we keep int32.
    return pix_flat.reshape(B, H, W)[..., None]   # (B, H, W, faces_per_pixel=1)


if __name__ == "__main__":
    key = jax.random.PRNGKey(0)
    kv, kf = jax.random.split(key)

    B, V, F, img_size = 2, 12, 16, 64
    verts = jax.random.uniform(kv, (B, V, 3), jnp.float32, minval=-0.8, maxval=0.8)
    faces = jax.random.randint(kf, (B, F, 3), 0, V, dtype=jnp.int32)

    pix_to_face = of_neural_renderer_forward(verts, faces, img_size=img_size)
    pix_to_face = jax.block_until_ready(pix_to_face)

    assert pix_to_face.shape == (B, img_size, img_size, 1)
    assert pix_to_face.dtype == jnp.int32
    assert int(pix_to_face.min()) >= -1 and int(pix_to_face.max()) < B * F
    # packed face indices must stay inside their own mesh's range
    p0, p1 = pix_to_face[0], pix_to_face[1]
    assert bool(jnp.all((p0 == -1) | (p0 < F)))
    assert bool(jnp.all((p1 == -1) | (p1 >= F)))

    print("KERNEL_OK")
</pallas_src>

<mosaic_0001>
module attributes {stable_mosaic.version = 11 : i64} {
  func.func @_raster_kernel(%arg0: i32, %arg1: memref<384xf32, #tpu.memory_space<smem>>, %arg2: memref<1x32x128xi32, #tpu.memory_space<vmem>>) attributes {dimension_semantics = [#tpu.dimension_semantics<parallel>], iteration_bounds = array<i64: 2>, scalar_prefetch = 0 : i64, scratch_operands = 0 : i64, tpu.core_type = #tpu.core_type<tc>, window_params = [{transform_indices = @transform_0, window_bounds = array<i64: 384>}, {transform_indices = @transform_1, window_bounds = array<i64: 1, 32, 128>}]} {
    %0 = tpu.iota {dimensions = array<i32: 0>} : vector<32x128xi32>
    %1 = tpu.iota {dimensions = array<i32: 1>} : vector<32x128xi32>
    %c128_i32 = arith.constant 128 : i32
    %2 = vector.broadcast %c128_i32 : i32 to vector<32x128xi32>
    %3 = arith.muli %0, %2 : vector<32x128xi32>
    %4 = arith.addi %3, %1 : vector<32x128xi32>
    %5 = arith.sitofp %4 : vector<32x128xi32> to vector<32x128xf32>
    %cst = arith.constant 1.562500e-02 : f32
    %6 = vector.broadcast %cst : f32 to vector<32x128xf32>
    %7 = arith.mulf %5, %6 : vector<32x128xf32>
    %8 = math.floor %7 : vector<32x128xf32>
    %cst_0 = arith.constant 6.400000e+01 : f32
    %9 = vector.broadcast %cst_0 : f32 to vector<32x128xf32>
    %10 = arith.mulf %8, %9 : vector<32x128xf32>
    %11 = arith.subf %5, %10 : vector<32x128xf32>
    %cst_1 = arith.constant 6.300000e+01 : f32
    %12 = vector.broadcast %cst_1 : f32 to vector<32x128xf32>
    %13 = arith.subf %12, %8 : vector<32x128xf32>
    %cst_2 = arith.constant 2.000000e+00 : f32
    %14 = vector.broadcast %cst_2 : f32 to vector<32x128xf32>
    %15 = arith.mulf %14, %13 : vector<32x128xf32>
    %cst_3 = arith.constant 1.000000e+00 : f32
    %16 = vector.broadcast %cst_3 : f32 to vector<32x128xf32>
    %17 = arith.addf %15, %16 : vector<32x128xf32>
    %cst_4 = arith.constant 6.400000e+01 : f32
    %18 = vector.broadcast %cst_4 : f32 to vector<32x128xf32>
    %19 = arith.divf %17, %18 : vector<32x128xf32>
    %cst_5 = arith.constant 1.000000e+00 : f32
    %20 = vector.broadcast %cst_5 : f32 to vector<32x128xf32>
    %21 = arith.subf %19, %20 : vector<32x128xf32>
    %cst_6 = arith.constant 6.300000e+01 : f32
    %22 = vector.broadcast %cst_6 : f32 to vector<32x128xf32>
    %23 = arith.subf %22, %11 : vector<32x128xf32>
    %cst_7 = arith.constant 2.000000e+00 : f32
    %24 = vector.broadcast %cst_7 : f32 to vector<32x128xf32>
    %25 = arith.mulf %24, %23 : vector<32x128xf32>
    %cst_8 = arith.constant 1.000000e+00 : f32
    %26 = vector.broadcast %cst_8 : f32 to vector<32x128xf32>
    %27 = arith.addf %25, %26 : vector<32x128xf32>
    %cst_9 = arith.constant 6.400000e+01 : f32
    %28 = vector.broadcast %cst_9 : f32 to vector<32x128xf32>
    %29 = arith.divf %27, %28 : vector<32x128xf32>
    %cst_10 = arith.constant 1.000000e+00 : f32
    %30 = vector.broadcast %cst_10 : f32 to vector<32x128xf32>
    %31 = arith.subf %29, %30 : vector<32x128xf32>
    %cst_11 = arith.constant 0x7F800000 : f32
    %32 = vector.broadcast %cst_11 : f32 to vector<32x128xf32>
    %c-1_i32 = arith.constant -1 : i32
    %33 = vector.broadcast %c-1_i32 : i32 to vector<32x128xi32>
    %c0_i32 = arith.constant 0 : i32
    %c16_i32 = arith.constant 16 : i32
    %34 = arith.muli %arg0, %c16_i32 : i32
    %35 = arith.addi %34, %c0_i32 : i32
    %c12_i32 = arith.constant 12 : i32
    %36 = arith.muli %35, %c12_i32 : i32
    %c0_i32_12 = arith.constant 0 : i32
    %37 = arith.addi %36, %c0_i32_12 : i32
    %38 = arith.index_cast %37 : i32 to index
    %39 = memref.load %arg1[%38] : memref<384xf32, #tpu.memory_space<smem>>
    %c1_i32 = arith.constant 1 : i32
    %40 = arith.addi %36, %c1_i32 : i32
    %41 = arith.index_cast %40 : i32 to index
    %42 = memref.load %arg1[%41] : memref<384xf32, #tpu.memory_space<smem>>
    %c2_i32 = arith.constant 2 : i32
    %43 = arith.addi %36, %c2_i32 : i32
    %44 = arith.index_cast %43 : i32 to index
    %45 = memref.load %arg1[%44] : memref<384xf32, #tpu.memory_space<smem>>
    %c3_i32 = arith.constant 3 : i32
    %46 = arith.addi %36, %c3_i32 : i32
    %47 = arith.index_cast %46 : i32 to index
    %48 = memref.load %arg1[%47] : memref<384xf32, #tpu.memory_space<smem>>
    %c4_i32 = arith.constant 4 : i32
    %49 = arith.addi %36, %c4_i32 : i32
    %50 = arith.index_cast %49 : i32 to index
    %51 = memref.load %arg1[%50] : memref<384xf32, #tpu.memory_space<smem>>
    %c5_i32 = arith.constant 5 : i32
    %52 = arith.addi %36, %c5_i32 : i32
    %53 = arith.index_cast %52 : i32 to index
    %54 = memref.load %arg1[%53] : memref<384xf32, #tpu.memory_space<smem>>
    %c6_i32 = arith.constant 6 : i32
    %55 = arith.addi %36, %c6_i32 : i32
    %56 = arith.index_cast %55 : i32 to index
    %57 = memref.load %arg1[%56] : memref<384xf32, #tpu.memory_space<smem>>
    %c7_i32 = arith.constant 7 : i32
    %58 = arith.addi %36, %c7_i32 : i32
    %59 = arith.index_cast %58 : i32 to index
    %60 = memref.load %arg1[%59] : memref<384xf32, #tpu.memory_space<smem>>
    %c8_i32 = arith.constant 8 : i32
    %61 = arith.addi %36, %c8_i32 : i32
    %62 = arith.index_cast %61 : i32 to index
    %63 = memref.load %arg1[%62] : memref<384xf32, #tpu.memory_space<smem>>
    %c9_i32 = arith.constant 9 : i32
    %64 = arith.addi %36, %c9_i32 : i32
    %65 = arith.index_cast %64 : i32 to index
    %66 = memref.load %arg1[%65] : memref<384xf32, #tpu.memory_space<smem>>
    %c10_i32 = arith.constant 10 : i32
    %67 = arith.addi %36, %c10_i32 : i32
    %68 = arith.index_cast %67 : i32 to index
    %69 = memref.load %arg1[%68] : memref<384xf32, #tpu.memory_space<smem>>
    %c11_i32 = arith.constant 11 : i32
    %70 = arith.addi %36, %c11_i32 : i32
    %71 = arith.index_cast %70 : i32 to index
    %72 = memref.load %arg1[%71] : memref<384xf32, #tpu.memory_space<smem>>
    %73 = vector.broadcast %39 : f32 to vector<32x128xf32>
    %74 = arith.mulf %73, %31 : vector<32x128xf32>
    %75 = vector.broadcast %42 : f32 to vector<32x128xf32>
    %76 = arith.mulf %75, %21 : vector<32x128xf32>
    %77 = arith.addf %74, %76 : vector<32x128xf32>
    %78 = vector.broadcast %45 : f32 to vector<32x128xf32>
    %79 = arith.addf %77, %78 : vector<32x128xf32>
    %80 = vector.broadcast %48 : f32 to vector<32x128xf32>
    %81 = arith.mulf %80, %31 : vector<32x128xf32>
    %82 = vector.broadcast %51 : f32 to vector<32x128xf32>
    %83 = arith.mulf %82, %21 : vector<32x128xf32>
    %84 = arith.addf %81, %83 : vector<32x128xf32>
    %85 = vector.broadcast %54 : f32 to vector<32x128xf32>
    %86 = arith.addf %84, %85 : vector<32x128xf32>
    %87 = vector.broadcast %57 : f32 to vector<32x128xf32>
    %88 = arith.mulf %87, %31 : vector<32x128xf32>
    %89 = vector.broadcast %60 : f32 to vector<32x128xf32>
    %90 = arith.mulf %89, %21 : vector<32x128xf32>
    %91 = arith.addf %88, %90 : vector<32x128xf32>
    %92 = vector.broadcast %63 : f32 to vector<32x128xf32>
    %93 = arith.addf %91, %92 : vector<32x128xf32>
    %94 = vector.broadcast %66 : f32 to vector<32x128xf32>
    %95 = arith.mulf %94, %31 : vector<32x128xf32>
    %96 = vector.broadcast %69 : f32 to vector<32x128xf32>
    %97 = arith.mulf %96, %21 : vector<32x128xf32>
    %98 = arith.addf %95, %97 : vector<32x128xf32>
    %99 = vector.broadcast %72 : f32 to vector<32x128xf32>
    %100 = arith.addf %98, %99 : vector<32x128xf32>
    %101 = arith.minimumf %79, %86 : vector<32x128xf32>
    %102 = arith.minimumf %101, %93 : vector<32x128xf32>
    %cst_13 = arith.constant 0.000000e+00 : f32
    %103 = vector.broadcast %cst_13 : f32 to vector<32x128xf32>
    %104 = arith.cmpf ogt, %102, %103 : vector<32x128xf32>
    %cst_14 = arith.constant 0.000000e+00 : f32
    %105 = vector.broadcast %cst_14 : f32 to vector<32x128xf32>
    %106 = arith.cmpf oge, %100, %105 : vector<32x128xf32>
    %107 = arith.andi %104, %106 : vector<32x128xi1>
    %108 = arith.cmpf olt, %100, %32 : vector<32x128xf32>
    %109 = arith.andi %107, %108 : vector<32x128xi1>
    %110 = arith.select %109, %100, %32 : vector<32x128xi1>, vector<32x128xf32>
    %111 = vector.broadcast %35 : i32 to vector<32x128xi32>
    %112 = arith.select %109, %111, %33 : vector<32x128xi1>, vector<32x128xi32>
    %c1_i32_15 = arith.constant 1 : i32
    %c16_i32_16 = arith.constant 16 : i32
    %113 = arith.muli %arg0, %c16_i32_16 : i32
    %114 = arith.addi %113, %c1_i32_15 : i32
    %c12_i32_17 = arith.constant 12 : i32
    %115 = arith.muli %114, %c12_i32_17 : i32
    %c0_i32_18 = arith.constant 0 : i32
    %116 = arith.addi %115, %c0_i32_18 : i32
    %117 = arith.index_cast %116 : i32 to index
    %118 = memref.load %arg1[%117] : memref<384xf32, #tpu.memory_space<smem>>
    %c1_i32_19 = arith.constant 1 : i32
    %119 = arith.addi %115, %c1_i32_19 : i32
    %120 = arith.index_cast %119 : i32 to index
    %121 = memref.load %arg1[%120] : memref<384xf32, #tpu.memory_space<smem>>
    %c2_i32_20 = arith.constant 2 : i32
    %122 = arith.addi %115, %c2_i32_20 : i32
    %123 = arith.index_cast %122 : i32 to index
    %124 = memref.load %arg1[%123] : memref<384xf32, #tpu.memory_space<smem>>
    %c3_i32_21 = arith.constant 3 : i32
    %125 = arith.addi %115, %c3_i32_21 : i32
    %126 = arith.index_cast %125 : i32 to index
    %127 = memref.load %arg1[%126] : memref<384xf32, #tpu.memory_space<smem>>
    %c4_i32_22 = arith.constant 4 : i32
    %128 = arith.addi %115, %c4_i32_22 : i32
    %129 = arith.index_cast %128 : i32 to index
    %130 = memref.load %arg1[%129] : memref<384xf32, #tpu.memory_space<smem>>
    %c5_i32_23 = arith.constant 5 : i32
    %131 = arith.addi %115, %c5_i32_23 : i32
    %132 = arith.index_cast %131 : i32 to index
    %133 = memref.load %arg1[%132] : memref<384xf32, #tpu.memory_space<smem>>
    %c6_i32_24 = arith.constant 6 : i32
    %134 = arith.addi %115, %c6_i32_24 : i32
    %135 = arith.index_cast %134 : i32 to index
    %136 = memref.load %arg1[%135] : memref<384xf32, #tpu.memory_space<smem>>
    %c7_i32_25 = arith.constant 7 : i32
    %137 = arith.addi %115, %c7_i32_25 : i32
    %138 = arith.index_cast %137 : i32 to index
    %139 = memref.load %arg1[%138] : memref<384xf32, #tpu.memory_space<smem>>
    %c8_i32_26 = arith.constant 8 : i32
    %140 = arith.addi %115, %c8_i32_26 : i32
    %141 = arith.index_cast %140 : i32 to index
    %142 = memref.load %arg1[%141] : memref<384xf32, #tpu.memory_space<smem>>
    %c9_i32_27 = arith.constant 9 : i32
    %143 = arith.addi %115, %c9_i32_27 : i32
    %144 = arith.index_cast %143 : i32 to index
    %145 = memref.load %arg1[%144] : memref<384xf32, #tpu.memory_space<smem>>
    %c10_i32_28 = arith.constant 10 : i32
    %146 = arith.addi %115, %c10_i32_28 : i32
    %147 = arith.index_cast %146 : i32 to index
    %148 = memref.load %arg1[%147] : memref<384xf32, #tpu.memory_space<smem>>
    %c11_i32_29 = arith.constant 11 : i32
    %149 = arith.addi %115, %c11_i32_29 : i32
    %150 = arith.index_cast %149 : i32 to index
    %151 = memref.load %arg1[%150] : memref<384xf32, #tpu.memory_space<smem>>
    %152 = vector.broadcast %118 : f32 to vector<32x128xf32>
    %153 = arith.mulf %152, %31 : vector<32x128xf32>
    %154 = vector.broadcast %121 : f32 to vector<32x128xf32>
    %155 = arith.mulf %154, %21 : vector<32x128xf32>
    %156 = arith.addf %153, %155 : vector<32x128xf32>
    %157 = vector.broadcast %124 : f32 to vector<32x128xf32>
    %158 = arith.addf %156, %157 : vector<32x128xf32>
    %159 = vector.broadcast %127 : f32 to vector<32x128xf32>
    %160 = arith.mulf %159, %31 : vector<32x128xf32>
    %161 = vector.broadcast %130 : f32 to vector<32x128xf32>
    %162 = arith.mulf %161, %21 : vector<32x128xf32>
    %163 = arith.addf %160, %162 : vector<32x128xf32>
    %164 = vector.broadcast %133 : f32 to vector<32x128xf32>
    %165 = arith.addf %163, %164 : vector<32x128xf32>
    %166 = vector.broadcast %136 : f32 to vector<32x128xf32>
    %167 = arith.mulf %166, %31 : vector<32x128xf32>
    %168 = vector.broadcast %139 : f32 to vector<32x128xf32>
    %169 = arith.mulf %168, %21 : vector<32x128xf32>
    %170 = arith.addf %167, %169 : vector<32x128xf32>
    %171 = vector.broadcast %142 : f32 to vector<32x128xf32>
    %172 = arith.addf %170, %171 : vector<32x128xf32>
    %173 = vector.broadcast %145 : f32 to vector<32x128xf32>
    %174 = arith.mulf %173, %31 : vector<32x128xf32>
    %175 = vector.broadcast %148 : f32 to vector<32x128xf32>
    %176 = arith.mulf %175, %21 : vector<32x128xf32>
    %177 = arith.addf %174, %176 : vector<32x128xf32>
    %178 = vector.broadcast %151 : f32 to vector<32x128xf32>
    %179 = arith.addf %177, %178 : vector<32x128xf32>
    %180 = arith.minimumf %158, %165 : vector<32x128xf32>
    %181 = arith.minimumf %180, %172 : vector<32x128xf32>
    %cst_30 = arith.constant 0.000000e+00 : f32
    %182 = vector.broadcast %cst_30 : f32 to vector<32x128xf32>
    %183 = arith.cmpf ogt, %181, %182 : vector<32x128xf32>
    %cst_31 = arith.constant 0.000000e+00 : f32
    %184 = vector.broadcast %cst_31 : f32 to vector<32x128xf32>
    %185 = arith.cmpf oge, %179, %184 : vector<32x128xf32>
    %186 = arith.andi %183, %185 : vector<32x128xi1>
    %187 = arith.cmpf olt, %179, %110 : vector<32x128xf32>
    %188 = arith.andi %186, %187 : vector<32x128xi1>
    %189 = arith.select %188, %179, %110 : vector<32x128xi1>, vector<32x128xf32>
    %190 = vector.broadcast %114 : i32 to vector<32x128xi32>
    %191 = arith.select %188, %190, %112 : vector<32x128xi1>, vector<32x128xi32>
    %c2_i32_32 = arith.constant 2 : i32
    %c16_i32_33 = arith.constant 16 : i32
    %192 = arith.muli %arg0, %c16_i32_33 : i32
    %193 = arith.addi %192, %c2_i32_32 : i32
    %c12_i32_34 = arith.constant 12 : i32
    %194 = arith.muli %193, %c12_i32_34 : i32
    %c0_i32_35 = arith.constant 0 : i32
    %195 = arith.addi %194, %c0_i32_35 : i32
    %196 = arith.index_cast %195 : i32 to index
    %197 = memref.load %arg1[%196] : memref<384xf32, #tpu.memory_space<smem>>
    %c1_i32_36 = arith.constant 1 : i32
    %198 = arith.addi %194, %c1_i32_36 : i32
    %199 = arith.index_cast %198 : i32 to index
    %200 = memref.load %arg1[%199] : memref<384xf32, #tpu.memory_space<smem>>
    %c2_i32_37 = arith.constant 2 : i32
    %201 = arith.addi %194, %c2_i32_37 : i32
    %202 = arith.index_cast %201 : i32 to index
    %203 = memref.load %arg1[%202] : memref<384xf32, #tpu.memory_space<smem>>
    %c3_i32_38 = arith.constant 3 : i32
    %204 = arith.addi %194, %c3_i32_38 : i32
    %205 = arith.index_cast %204 : i32 to index
    %206 = memref.load %arg1[%205] : memref<384xf32, #tpu.memory_space<smem>>
    %c4_i32_39 = arith.constant 4 : i32
    %207 = arith.addi %194, %c4_i32_39 : i32
    %208 = arith.index_cast %207 : i32 to index
    %209 = memref.load %arg1[%208] : memref<384xf32, #tpu.memory_space<smem>>
    %c5_i32_40 = arith.constant 5 : i32
    %210 = arith.addi %194, %c5_i32_40 : i32
    %211 = arith.index_cast %210 : i32 to index
    %212 = memref.load %arg1[%211] : memref<384xf32, #tpu.memory_space<smem>>
    %c6_i32_41 = arith.constant 6 : i32
    %213 = arith.addi %194, %c6_i32_41 : i32
    %214 = arith.index_cast %213 : i32 to index
    %215 = memref.load %arg1[%214] : memref<384xf32, #tpu.memory_space<smem>>
    %c7_i32_42 = arith.constant 7 : i32
    %216 = arith.addi %194, %c7_i32_42 : i32
    %217 = arith.index_cast %216 : i32 to index
    %218 = memref.load %arg1[%217] : memref<384xf32, #tpu.memory_space<smem>>
    %c8_i32_43 = arith.constant 8 : i32
    %219 = arith.addi %194, %c8_i32_43 : i32
    %220 = arith.index_cast %219 : i32 to index
    %221 = memref.load %arg1[%220] : memref<384xf32, #tpu.memory_space<smem>>
    %c9_i32_44 = arith.constant 9 : i32
    %222 = arith.addi %194, %c9_i32_44 : i32
    %223 = arith.index_cast %222 : i32 to index
    %224 = memref.load %arg1[%223] : memref<384xf32, #tpu.memory_space<smem>>
    %c10_i32_45 = arith.constant 10 : i32
    %225 = arith.addi %194, %c10_i32_45 : i32
    %226 = arith.index_cast %225 : i32 to index
    %227 = memref.load %arg1[%226] : memref<384xf32, #tpu.memory_space<smem>>
    %c11_i32_46 = arith.constant 11 : i32
    %228 = arith.addi %194, %c11_i32_46 : i32
    %229 = arith.index_cast %228 : i32 to index
    %230 = memref.load %arg1[%229] : memref<384xf32, #tpu.memory_space<smem>>
    %231 = vector.broadcast %197 : f32 to vector<32x128xf32>
    %232 = arith.mulf %231, %31 : vector<32x128xf32>
    %233 = vector.broadcast %200 : f32 to vector<32x128xf32>
    %234 = arith.mulf %233, %21 : vector<32x128xf32>
    %235 = arith.addf %232, %234 : vector<32x128xf32>
    %236 = vector.broadcast %203 : f32 to vector<32x128xf32>
    %237 = arith.addf %235, %236 : vector<32x128xf32>
    %238 = vector.broadcast %206 : f32 to vector<32x128xf32>
    %239 = arith.mulf %238, %31 : vector<32x128xf32>
    %240 = vector.broadcast %209 : f32 to vector<32x128xf32>
    %241 = arith.mulf %240, %21 : vector<32x128xf32>
    %242 = arith.addf %239, %241 : vector<32x128xf32>
    %243 = vector.broadcast %212 : f32 to vector<32x128xf32>
    %244 = arith.addf %242, %243 : vector<32x128xf32>
    %245 = vector.broadcast %215 : f32 to vector<32x128xf32>
    %246 = arith.mulf %245, %31 : vector<32x128xf32>
    %247 = vector.broadcast %218 : f32 to vector<32x128xf32>
    %248 = arith.mulf %247, %21 : vector<32x128xf32>
    %249 = arith.addf %246, %248 : vector<32x128xf32>
    %250 = vector.broadcast %221 : f32 to vector<32x128xf32>
    %251 = arith.addf %249, %250 : vector<32x128xf32>
    %252 = vector.broadcast %224 : f32 to vector<32x128xf32>
    %253 = arith.mulf %252, %31 : vector<32x128xf32>
    %254 = vector.broadcast %227 : f32 to vector<32x128xf32>
    %255 = arith.mulf %254, %21 : vector<32x128xf32>
    %256 = arith.addf %253, %255 : vector<32x128xf32>
    %257 = vector.broadcast %230 : f32 to vector<32x128xf32>
    %258 = arith.addf %256, %257 : vector<32x128xf32>
    %259 = arith.minimumf %237, %244 : vector<32x128xf32>
    %260 = arith.minimumf %259, %251 : vector<32x128xf32>
    %cst_47 = arith.constant 0.000000e+00 : f32
    %261 = vector.broadcast %cst_47 : f32 to vector<32x128xf32>
    %262 = arith.cmpf ogt, %260, %261 : vector<32x128xf32>
    %cst_48 = arith.constant 0.000000e+00 : f32
    %263 = vector.broadcast %cst_48 : f32 to vector<32x128xf32>
    %264 = arith.cmpf oge, %258, %263 : vector<32x128xf32>
    %265 = arith.andi %262, %264 : vector<32x128xi1>
    %266 = arith.cmpf olt, %258, %189 : vector<32x128xf32>
    %267 = arith.andi %265, %266 : vector<32x128xi1>
    %268 = arith.select %267, %258, %189 : vector<32x128xi1>, vector<32x128xf32>
    %269 = vector.broadcast %193 : i32 to vector<32x128xi32>
    %270 = arith.select %267, %269, %191 : vector<32x128xi1>, vector<32x128xi32>
    %c3_i32_49 = arith.constant 3 : i32
    %c16_i32_50 = arith.constant 16 : i32
    %271 = arith.muli %arg0, %c16_i32_50 : i32
    %272 = arith.addi %271, %c3_i32_49 : i32
    %c12_i32_51 = arith.constant 12 : i32
    %273 = arith.muli %272, %c12_i32_51 : i32
    %c0_i32_52 = arith.constant 0 : i32
    %274 = arith.addi %273, %c0_i32_52 : i32
    %275 = arith.index_cast %274 : i32 to index
    %276 = memref.load %arg1[%275] : memref<384xf32, #tpu.memory_space<smem>>
    %c1_i32_53 = arith.constant 1 : i32
    %277 = arith.addi %273, %c1_i32_53 : i32
    %278 = arith.index_cast %277 : i32 to index
    %279 = memref.load %arg1[%278] : memref<384xf32, #tpu.memory_space<smem>>
    %c2_i32_54 = arith.constant 2 : i32
    %280 = arith.addi %273, %c2_i32_54 : i32
    %281 = arith.index_cast %280 : i32 to index
    %282 = memref.load %arg1[%281] : memref<384xf32, #tpu.memory_space<smem>>
    %c3_i32_55 = arith.constant 3 : i32
    %283 = arith.addi %273, %c3_i32_55 : i32
    %284 = arith.index_cast %283 : i32 to index
    %285 = memref.load %arg1[%284] : memref<384xf32, #tpu.memory_space<smem>>
    %c4_i32_56 = arith.constant 4 : i32
    %286 = arith.addi %273, %c4_i32_56 : i32
    %287 = arith.index_cast %286 : i32 to index
    %288 = memref.load %arg1[%287] : memref<384xf32, #tpu.memory_space<smem>>
    %c5_i32_57 = arith.constant 5 : i32
    %289 = arith.addi %273, %c5_i32_57 : i32
    %290 = arith.index_cast %289 : i32 to index
    %291 = memref.load %arg1[%290] : memref<384xf32, #tpu.memory_space<smem>>
    %c6_i32_58 = arith.constant 6 : i32
    %292 = arith.addi %273, %c6_i32_58 : i32
    %293 = arith.index_cast %292 : i32 to index
    %294 = memref.load %arg1[%293] : memref<384xf32, #tpu.memory_space<smem>>
    %c7_i32_59 = arith.constant 7 : i32
    %295 = arith.addi %273, %c7_i32_59 : i32
    %296 = arith.index_cast %295 : i32 to index
    %297 = memref.load %arg1[%296] : memref<384xf32, #tpu.memory_space<smem>>
    %c8_i32_60 = arith.constant 8 : i32
    %298 = arith.addi %273, %c8_i32_60 : i32
    %299 = arith.index_cast %298 : i32 to index
    %300 = memref.load %arg1[%299] : memref<384xf32, #tpu.memory_space<smem>>
    %c9_i32_61 = arith.constant 9 : i32
    %301 = arith.addi %273, %c9_i32_61 : i32
    %302 = arith.index_cast %301 : i32 to index
    %303 = memref.load %arg1[%302] : memref<384xf32, #tpu.memory_space<smem>>
    %c10_i32_62 = arith.constant 10 : i32
    %304 = arith.addi %273, %c10_i32_62 : i32
    %305 = arith.index_cast %304 : i32 to index
    %306 = memref.load %arg1[%305] : memref<384xf32, #tpu.memory_space<smem>>
    %c11_i32_63 = arith.constant 11 : i32
    %307 = arith.addi %273, %c11_i32_63 : i32
    %308 = arith.index_cast %307 : i32 to index
    %309 = memref.load %arg1[%308] : memref<384xf32, #tpu.memory_space<smem>>
    %310 = vector.broadcast %276 : f32 to vector<32x128xf32>
    %311 = arith.mulf %310, %31 : vector<32x128xf32>
    %312 = vector.broadcast %279 : f32 to vector<32x128xf32>
    %313 = arith.mulf %312, %21 : vector<32x128xf32>
    %314 = arith.addf %311, %313 : vector<32x128xf32>
    %315 = vector.broadcast %282 : f32 to vector<32x128xf32>
    %316 = arith.addf %314, %315 : vector<32x128xf32>
    %317 = vector.broadcast %285 : f32 to vector<32x128xf32>
    %318 = arith.mulf %317, %31 : vector<32x128xf32>
    %319 = vector.broadcast %288 : f32 to vector<32x128xf32>
    %320 = arith.mulf %319, %21 : vector<32x128xf32>
    %321 = arith.addf %318, %320 : vector<32x128xf32>
    %322 = vector.broadcast %291 : f32 to vector<32x128xf32>
    %323 = arith.addf %321, %322 : vector<32x128xf32>
    %324 = vector.broadcast %294 : f32 to vector<32x128xf32>
    %325 = arith.mulf %324, %31 : vector<32x128xf32>
    %326 = vector.broadcast %297 : f32 to vector<32x128xf32>
    %327 = arith.mulf %326, %21 : vector<32x128xf32>
    %328 = arith.addf %325, %327 : vector<32x128xf32>
    %329 = vector.broadcast %300 : f32 to vector<32x128xf32>
    %330 = arith.addf %328, %329 : vector<32x128xf32>
    %331 = vector.broadcast %303 : f32 to vector<32x128xf32>
    %332 = arith.mulf %331, %31 : vector<32x128xf32>
    %333 = vector.broadcast %306 : f32 to vector<32x128xf32>
    %334 = arith.mulf %333, %21 : vector<32x128xf32>
    %335 = arith.addf %332, %334 : vector<32x128xf32>
    %336 = vector.broadcast %309 : f32 to vector<32x128xf32>
    %337 = arith.addf %335, %336 : vector<32x128xf32>
    %338 = arith.minimumf %316, %323 : vector<32x128xf32>
    %339 = arith.minimumf %338, %330 : vector<32x128xf32>
    %cst_64 = arith.constant 0.000000e+00 : f32
    %340 = vector.broadcast %cst_64 : f32 to vector<32x128xf32>
    %341 = arith.cmpf ogt, %339, %340 : vector<32x128xf32>
    %cst_65 = arith.constant 0.000000e+00 : f32
    %342 = vector.broadcast %cst_65 : f32 to vector<32x128xf32>
    %343 = arith.cmpf oge, %337, %342 : vector<32x128xf32>
    %344 = arith.andi %341, %343 : vector<32x128xi1>
    %345 = arith.cmpf olt, %337, %268 : vector<32x128xf32>
    %346 = arith.andi %344, %345 : vector<32x128xi1>
    %347 = arith.select %346, %337, %268 : vector<32x128xi1>, vector<32x128xf32>
    %348 = vector.broadcast %272 : i32 to vector<32x128xi32>
    %349 = arith.select %346, %348, %270 : vector<32x128xi1>, vector<32x128xi32>
    %c4_i32_66 = arith.constant 4 : i32
    %c16_i32_67 = arith.constant 16 : i32
    %350 = arith.muli %arg0, %c16_i32_67 : i32
    %351 = arith.addi %350, %c4_i32_66 : i32
    %c12_i32_68 = arith.constant 12 : i32
    %352 = arith.muli %351, %c12_i32_68 : i32
    %c0_i32_69 = arith.constant 0 : i32
    %353 = arith.addi %352, %c0_i32_69 : i32
    %354 = arith.index_cast %353 : i32 to index
    %355 = memref.load %arg1[%354] : memref<384xf32, #tpu.memory_space<smem>>
    %c1_i32_70 = arith.constant 1 : i32
    %356 = arith.addi %352, %c1_i32_70 : i32
    %357 = arith.index_cast %356 : i32 to index
    %358 = memref.load %arg1[%357] : memref<384xf32, #tpu.memory_space<smem>>
    %c2_i32_71 = arith.constant 2 : i32
    %359 = arith.addi %352, %c2_i32_71 : i32
    %360 = arith.index_cast %359 : i32 to index
    %361 = memref.load %arg1[%360] : memref<384xf32, #tpu.memory_space<smem>>
    %c3_i32_72 = arith.constant 3 : i32
    %362 = arith.addi %352, %c3_i32_72 : i32
    %363 = arith.index_cast %362 : i32 to index
    %364 = memref.load %arg1[%363] : memref<384xf32, #tpu.memory_space<smem>>
    %c4_i32_73 = arith.constant 4 : i32
    %365 = arith.addi %352, %c4_i32_73 : i32
    %366 = arith.index_cast %365 : i32 to index
    %367 = memref.load %arg1[%366] : memref<384xf32, #tpu.memory_space<smem>>
    %c5_i32_74 = arith.constant 5 : i32
    %368 = arith.addi %352, %c5_i32_74 : i32
    %369 = arith.index_cast %368 : i32 to index
    %370 = memref.load %arg1[%369] : memref<384xf32, #tpu.memory_space<smem>>
    %c6_i32_75 = arith.constant 6 : i32
    %371 = arith.addi %352, %c6_i32_75 : i32
    %372 = arith.index_cast %371 : i32 to index
    %373 = memref.load %arg1[%372] : memref<384xf32, #tpu.memory_space<smem>>
    %c7_i32_76 = arith.constant 7 : i32
    %374 = arith.addi %352, %c7_i32_76 : i32
    %375 = arith.index_cast %374 : i32 to index
    %376 = memref.load %arg1[%375] : memref<384xf32, #tpu.memory_space<smem>>
    %c8_i32_77 = arith.constant 8 : i32
    %377 = arith.addi %352, %c8_i32_77 : i32
    %378 = arith.index_cast %377 : i32 to index
    %379 = memref.load %arg1[%378] : memref<384xf32, #tpu.memory_space<smem>>
    %c9_i32_78 = arith.constant 9 : i32
    %380 = arith.addi %352, %c9_i32_78 : i32
    %381 = arith.index_cast %380 : i32 to index
    %382 = memref.load %arg1[%381] : memref<384xf32, #tpu.memory_space<smem>>
    %c10_i32_79 = arith.constant 10 : i32
    %383 = arith.addi %352, %c10_i32_79 : i32
    %384 = arith.index_cast %383 : i32 to index
    %385 = memref.load %arg1[%384] : memref<384xf32, #tpu.memory_space<smem>>
    %c11_i32_80 = arith.constant 11 : i32
    %386 = arith.addi %352, %c11_i32_80 : i32
    %387 = arith.index_cast %386 : i32 to index
    %388 = memref.load %arg1[%387] : memref<384xf32, #tpu.memory_space<smem>>
    %389 = vector.broadcast %355 : f32 to vector<32x128xf32>
    %390 = arith.mulf %389, %31 : vector<32x128xf32>
    %391 = vector.broadcast %358 : f32 to vector<32x128xf32>
    %392 = arith.mulf %391, %21 : vector<32x128xf32>
    %393 = arith.addf %390, %392 : vector<32x128xf32>
    %394 = vector.broadcast %361 : f32 to vector<32x128xf32>
    %395 = arith.addf %393, %394 : vector<32x128xf32>
    %396 = vector.broadcast %364 : f32 to vector<32x128xf32>
    %397 = arith.mulf %396, %31 : vector<32x128xf32>
    %398 = vector.broadcast %367 : f32 to vector<32x128xf32>
    %399 = arith.mulf %398, %21 : vector<32x128xf32>
    %400 = arith.addf %397, %399 : vector<32x128xf32>
    %401 = vector.broadcast %370 : f32 to vector<32x128xf32>
    %402 = arith.addf %400, %401 : vector<32x128xf32>
    %403 = vector.broadcast %373 : f32 to vector<32x128xf32>
    %404 = arith.mulf %403, %31 : vector<32x128xf32>
    %405 = vector.broadcast %376 : f32 to vector<32x128xf32>
    %406 = arith.mulf %405, %21 : vector<32x128xf32>
    %407 = arith.addf %404, %406 : vector<32x128xf32>
    %408 = vector.broadcast %379 : f32 to vector<32x128xf32>
    %409 = arith.addf %407, %408 : vector<32x128xf32>
    %410 = vector.broadcast %382 : f32 to vector<32x128xf32>
    %411 = arith.mulf %410, %31 : vector<32x128xf32>
    %412 = vector.broadcast %385 : f32 to vector<32x128xf32>
    %413 = arith.mulf %412, %21 : vector<32x128xf32>
    %414 = arith.addf %411, %413 : vector<32x128xf32>
    %415 = vector.broadcast %388 : f32 to vector<32x128xf32>
    %416 = arith.addf %414, %415 : vector<32x128xf32>
    %417 = arith.minimumf %395, %402 : vector<32x128xf32>
    %418 = arith.minimumf %417, %409 : vector<32x128xf32>
    %cst_81 = arith.constant 0.000000e+00 : f32
    %419 = vector.broadcast %cst_81 : f32 to vector<32x128xf32>
    %420 = arith.cmpf ogt, %418, %419 : vector<32x128xf32>
    %cst_82 = arith.constant 0.000000e+00 : f32
    %421 = vector.broadcast %cst_82 : f32 to vector<32x128xf32>
    %422 = arith.cmpf oge, %416, %421 : vector<32x128xf32>
    %423 = arith.andi %420, %422 : vector<32x128xi1>
    %424 = arith.cmpf olt, %416, %347 : vector<32x128xf32>
    %425 = arith.andi %423, %424 : vector<32x128xi1>
    %426 = arith.select %425, %416, %347 : vector<32x128xi1>, vector<32x128xf32>
    %427 = vector.broadcast %351 : i32 to vector<32x128xi32>
    %428 = arith.select %425, %427, %349 : vector<32x128xi1>, vector<32x128xi32>
    %c5_i32_83 = arith.constant 5 : i32
    %c16_i32_84 = arith.constant 16 : i32
    %429 = arith.muli %arg0, %c16_i32_84 : i32
    %430 = arith.addi %429, %c5_i32_83 : i32
    %c12_i32_85 = arith.constant 12 : i32
    %431 = arith.muli %430, %c12_i32_85 : i32
    %c0_i32_86 = arith.constant 0 : i32
    %432 = arith.addi %431, %c0_i32_86 : i32
    %433 = arith.index_cast %432 : i32 to index
    %434 = memref.load %arg1[%433] : memref<384xf32, #tpu.memory_space<smem>>
    %c1_i32_87 = arith.constant 1 : i32
    %435 = arith.addi %431, %c1_i32_87 : i32
    %436 = arith.index_cast %435 : i32 to index
    %437 = memref.load %arg1[%436] : memref<384xf32, #tpu.memory_space<smem>>
    %c2_i32_88 = arith.constant 2 : i32
    %438 = arith.addi %431, %c2_i32_88 : i32
    %439 = arith.index_cast %438 : i32 to index
    %440 = memref.load %arg1[%439] : memref<384xf32, #tpu.memory_space<smem>>
    %c3_i32_89 = arith.constant 3 : i32
    %441 = arith.addi %431, %c3_i32_89 : i32
    %442 = arith.index_cast %441 : i32 to index
    %443 = memref.load %arg1[%442] : memref<384xf32, #tpu.memory_space<smem>>
    %c4_i32_90 = arith.constant 4 : i32
    %444 = arith.addi %431, %c4_i32_90 : i32
    %445 = arith.index_cast %444 : i32 to index
    %446 = memref.load %arg1[%445] : memref<384xf32, #tpu.memory_space<smem>>
    %c5_i32_91 = arith.constant 5 : i32
    %447 = arith.addi %431, %c5_i32_91 : i32
    %448 = arith.index_cast %447 : i32 to index
    %449 = memref.load %arg1[%448] : memref<384xf32, #tpu.memory_space<smem>>
    %c6_i32_92 = arith.constant 6 : i32
    %450 = arith.addi %431, %c6_i32_92 : i32
    %451 = arith.index_cast %450 : i32 to index
    %452 = memref.load %arg1[%451] : memref<384xf32, #tpu.memory_space<smem>>
    %c7_i32_93 = arith.constant 7 : i32
    %453 = arith.addi %431, %c7_i32_93 : i32
    %454 = arith.index_cast %453 : i32 to index
    %455 = memref.load %arg1[%454] : memref<384xf32, #tpu.memory_space<smem>>
    %c8_i32_94 = arith.constant 8 : i32
    %456 = arith.addi %431, %c8_i32_94 : i32
    %457 = arith.index_cast %456 : i32 to index
    %458 = memref.load %arg1[%457] : memref<384xf32, #tpu.memory_space<smem>>
    %c9_i32_95 = arith.constant 9 : i32
    %459 = arith.addi %431, %c9_i32_95 : i32
    %460 = arith.index_cast %459 : i32 to index
    %461 = memref.load %arg1[%460] : memref<384xf32, #tpu.memory_space<smem>>
    %c10_i32_96 = arith.constant 10 : i32
    %462 = arith.addi %431, %c10_i32_96 : i32
    %463 = arith.index_cast %462 : i32 to index
    %464 = memref.load %arg1[%463] : memref<384xf32, #tpu.memory_space<smem>>
    %c11_i32_97 = arith.constant 11 : i32
    %465 = arith.addi %431, %c11_i32_97 : i32
    %466 = arith.index_cast %465 : i32 to index
    %467 = memref.load %arg1[%466] : memref<384xf32, #tpu.memory_space<smem>>
    %468 = vector.broadcast %434 : f32 to vector<32x128xf32>
    %469 = arith.mulf %468, %31 : vector<32x128xf32>
    %470 = vector.broadcast %437 : f32 to vector<32x128xf32>
    %471 = arith.mulf %470, %21 : vector<32x128xf32>
    %472 = arith.addf %469, %471 : vector<32x128xf32>
    %473 = vector.broadcast %440 : f32 to vector<32x128xf32>
    %474 = arith.addf %472, %473 : vector<32x128xf32>
    %475 = vector.broadcast %443 : f32 to vector<32x128xf32>
    %476 = arith.mulf %475, %31 : vector<32x128xf32>
    %477 = vector.broadcast %446 : f32 to vector<32x128xf32>
    %478 = arith.mulf %477, %21 : vector<32x128xf32>
    %479 = arith.addf %476, %478 : vector<32x128xf32>
    %480 = vector.broadcast %449 : f32 to vector<32x128xf32>
    %481 = arith.addf %479, %480 : vector<32x128xf32>
    %482 = vector.broadcast %452 : f32 to vector<32x128xf32>
    %483 = arith.mulf %482, %31 : vector<32x128xf32>
    %484 = vector.broadcast %455 : f32 to vector<32x128xf32>
    %485 = arith.mulf %484, %21 : vector<32x128xf32>
    %486 = arith.addf %483, %485 : vector<32x128xf32>
    %487 = vector.broadcast %458 : f32 to vector<32x128xf32>
    %488 = arith.addf %486, %487 : vector<32x128xf32>
    %489 = vector.broadcast %461 : f32 to vector<32x128xf32>
    %490 = arith.mulf %489, %31 : vector<32x128xf32>
    %491 = vector.broadcast %464 : f32 to vector<32x128xf32>
    %492 = arith.mulf %491, %21 : vector<32x128xf32>
    %493 = arith.addf %490, %492 : vector<32x128xf32>
    %494 = vector.broadcast %467 : f32 to vector<32x128xf32>
    %495 = arith.addf %493, %494 : vector<32x128xf32>
    %496 = arith.minimumf %474, %481 : vector<32x128xf32>
    %497 = arith.minimumf %496, %488 : vector<32x128xf32>
    %cst_98 = arith.constant 0.000000e+00 : f32
    %498 = vector.broadcast %cst_98 : f32 to vector<32x128xf32>
    %499 = arith.cmpf ogt, %497, %498 : vector<32x128xf32>
    %cst_99 = arith.constant 0.000000e+00 : f32
    %500 = vector.broadcast %cst_99 : f32 to vector<32x128xf32>
    %501 = arith.cmpf oge, %495, %500 : vector<32x128xf32>
    %502 = arith.andi %499, %501 : vector<32x128xi1>
    %503 = arith.cmpf olt, %495, %426 : vector<32x128xf32>
    %504 = arith.andi %502, %503 : vector<32x128xi1>
    %505 = arith.select %504, %495, %426 : vector<32x128xi1>, vector<32x128xf32>
    %506 = vector.broadcast %430 : i32 to vector<32x128xi32>
    %507 = arith.select %504, %506, %428 : vector<32x128xi1>, vector<32x128xi32>
    %c6_i32_100 = arith.constant 6 : i32
    %c16_i32_101 = arith.constant 16 : i32
    %508 = arith.muli %arg0, %c16_i32_101 : i32
    %509 = arith.addi %508, %c6_i32_100 : i32
    %c12_i32_102 = arith.constant 12 : i32
    %510 = arith.muli %509, %c12_i32_102 : i32
    %c0_i32_103 = arith.constant 0 : i32
    %511 = arith.addi %510, %c0_i32_103 : i32
    %512 = arith.index_cast %511 : i32 to index
    %513 = memref.load %arg1[%512] : memref<384xf32, #tpu.memory_space<smem>>
    %c1_i32_104 = arith.constant 1 : i32
    %514 = arith.addi %510, %c1_i32_104 : i32
    %515 = arith.index_cast %514 : i32 to index
    %516 = memref.load %arg1[%515] : memref<384xf32, #tpu.memory_space<smem>>
    %c2_i32_105 = arith.constant 2 : i32
    %517 = arith.addi %510, %c2_i32_105 : i32
    %518 = arith.index_cast %517 : i32 to index
    %519 = memref.load %arg1[%518] : memref<384xf32, #tpu.memory_space<smem>>
    %c3_i32_106 = arith.constant 3 : i32
    %520 = arith.addi %510, %c3_i32_106 : i32
    %521 = arith.index_cast %520 : i32 to index
    %522 = memref.load %arg1[%521] : memref<384xf32, #tpu.memory_space<smem>>
    %c4_i32_107 = arith.constant 4 : i32
    %523 = arith.addi %510, %c4_i32_107 : i32
    %524 = arith.index_cast %523 : i32 to index
    %525 = memref.load %arg1[%524] : memref<384xf32, #tpu.memory_space<smem>>
    %c5_i32_108 = arith.constant 5 : i32
    %526 = arith.addi %510, %c5_i32_108 : i32
    %527 = arith.index_cast %526 : i32 to index
    %528 = memref.load %arg1[%527] : memref<384xf32, #tpu.memory_space<smem>>
    %c6_i32_109 = arith.constant 6 : i32
    %529 = arith.addi %510, %c6_i32_109 : i32
    %530 = arith.index_cast %529 : i32 to index
    %531 = memref.load %arg1[%530] : memref<384xf32, #tpu.memory_space<smem>>
    %c7_i32_110 = arith.constant 7 : i32
    %532 = arith.addi %510, %c7_i32_110 : i32
    %533 = arith.index_cast %532 : i32 to index
    %534 = memref.load %arg1[%533] : memref<384xf32, #tpu.memory_space<smem>>
    %c8_i32_111 = arith.constant 8 : i32
    %535 = arith.addi %510, %c8_i32_111 : i32
    %536 = arith.index_cast %535 : i32 to index
    %537 = memref.load %arg1[%536] : memref<384xf32, #tpu.memory_space<smem>>
    %c9_i32_112 = arith.constant 9 : i32
    %538 = arith.addi %510, %c9_i32_112 : i32
    %539 = arith.index_cast %538 : i32 to index
    %540 = memref.load %arg1[%539] : memref<384xf32, #tpu.memory_space<smem>>
    %c10_i32_113 = arith.constant 10 : i32
    %541 = arith.addi %510, %c10_i32_113 : i32
    %542 = arith.index_cast %541 : i32 to index
    %543 = memref.load %arg1[%542] : memref<384xf32, #tpu.memory_space<smem>>
    %c11_i32_114 = arith.constant 11 : i32
    %544 = arith.addi %510, %c11_i32_114 : i32
    %545 = arith.index_cast %544 : i32 to index
    %546 = memref.load %arg1[%545] : memref<384xf32, #tpu.memory_space<smem>>
    %547 = vector.broadcast %513 : f32 to vector<32x128xf32>
    %548 = arith.mulf %547, %31 : vector<32x128xf32>
    %549 = vector.broadcast %516 : f32 to vector<32x128xf32>
    %550 = arith.mulf %549, %21 : vector<32x128xf32>
    %551 = arith.addf %548, %550 : vector<32x128xf32>
    %552 = vector.broadcast %519 : f32 to vector<32x128xf32>
    %553 = arith.addf %551, %552 : vector<32x128xf32>
    %554 = vector.broadcast %522 : f32 to vector<32x128xf32>
    %555 = arith.mulf %554, %31 : vector<32x128xf32>
    %556 = vector.broadcast %525 : f32 to vector<32x128xf32>
    %557 = arith.mulf %556, %21 : vector<32x128xf32>
    %558 = arith.addf %555, %557 : vector<32x128xf32>
    %559 = vector.broadcast %528 : f32 to vector<32x128xf32>
    %560 = arith.addf %558, %559 : vector<32x128xf32>
    %561 = vector.broadcast %531 : f32 to vector<32x128xf32>
    %562 = arith.mulf %561, %31 : vector<32x128xf32>
    %563 = vector.broadcast %534 : f32 to vector<32x128xf32>
    %564 = arith.mulf %563, %21 : vector<32x128xf32>
    %565 = arith.addf %562, %564 : vector<32x128xf32>
    %566 = vector.broadcast %537 : f32 to vector<32x128xf32>
    %567 = arith.addf %565, %566 : vector<32x128xf32>
    %568 = vector.broadcast %540 : f32 to vector<32x128xf32>
    %569 = arith.mulf %568, %31 : vector<32x128xf32>
    %570 = vector.broadcast %543 : f32 to vector<32x128xf32>
    %571 = arith.mulf %570, %21 : vector<32x128xf32>
    %572 = arith.addf %569, %571 : vector<32x128xf32>
    %573 = vector.broadcast %546 : f32 to vector<32x128xf32>
    %574 = arith.addf %572, %573 : vector<32x128xf32>
    %575 = arith.minimumf %553, %560 : vector<32x128xf32>
    %576 = arith.minimumf %575, %567 : vector<32x128xf32>
    %cst_115 = arith.constant 0.000000e+00 : f32
    %577 = vector.broadcast %cst_115 : f32 to vector<32x128xf32>
    %578 = arith.cmpf ogt, %576, %577 : vector<32x128xf32>
    %cst_116 = arith.constant 0.000000e+00 : f32
    %579 = vector.broadcast %cst_116 : f32 to vector<32x128xf32>
    %580 = arith.cmpf oge, %574, %579 : vector<32x128xf32>
    %581 = arith.andi %578, %580 : vector<32x128xi1>
    %582 = arith.cmpf olt, %574, %505 : vector<32x128xf32>
    %583 = arith.andi %581, %582 : vector<32x128xi1>
    %584 = arith.select %583, %574, %505 : vector<32x128xi1>, vector<32x128xf32>
    %585 = vector.broadcast %509 : i32 to vector<32x128xi32>
    %586 = arith.select %583, %585, %507 : vector<32x128xi1>, vector<32x128xi32>
    %c7_i32_117 = arith.constant 7 : i32
    %c16_i32_118 = arith.constant 16 : i32
    %587 = arith.muli %arg0, %c16_i32_118 : i32
    %588 = arith.addi %587, %c7_i32_117 : i32
    %c12_i32_119 = arith.constant 12 : i32
    %589 = arith.muli %588, %c12_i32_119 : i32
    %c0_i32_120 = arith.constant 0 : i32
    %590 = arith.addi %589, %c0_i32_120 : i32
    %591 = arith.index_cast %590 : i32 to index
    %592 = memref.load %arg1[%591] : memref<384xf32, #tpu.memory_space<smem>>
    %c1_i32_121 = arith.constant 1 : i32
    %593 = arith.addi %589, %c1_i32_121 : i32
    %594 = arith.index_cast %593 : i32 to index
    %595 = memref.load %arg1[%594] : memref<384xf32, #tpu.memory_space<smem>>
    %c2_i32_122 = arith.constant 2 : i32
    %596 = arith.addi %589, %c2_i32_122 : i32
    %597 = arith.index_cast %596 : i32 to index
    %598 = memref.load %arg1[%597] : memref<384xf32, #tpu.memory_space<smem>>
    %c3_i32_123 = arith.constant 3 : i32
    %599 = arith.addi %589, %c3_i32_123 : i32
    %600 = arith.index_cast %599 : i32 to index
    %601 = memref.load %arg1[%600] : memref<384xf32, #tpu.memory_space<smem>>
    %c4_i32_124 = arith.constant 4 : i32
    %602 = arith.addi %589, %c4_i32_124 : i32
    %603 = arith.index_cast %602 : i32 to index
    %604 = memref.load %arg1[%603] : memref<384xf32, #tpu.memory_space<smem>>
    %c5_i32_125 = arith.constant 5 : i32
    %605 = arith.addi %589, %c5_i32_125 : i32
    %606 = arith.index_cast %605 : i32 to index
    %607 = memref.load %arg1[%606] : memref<384xf32, #tpu.memory_space<smem>>
    %c6_i32_126 = arith.constant 6 : i32
    %608 = arith.addi %589, %c6_i32_126 : i32
    %609 = arith.index_cast %608 : i32 to index
    %610 = memref.load %arg1[%609] : memref<384xf32, #tpu.memory_space<smem>>
    %c7_i32_127 = arith.constant 7 : i32
    %611 = arith.addi %589, %c7_i32_127 : i32
    %612 = arith.index_cast %611 : i32 to index
    %613 = memref.load %arg1[%612] : memref<384xf32, #tpu.memory_space<smem>>
    %c8_i32_128 = arith.constant 8 : i32
    %614 = arith.addi %589, %c8_i32_128 : i32
    %615 = arith.index_cast %614 : i32 to index
    %616 = memref.load %arg1[%615] : memref<384xf32, #tpu.memory_space<smem>>
    %c9_i32_129 = arith.constant 9 : i32
    %617 = arith.addi %589, %c9_i32_129 : i32
    %618 = arith.index_cast %617 : i32 to index
    %619 = memref.load %arg1[%618] : memref<384xf32, #tpu.memory_space<smem>>
    %c10_i32_130 = arith.constant 10 : i32
    %620 = arith.addi %589, %c10_i32_130 : i32
    %621 = arith.index_cast %620 : i32 to index
    %622 = memref.load %arg1[%621] : memref<384xf32, #tpu.memory_space<smem>>
    %c11_i32_131 = arith.constant 11 : i32
    %623 = arith.addi %589, %c11_i32_131 : i32
    %624 = arith.index_cast %623 : i32 to index
    %625 = memref.load %arg1[%624] : memref<384xf32, #tpu.memory_space<smem>>
    %626 = vector.broadcast %592 : f32 to vector<32x128xf32>
    %627 = arith.mulf %626, %31 : vector<32x128xf32>
    %628 = vector.broadcast %595 : f32 to vector<32x128xf32>
    %629 = arith.mulf %628, %21 : vector<32x128xf32>
    %630 = arith.addf %627, %629 : vector<32x128xf32>
    %631 = vector.broadcast %598 : f32 to vector<32x128xf32>
    %632 = arith.addf %630, %631 : vector<32x128xf32>
    %633 = vector.broadcast %601 : f32 to vector<32x128xf32>
    %634 = arith.mulf %633, %31 : vector<32x128xf32>
    %635 = vector.broadcast %604 : f32 to vector<32x128xf32>
    %636 = arith.mulf %635, %21 : vector<32x128xf32>
    %637 = arith.addf %634, %636 : vector<32x128xf32>
    %638 = vector.broadcast %607 : f32 to vector<32x128xf32>
    %639 = arith.addf %637, %638 : vector<32x128xf32>
    %640 = vector.broadcast %610 : f32 to vector<32x128xf32>
    %641 = arith.mulf %640, %31 : vector<32x128xf32>
    %642 = vector.broadcast %613 : f32 to vector<32x128xf32>
    %643 = arith.mulf %642, %21 : vector<32x128xf32>
    %644 = arith.addf %641, %643 : vector<32x128xf32>
    %645 = vector.broadcast %616 : f32 to vector<32x128xf32>
    %646 = arith.addf %644, %645 : vector<32x128xf32>
    %647 = vector.broadcast %619 : f32 to vector<32x128xf32>
    %648 = arith.mulf %647, %31 : vector<32x128xf32>
    %649 = vector.broadcast %622 : f32 to vector<32x128xf32>
    %650 = arith.mulf %649, %21 : vector<32x128xf32>
    %651 = arith.addf %648, %650 : vector<32x128xf32>
    %652 = vector.broadcast %625 : f32 to vector<32x128xf32>
    %653 = arith.addf %651, %652 : vector<32x128xf32>
    %654 = arith.minimumf %632, %639 : vector<32x128xf32>
    %655 = arith.minimumf %654, %646 : vector<32x128xf32>
    %cst_132 = arith.constant 0.000000e+00 : f32
    %656 = vector.broadcast %cst_132 : f32 to vector<32x128xf32>
    %657 = arith.cmpf ogt, %655, %656 : vector<32x128xf32>
    %cst_133 = arith.constant 0.000000e+00 : f32
    %658 = vector.broadcast %cst_133 : f32 to vector<32x128xf32>
    %659 = arith.cmpf oge, %653, %658 : vector<32x128xf32>
    %660 = arith.andi %657, %659 : vector<32x128xi1>
    %661 = arith.cmpf olt, %653, %584 : vector<32x128xf32>
    %662 = arith.andi %660, %661 : vector<32x128xi1>
    %663 = arith.select %662, %653, %584 : vector<32x128xi1>, vector<32x128xf32>
    %664 = vector.broadcast %588 : i32 to vector<32x128xi32>
    %665 = arith.select %662, %664, %586 : vector<32x128xi1>, vector<32x128xi32>
    %c8_i32_134 = arith.constant 8 : i32
    %c16_i32_135 = arith.constant 16 : i32
    %666 = arith.muli %arg0, %c16_i32_135 : i32
    %667 = arith.addi %666, %c8_i32_134 : i32
    %c12_i32_136 = arith.constant 12 : i32
    %668 = arith.muli %667, %c12_i32_136 : i32
    %c0_i32_137 = arith.constant 0 : i32
    %669 = arith.addi %668, %c0_i32_137 : i32
    %670 = arith.index_cast %669 : i32 to index
    %671 = memref.load %arg1[%670] : memref<384xf32, #tpu.memory_space<smem>>
    %c1_i32_138 = arith.constant 1 : i32
    %672 = arith.addi %668, %c1_i32_138 : i32
    %673 = arith.index_cast %672 : i32 to index
    %674 = memref.load %arg1[%673] : memref<384xf32, #tpu.memory_space<smem>>
    %c2_i32_139 = arith.constant 2 : i32
    %675 = arith.addi %668, %c2_i32_139 : i32
    %676 = arith.index_cast %675 : i32 to index
    %677 = memref.load %arg1[%676] : memref<384xf32, #tpu.memory_space<smem>>
    %c3_i32_140 = arith.constant 3 : i32
    %678 = arith.addi %668, %c3_i32_140 : i32
    %679 = arith.index_cast %678 : i32 to index
    %680 = memref.load %arg1[%679] : memref<384xf32, #tpu.memory_space<smem>>
    %c4_i32_141 = arith.constant 4 : i32
    %681 = arith.addi %668, %c4_i32_141 : i32
    %682 = arith.index_cast %681 : i32 to index
    %683 = memref.load %arg1[%682] : memref<384xf32, #tpu.memory_space<smem>>
    %c5_i32_142 = arith.constant 5 : i32
    %684 = arith.addi %668, %c5_i32_142 : i32
    %685 = arith.index_cast %684 : i32 to index
    %686 = memref.load %arg1[%685] : memref<384xf32, #tpu.memory_space<smem>>
    %c6_i32_143 = arith.constant 6 : i32
    %687 = arith.addi %668, %c6_i32_143 : i32
    %688 = arith.index_cast %687 : i32 to index
    %689 = memref.load %arg1[%688] : memref<384xf32, #tpu.memory_space<smem>>
    %c7_i32_144 = arith.constant 7 : i32
    %690 = arith.addi %668, %c7_i32_144 : i32
    %691 = arith.index_cast %690 : i32 to index
    %692 = memref.load %arg1[%691] : memref<384xf32, #tpu.memory_space<smem>>
    %c8_i32_145 = arith.constant 8 : i32
    %693 = arith.addi %668, %c8_i32_145 : i32
    %694 = arith.index_cast %693 : i32 to index
    %695 = memref.load %arg1[%694] : memref<384xf32, #tpu.memory_space<smem>>
    %c9_i32_146 = arith.constant 9 : i32
    %696 = arith.addi %668, %c9_i32_146 : i32
    %697 = arith.index_cast %696 : i32 to index
    %698 = memref.load %arg1[%697] : memref<384xf32, #tpu.memory_space<smem>>
    %c10_i32_147 = arith.constant 10 : i32
    %699 = arith.addi %668, %c10_i32_147 : i32
    %700 = arith.index_cast %699 : i32 to index
    %701 = memref.load %arg1[%700] : memref<384xf32, #tpu.memory_space<smem>>
    %c11_i32_148 = arith.constant 11 : i32
    %702 = arith.addi %668, %c11_i32_148 : i32
    %703 = arith.index_cast %702 : i32 to index
    %704 = memref.load %arg1[%703] : memref<384xf32, #tpu.memory_space<smem>>
    %705 = vector.broadcast %671 : f32 to vector<32x128xf32>
    %706 = arith.mulf %705, %31 : vector<32x128xf32>
    %707 = vector.broadcast %674 : f32 to vector<32x128xf32>
    %708 = arith.mulf %707, %21 : vector<32x128xf32>
    %709 = arith.addf %706, %708 : vector<32x128xf32>
    %710 = vector.broadcast %677 : f32 to vector<32x128xf32>
    %711 = arith.addf %709, %710 : vector<32x128xf32>
    %712 = vector.broadcast %680 : f32 to vector<32x128xf32>
    %713 = arith.mulf %712, %31 : vector<32x128xf32>
    %714 = vector.broadcast %683 : f32 to vector<32x128xf32>
    %715 = arith.mulf %714, %21 : vector<32x128xf32>
    %716 = arith.addf %713, %715 : vector<32x128xf32>
    %717 = vector.broadcast %686 : f32 to vector<32x128xf32>
    %718 = arith.addf %716, %717 : vector<32x128xf32>
    %719 = vector.broadcast %689 : f32 to vector<32x128xf32>
    %720 = arith.mulf %719, %31 : vector<32x128xf32>
    %721 = vector.broadcast %692 : f32 to vector<32x128xf32>
    %722 = arith.mulf %721, %21 : vector<32x128xf32>
    %723 = arith.addf %720, %722 : vector<32x128xf32>
    %724 = vector.broadcast %695 : f32 to vector<32x128xf32>
    %725 = arith.addf %723, %724 : vector<32x128xf32>
    %726 = vector.broadcast %698 : f32 to vector<32x128xf32>
    %727 = arith.mulf %726, %31 : vector<32x128xf32>
    %728 = vector.broadcast %701 : f32 to vector<32x128xf32>
    %729 = arith.mulf %728, %21 : vector<32x128xf32>
    %730 = arith.addf %727, %729 : vector<32x128xf32>
    %731 = vector.broadcast %704 : f32 to vector<32x128xf32>
    %732 = arith.addf %730, %731 : vector<32x128xf32>
    %733 = arith.minimumf %711, %718 : vector<32x128xf32>
    %734 = arith.minimumf %733, %725 : vector<32x128xf32>
    %cst_149 = arith.constant 0.000000e+00 : f32
    %735 = vector.broadcast %cst_149 : f32 to vector<32x128xf32>
    %736 = arith.cmpf ogt, %734, %735 : vector<32x128xf32>
    %cst_150 = arith.constant 0.000000e+00 : f32
    %737 = vector.broadcast %cst_150 : f32 to vector<32x128xf32>
    %738 = arith.cmpf oge, %732, %737 : vector<32x128xf32>
    %739 = arith.andi %736, %738 : vector<32x128xi1>
    %740 = arith.cmpf olt, %732, %663 : vector<32x128xf32>
    %741 = arith.andi %739, %740 : vector<32x128xi1>
    %742 = arith.select %741, %732, %663 : vector<32x128xi1>, vector<32x128xf32>
    %743 = vector.broadcast %667 : i32 to vector<32x128xi32>
    %744 = arith.select %741, %743, %665 : vector<32x128xi1>, vector<32x128xi32>
    %c9_i32_151 = arith.constant 9 : i32
    %c16_i32_152 = arith.constant 16 : i32
    %745 = arith.muli %arg0, %c16_i32_152 : i32
    %746 = arith.addi %745, %c9_i32_151 : i32
    %c12_i32_153 = arith.constant 12 : i32
    %747 = arith.muli %746, %c12_i32_153 : i32
    %c0_i32_154 = arith.constant 0 : i32
    %748 = arith.addi %747, %c0_i32_154 : i32
    %749 = arith.index_cast %748 : i32 to index
    %750 = memref.load %arg1[%749] : memref<384xf32, #tpu.memory_space<smem>>
    %c1_i32_155 = arith.constant 1 : i32
    %751 = arith.addi %747, %c1_i32_155 : i32
    %752 = arith.index_cast %751 : i32 to index
    %753 = memref.load %arg1[%752] : memref<384xf32, #tpu.memory_space<smem>>
    %c2_i32_156 = arith.constant 2 : i32
    %754 = arith.addi %747, %c2_i32_156 : i32
    %755 = arith.index_cast %754 : i32 to index
    %756 = memref.load %arg1[%755] : memref<384xf32, #tpu.memory_space<smem>>
    %c3_i32_157 = arith.constant 3 : i32
    %757 = arith.addi %747, %c3_i32_157 : i32
    %758 = arith.index_cast %757 : i32 to index
    %759 = memref.load %arg1[%758] : memref<384xf32, #tpu.memory_space<smem>>
    %c4_i32_158 = arith.constant 4 : i32
    %760 = arith.addi %747, %c4_i32_158 : i32
    %761 = arith.index_cast %760 : i32 to index
    %762 = memref.load %arg1[%761] : memref<384xf32, #tpu.memory_space<smem>>
    %c5_i32_159 = arith.constant 5 : i32
    %763 = arith.addi %747, %c5_i32_159 : i32
    %764 = arith.index_cast %763 : i32 to index
    %765 = memref.load %arg1[%764] : memref<384xf32, #tpu.memory_space<smem>>
    %c6_i32_160 = arith.constant 6 : i32
    %766 = arith.addi %747, %c6_i32_160 : i32
    %767 = arith.index_cast %766 : i32 to index
    %768 = memref.load %arg1[%767] : memref<384xf32, #tpu.memory_space<smem>>
    %c7_i32_161 = arith.constant 7 : i32
    %769 = arith.addi %747, %c7_i32_161 : i32
    %770 = arith.index_cast %769 : i32 to index
    %771 = memref.load %arg1[%770] : memref<384xf32, #tpu.memory_space<smem>>
    %c8_i32_162 = arith.constant 8 : i32
    %772 = arith.addi %747, %c8_i32_162 : i32
    %773 = arith.index_cast %772 : i32 to index
    %774 = memref.load %arg1[%773] : memref<384xf32, #tpu.memory_space<smem>>
    %c9_i32_163 = arith.constant 9 : i32
    %775 = arith.addi %747, %c9_i32_163 : i32
    %776 = arith.index_cast %775 : i32 to index
    %777 = memref.load %arg1[%776] : memref<384xf32, #tpu.memory_space<smem>>
    %c10_i32_164 = arith.constant 10 : i32
    %778 = arith.addi %747, %c10_i32_164 : i32
    %779 = arith.index_cast %778 : i32 to index
    %780 = memref.load %arg1[%779] : memref<384xf32, #tpu.memory_space<smem>>
    %c11_i32_165 = arith.constant 11 : i32
    %781 = arith.addi %747, %c11_i32_165 : i32
    %782 = arith.index_cast %781 : i32 to index
    %783 = memref.load %arg1[%782] : memref<384xf32, #tpu.memory_space<smem>>
    %784 = vector.broadcast %750 : f32 to vector<32x128xf32>
    %785 = arith.mulf %784, %31 : vector<32x128xf32>
    %786 = vector.broadcast %753 : f32 to vector<32x128xf32>
    %787 = arith.mulf %786, %21 : vector<32x128xf32>
    %788 = arith.addf %785, %787 : vector<32x128xf32>
    %789 = vector.broadcast %756 : f32 to vector<32x128xf32>
    %790 = arith.addf %788, %789 : vector<32x128xf32>
    %791 = vector.broadcast %759 : f32 to vector<32x128xf32>
    %792 = arith.mulf %791, %31 : vector<32x128xf32>
    %793 = vector.broadcast %762 : f32 to vector<32x128xf32>
    %794 = arith.mulf %793, %21 : vector<32x128xf32>
    %795 = arith.addf %792, %794 : vector<32x128xf32>
    %796 = vector.broadcast %765 : f32 to vector<32x128xf32>
    %797 = arith.addf %795, %796 : vector<32x128xf32>
    %798 = vector.broadcast %768 : f32 to vector<32x128xf32>
    %799 = arith.mulf %798, %31 : vector<32x128xf32>
    %800 = vector.broadcast %771 : f32 to vector<32x128xf32>
    %801 = arith.mulf %800, %21 : vector<32x128xf32>
    %802 = arith.addf %799, %801 : vector<32x128xf32>
    %803 = vector.broadcast %774 : f32 to vector<32x128xf32>
    %804 = arith.addf %802, %803 : vector<32x128xf32>
    %805 = vector.broadcast %777 : f32 to vector<32x128xf32>
    %806 = arith.mulf %805, %31 : vector<32x128xf32>
    %807 = vector.broadcast %780 : f32 to vector<32x128xf32>
    %808 = arith.mulf %807, %21 : vector<32x128xf32>
    %809 = arith.addf %806, %808 : vector<32x128xf32>
    %810 = vector.broadcast %783 : f32 to vector<32x128xf32>
    %811 = arith.addf %809, %810 : vector<32x128xf32>
    %812 = arith.minimumf %790, %797 : vector<32x128xf32>
    %813 = arith.minimumf %812, %804 : vector<32x128xf32>
    %cst_166 = arith.constant 0.000000e+00 : f32
    %814 = vector.broadcast %cst_166 : f32 to vector<32x128xf32>
    %815 = arith.cmpf ogt, %813, %814 : vector<32x128xf32>
    %cst_167 = arith.constant 0.000000e+00 : f32
    %816 = vector.broadcast %cst_167 : f32 to vector<32x128xf32>
    %817 = arith.cmpf oge, %811, %816 : vector<32x128xf32>
    %818 = arith.andi %815, %817 : vector<32x128xi1>
    %819 = arith.cmpf olt, %811, %742 : vector<32x128xf32>
    %820 = arith.andi %818, %819 : vector<32x128xi1>
    %821 = arith.select %820, %811, %742 : vector<32x128xi1>, vector<32x128xf32>
    %822 = vector.broadcast %746 : i32 to vector<32x128xi32>
    %823 = arith.select %820, %822, %744 : vector<32x128xi1>, vector<32x128xi32>
    %c10_i32_168 = arith.constant 10 : i32
    %c16_i32_169 = arith.constant 16 : i32
    %824 = arith.muli %arg0, %c16_i32_169 : i32
    %825 = arith.addi %824, %c10_i32_168 : i32
    %c12_i32_170 = arith.constant 12 : i32
    %826 = arith.muli %825, %c12_i32_170 : i32
    %c0_i32_171 = arith.constant 0 : i32
    %827 = arith.addi %826, %c0_i32_171 : i32
    %828 = arith.index_cast %827 : i32 to index
    %829 = memref.load %arg1[%828] : memref<384xf32, #tpu.memory_space<smem>>
    %c1_i32_172 = arith.constant 1 : i32
    %830 = arith.addi %826, %c1_i32_172 : i32
    %831 = arith.index_cast %830 : i32 to index
    %832 = memref.load %arg1[%831] : memref<384xf32, #tpu.memory_space<smem>>
    %c2_i32_173 = arith.constant 2 : i32
    %833 = arith.addi %826, %c2_i32_173 : i32
    %834 = arith.index_cast %833 : i32 to index
    %835 = memref.load %arg1[%834] : memref<384xf32, #tpu.memory_space<smem>>
    %c3_i32_174 = arith.constant 3 : i32
    %836 = arith.addi %826, %c3_i32_174 : i32
    %837 = arith.index_cast %836 : i32 to index
    %838 = memref.load %arg1[%837] : memref<384xf32, #tpu.memory_space<smem>>
    %c4_i32_175 = arith.constant 4 : i32
    %839 = arith.addi %826, %c4_i32_175 : i32
    %840 = arith.index_cast %839 : i32 to index
    %841 = memref.load %arg1[%840] : memref<384xf32, #tpu.memory_space<smem>>
    %c5_i32_176 = arith.constant 5 : i32
    %842 = arith.addi %826, %c5_i32_176 : i32
    %843 = arith.index_cast %842 : i32 to index
    %844 = memref.load %arg1[%843] : memref<384xf32, #tpu.memory_space<smem>>
    %c6_i32_177 = arith.constant 6 : i32
    %845 = arith.addi %826, %c6_i32_177 : i32
    %846 = arith.index_cast %845 : i32 to index
    %847 = memref.load %arg1[%846] : memref<384xf32, #tpu.memory_space<smem>>
    %c7_i32_178 = arith.constant 7 : i32
    %848 = arith.addi %826, %c7_i32_178 : i32
    %849 = arith.index_cast %848 : i32 to index
    %850 = memref.load %arg1[%849] : memref<384xf32, #tpu.memory_space<smem>>
    %c8_i32_179 = arith.constant 8 : i32
    %851 = arith.addi %826, %c8_i32_179 : i32
    %852 = arith.index_cast %851 : i32 to index
    %853 = memref.load %arg1[%852] : memref<384xf32, #tpu.memory_space<smem>>
    %c9_i32_180 = arith.constant 9 : i32
    %854 = arith.addi %826, %c9_i32_180 : i32
    %855 = arith.index_cast %854 : i32 to index
    %856 = memref.load %arg1[%855] : memref<384xf32, #tpu.memory_space<smem>>
    %c10_i32_181 = arith.constant 10 : i32
    %857 = arith.addi %826, %c10_i32_181 : i32
    %858 = arith.index_cast %857 : i32 to index
    %859 = memref.load %arg1[%858] : memref<384xf32, #tpu.memory_space<smem>>
    %c11_i32_182 = arith.constant 11 : i32
    %860 = arith.addi %826, %c11_i32_182 : i32
    %861 = arith.index_cast %860 : i32 to index
    %862 = memref.load %arg1[%861] : memref<384xf32, #tpu.memory_space<smem>>
    %863 = vector.broadcast %829 : f32 to vector<32x128xf32>
    %864 = arith.mulf %863, %31 : vector<32x128xf32>
    %865 = vector.broadcast %832 : f32 to vector<32x128xf32>
    %866 = arith.mulf %865, %21 : vector<32x128xf32>
    %867 = arith.addf %864, %866 : vector<32x128xf32>
    %868 = vector.broadcast %835 : f32 to vector<32x128xf32>
    %869 = arith.addf %867, %868 : vector<32x128xf32>
    %870 = vector.broadcast %838 : f32 to vector<32x128xf32>
    %871 = arith.mulf %870, %31 : vector<32x128xf32>
    %872 = vector.broadcast %841 : f32 to vector<32x128xf32>
    %873 = arith.mulf %872, %21 : vector<32x128xf32>
    %874 = arith.addf %871, %873 : vector<32x128xf32>
    %875 = vector.broadcast %844 : f32 to vector<32x128xf32>
    %876 = arith.addf %874, %875 : vector<32x128xf32>
    %877 = vector.broadcast %847 : f32 to vector<32x128xf32>
    %878 = arith.mulf %877, %31 : vector<32x128xf32>
    %879 = vector.broadcast %850 : f32 to vector<32x128xf32>
    %880 = arith.mulf %879, %21 : vector<32x128xf32>
    %881 = arith.addf %878, %880 : vector<32x128xf32>
    %882 = vector.broadcast %853 : f32 to vector<32x128xf32>
    %883 = arith.addf %881, %882 : vector<32x128xf32>
    %884 = vector.broadcast %856 : f32 to vector<32x128xf32>
    %885 = arith.mulf %884, %31 : vector<32x128xf32>
    %886 = vector.broadcast %859 : f32 to vector<32x128xf32>
    %887 = arith.mulf %886, %21 : vector<32x128xf32>
    %888 = arith.addf %885, %887 : vector<32x128xf32>
    %889 = vector.broadcast %862 : f32 to vector<32x128xf32>
    %890 = arith.addf %888, %889 : vector<32x128xf32>
    %891 = arith.minimumf %869, %876 : vector<32x128xf32>
    %892 = arith.minimumf %891, %883 : vector<32x128xf32>
    %cst_183 = arith.constant 0.000000e+00 : f32
    %893 = vector.broadcast %cst_183 : f32 to vector<32x128xf32>
    %894 = arith.cmpf ogt, %892, %893 : vector<32x128xf32>
    %cst_184 = arith.constant 0.000000e+00 : f32
    %895 = vector.broadcast %cst_184 : f32 to vector<32x128xf32>
    %896 = arith.cmpf oge, %890, %895 : vector<32x128xf32>
    %897 = arith.andi %894, %896 : vector<32x128xi1>
    %898 = arith.cmpf olt, %890, %821 : vector<32x128xf32>
    %899 = arith.andi %897, %898 : vector<32x128xi1>
    %900 = arith.select %899, %890, %821 : vector<32x128xi1>, vector<32x128xf32>
    %901 = vector.broadcast %825 : i32 to vector<32x128xi32>
    %902 = arith.select %899, %901, %823 : vector<32x128xi1>, vector<32x128xi32>
    %c11_i32_185 = arith.constant 11 : i32
    %c16_i32_186 = arith.constant 16 : i32
    %903 = arith.muli %arg0, %c16_i32_186 : i32
    %904 = arith.addi %903, %c11_i32_185 : i32
    %c12_i32_187 = arith.constant 12 : i32
    %905 = arith.muli %904, %c12_i32_187 : i32
    %c0_i32_188 = arith.constant 0 : i32
    %906 = arith.addi %905, %c0_i32_188 : i32
    %907 = arith.index_cast %906 : i32 to index
    %908 = memref.load %arg1[%907] : memref<384xf32, #tpu.memory_space<smem>>
    %c1_i32_189 = arith.constant 1 : i32
    %909 = arith.addi %905, %c1_i32_189 : i32
    %910 = arith.index_cast %909 : i32 to index
    %911 = memref.load %arg1[%910] : memref<384xf32, #tpu.memory_space<smem>>
    %c2_i32_190 = arith.constant 2 : i32
    %912 = arith.addi %905, %c2_i32_190 : i32
    %913 = arith.index_cast %912 : i32 to index
    %914 = memref.load %arg1[%913] : memref<384xf32, #tpu.memory_space<smem>>
    %c3_i32_191 = arith.constant 3 : i32
    %915 = arith.addi %905, %c3_i32_191 : i32
    %916 = arith.index_cast %915 : i32 to index
    %917 = memref.load %arg1[%916] : memref<384xf32, #tpu.memory_space<smem>>
    %c4_i32_192 = arith.constant 4 : i32
    %918 = arith.addi %905, %c4_i32_192 : i32
    %919 = arith.index_cast %918 : i32 to index
    %920 = memref.load %arg1[%919] : memref<384xf32, #tpu.memory_space<smem>>
    %c5_i32_193 = arith.constant 5 : i32
    %921 = arith.addi %905, %c5_i32_193 : i32
    %922 = arith.index_cast %921 : i32 to index
    %923 = memref.load %arg1[%922] : memref<384xf32, #tpu.memory_space<smem>>
    %c6_i32_194 = arith.constant 6 : i32
    %924 = arith.addi %905, %c6_i32_194 : i32
    %925 = arith.index_cast %924 : i32 to index
    %926 = memref.load %arg1[%925] : memref<384xf32, #tpu.memory_space<smem>>
    %c7_i32_195 = arith.constant 7 : i32
    %927 = arith.addi %905, %c7_i32_195 : i32
    %928 = arith.index_cast %927 : i32 to index
    %929 = memref.load %arg1[%928] : memref<384xf32, #tpu.memory_space<smem>>
    %c8_i32_196 = arith.constant 8 : i32
    %930 = arith.addi %905, %c8_i32_196 : i32
    %931 = arith.index_cast %930 : i32 to index
    %932 = memref.load %arg1[%931] : memref<384xf32, #tpu.memory_space<smem>>
    %c9_i32_197 = arith.constant 9 : i32
    %933 = arith.addi %905, %c9_i32_197 : i32
    %934 = arith.index_cast %933 : i32 to index
    %935 = memref.load %arg1[%934] : memref<384xf32, #tpu.memory_space<smem>>
    %c10_i32_198 = arith.constant 10 : i32
    %936 = arith.addi %905, %c10_i32_198 : i32
    %937 = arith.index_cast %936 : i32 to index
    %938 = memref.load %arg1[%937] : memref<384xf32, #tpu.memory_space<smem>>
    %c11_i32_199 = arith.constant 11 : i32
    %939 = arith.addi %905, %c11_i32_199 : i32
    %940 = arith.index_cast %939 : i32 to index
    %941 = memref.load %arg1[%940] : memref<384xf32, #tpu.memory_space<smem>>
    %942 = vector.broadcast %908 : f32 to vector<32x128xf32>
    %943 = arith.mulf %942, %31 : vector<32x128xf32>
    %944 = vector.broadcast %911 : f32 to vector<32x128xf32>
    %945 = arith.mulf %944, %21 : vector<32x128xf32>
    %946 = arith.addf %943, %945 : vector<32x128xf32>
    %947 = vector.broadcast %914 : f32 to vector<32x128xf32>
    %948 = arith.addf %946, %947 : vector<32x128xf32>
    %949 = vector.broadcast %917 : f32 to vector<32x128xf32>
    %950 = arith.mulf %949, %31 : vector<32x128xf32>
    %951 = vector.broadcast %920 : f32 to vector<32x128xf32>
    %952 = arith.mulf %951, %21 : vector<32x128xf32>
    %953 = arith.addf %950, %952 : vector<32x128xf32>
    %954 = vector.broadcast %923 : f32 to vector<32x128xf32>
    %955 = arith.addf %953, %954 : vector<32x128xf32>
    %956 = vector.broadcast %926 : f32 to vector<32x128xf32>
    %957 = arith.mulf %956, %31 : vector<32x128xf32>
    %958 = vector.broadcast %929 : f32 to vector<32x128xf32>
    %959 = arith.mulf %958, %21 : vector<32x128xf32>
    %960 = arith.addf %957, %959 : vector<32x128xf32>
    %961 = vector.broadcast %932 : f32 to vector<32x128xf32>
    %962 = arith.addf %960, %961 : vector<32x128xf32>
    %963 = vector.broadcast %935 : f32 to vector<32x128xf32>
    %964 = arith.mulf %963, %31 : vector<32x128xf32>
    %965 = vector.broadcast %938 : f32 to vector<32x128xf32>
    %966 = arith.mulf %965, %21 : vector<32x128xf32>
    %967 = arith.addf %964, %966 : vector<32x128xf32>
    %968 = vector.broadcast %941 : f32 to vector<32x128xf32>
    %969 = arith.addf %967, %968 : vector<32x128xf32>
    %970 = arith.minimumf %948, %955 : vector<32x128xf32>
    %971 = arith.minimumf %970, %962 : vector<32x128xf32>
    %cst_200 = arith.constant 0.000000e+00 : f32
    %972 = vector.broadcast %cst_200 : f32 to vector<32x128xf32>
    %973 = arith.cmpf ogt, %971, %972 : vector<32x128xf32>
    %cst_201 = arith.constant 0.000000e+00 : f32
    %974 = vector.broadcast %cst_201 : f32 to vector<32x128xf32>
    %975 = arith.cmpf oge, %969, %974 : vector<32x128xf32>
    %976 = arith.andi %973, %975 : vector<32x128xi1>
    %977 = arith.cmpf olt, %969, %900 : vector<32x128xf32>
    %978 = arith.andi %976, %977 : vector<32x128xi1>
    %979 = arith.select %978, %969, %900 : vector<32x128xi1>, vector<32x128xf32>
    %980 = vector.broadcast %904 : i32 to vector<32x128xi32>
    %981 = arith.select %978, %980, %902 : vector<32x128xi1>, vector<32x128xi32>
    %c12_i32_202 = arith.constant 12 : i32
    %c16_i32_203 = arith.constant 16 : i32
    %982 = arith.muli %arg0, %c16_i32_203 : i32
    %983 = arith.addi %982, %c12_i32_202 : i32
    %c12_i32_204 = arith.constant 12 : i32
    %984 = arith.muli %983, %c12_i32_204 : i32
    %c0_i32_205 = arith.constant 0 : i32
    %985 = arith.addi %984, %c0_i32_205 : i32
    %986 = arith.index_cast %985 : i32 to index
    %987 = memref.load %arg1[%986] : memref<384xf32, #tpu.memory_space<smem>>
    %c1_i32_206 = arith.constant 1 : i32
    %988 = arith.addi %984, %c1_i32_206 : i32
    %989 = arith.index_cast %988 : i32 to index
    %990 = memref.load %arg1[%989] : memref<384xf32, #tpu.memory_space<smem>>
    %c2_i32_207 = arith.constant 2 : i32
    %991 = arith.addi %984, %c2_i32_207 : i32
    %992 = arith.index_cast %991 : i32 to index
    %993 = memref.load %arg1[%992] : memref<384xf32, #tpu.memory_space<smem>>
    %c3_i32_208 = arith.constant 3 : i32
    %994 = arith.addi %984, %c3_i32_208 : i32
    %995 = arith.index_cast %994 : i32 to index
    %996 = memref.load %arg1[%995] : memref<384xf32, #tpu.memory_space<smem>>
    %c4_i32_209 = arith.constant 4 : i32
    %997 = arith.addi %984, %c4_i32_209 : i32
    %998 = arith.index_cast %997 : i32 to index
    %999 = memref.load %arg1[%998] : memref<384xf32, #tpu.memory_space<smem>>
    %c5_i32_210 = arith.constant 5 : i32
    %1000 = arith.addi %984, %c5_i32_210 : i32
    %1001 = arith.index_cast %1000 : i32 to index
    %1002 = memref.load %arg1[%1001] : memref<384xf32, #tpu.memory_space<smem>>
    %c6_i32_211 = arith.constant 6 : i32
    %1003 = arith.addi %984, %c6_i32_211 : i32
    %1004 = arith.index_cast %1003 : i32 to index
    %1005 = memref.load %arg1[%1004] : memref<384xf32, #tpu.memory_space<smem>>
    %c7_i32_212 = arith.constant 7 : i32
    %1006 = arith.addi %984, %c7_i32_212 : i32
    %1007 = arith.index_cast %1006 : i32 to index
    %1008 = memref.load %arg1[%1007] : memref<384xf32, #tpu.memory_space<smem>>
    %c8_i32_213 = arith.constant 8 : i32
    %1009 = arith.addi %984, %c8_i32_213 : i32
    %1010 = arith.index_cast %1009 : i32 to index
    %1011 = memref.load %arg1[%1010] : memref<384xf32, #tpu.memory_space<smem>>
    %c9_i32_214 = arith.constant 9 : i32
    %1012 = arith.addi %984, %c9_i32_214 : i32
    %1013 = arith.index_cast %1012 : i32 to index
    %1014 = memref.load %arg1[%1013] : memref<384xf32, #tpu.memory_space<smem>>
    %c10_i32_215 = arith.constant 10 : i32
    %1015 = arith.addi %984, %c10_i32_215 : i32
    %1016 = arith.index_cast %1015 : i32 to index
    %1017 = memref.load %arg1[%1016] : memref<384xf32, #tpu.memory_space<smem>>
    %c11_i32_216 = arith.constant 11 : i32
    %1018 = arith.addi %984, %c11_i32_216 : i32
    %1019 = arith.index_cast %1018 : i32 to index
    %1020 = memref.load %arg1[%1019] : memref<384xf32, #tpu.memory_space<smem>>
    %1021 = vector.broadcast %987 : f32 to vector<32x128xf32>
    %1022 = arith.mulf %1021, %31 : vector<32x128xf32>
    %1023 = vector.broadcast %990 : f32 to vector<32x128xf32>
    %1024 = arith.mulf %1023, %21 : vector<32x128xf32>
    %1025 = arith.addf %1022, %1024 : vector<32x128xf32>
    %1026 = vector.broadcast %993 : f32 to vector<32x128xf32>
    %1027 = arith.addf %1025, %1026 : vector<32x128xf32>
    %1028 = vector.broadcast %996 : f32 to vector<32x128xf32>
    %1029 = arith.mulf %1028, %31 : vector<32x128xf32>
    %1030 = vector.broadcast %999 : f32 to vector<32x128xf32>
    %1031 = arith.mulf %1030, %21 : vector<32x128xf32>
    %1032 = arith.addf %1029, %1031 : vector<32x128xf32>
    %1033 = vector.broadcast %1002 : f32 to vector<32x128xf32>
    %1034 = arith.addf %1032, %1033 : vector<32x128xf32>
    %1035 = vector.broadcast %1005 : f32 to vector<32x128xf32>
    %1036 = arith.mulf %1035, %31 : vector<32x128xf32>
    %1037 = vector.broadcast %1008 : f32 to vector<32x128xf32>
    %1038 = arith.mulf %1037, %21 : vector<32x128xf32>
    %1039 = arith.addf %1036, %1038 : vector<32x128xf32>
    %1040 = vector.broadcast %1011 : f32 to vector<32x128xf32>
    %1041 = arith.addf %1039, %1040 : vector<32x128xf32>
    %1042 = vector.broadcast %1014 : f32 to vector<32x128xf32>
    %1043 = arith.mulf %1042, %31 : vector<32x128xf32>
    %1044 = vector.broadcast %1017 : f32 to vector<32x128xf32>
    %1045 = arith.mulf %1044, %21 : vector<32x128xf32>
    %1046 = arith.addf %1043, %1045 : vector<32x128xf32>
    %1047 = vector.broadcast %1020 : f32 to vector<32x128xf32>
    %1048 = arith.addf %1046, %1047 : vector<32x128xf32>
    %1049 = arith.minimumf %1027, %1034 : vector<32x128xf32>
    %1050 = arith.minimumf %1049, %1041 : vector<32x128xf32>
    %cst_217 = arith.constant 0.000000e+00 : f32
    %1051 = vector.broadcast %cst_217 : f32 to vector<32x128xf32>
    %1052 = arith.cmpf ogt, %1050, %1051 : vector<32x128xf32>
    %cst_218 = arith.constant 0.000000e+00 : f32
    %1053 = vector.broadcast %cst_218 : f32 to vector<32x128xf32>
    %1054 = arith.cmpf oge, %1048, %1053 : vector<32x128xf32>
    %1055 = arith.andi %1052, %1054 : vector<32x128xi1>
    %1056 = arith.cmpf olt, %1048, %979 : vector<32x128xf32>
    %1057 = arith.andi %1055, %1056 : vector<32x128xi1>
    %1058 = arith.select %1057, %1048, %979 : vector<32x128xi1>, vector<32x128xf32>
    %1059 = vector.broadcast %983 : i32 to vector<32x128xi32>
    %1060 = arith.select %1057, %1059, %981 : vector<32x128xi1>, vector<32x128xi32>
    %c13_i32 = arith.constant 13 : i32
    %c16_i32_219 = arith.constant 16 : i32
    %1061 = arith.muli %arg0, %c16_i32_219 : i32
    %1062 = arith.addi %1061, %c13_i32 : i32
    %c12_i32_220 = arith.constant 12 : i32
    %1063 = arith.muli %1062, %c12_i32_220 : i32
    %c0_i32_221 = arith.constant 0 : i32
    %1064 = arith.addi %1063, %c0_i32_221 : i32
    %1065 = arith.index_cast %1064 : i32 to index
    %1066 = memref.load %arg1[%1065] : memref<384xf32, #tpu.memory_space<smem>>
    %c1_i32_222 = arith.constant 1 : i32
    %1067 = arith.addi %1063, %c1_i32_222 : i32
    %1068 = arith.index_cast %1067 : i32 to index
    %1069 = memref.load %arg1[%1068] : memref<384xf32, #tpu.memory_space<smem>>
    %c2_i32_223 = arith.constant 2 : i32
    %1070 = arith.addi %1063, %c2_i32_223 : i32
    %1071 = arith.index_cast %1070 : i32 to index
    %1072 = memref.load %arg1[%1071] : memref<384xf32, #tpu.memory_space<smem>>
    %c3_i32_224 = arith.constant 3 : i32
    %1073 = arith.addi %1063, %c3_i32_224 : i32
    %1074 = arith.index_cast %1073 : i32 to index
    %1075 = memref.load %arg1[%1074] : memref<384xf32, #tpu.memory_space<smem>>
    %c4_i32_225 = arith.constant 4 : i32
    %1076 = arith.addi %1063, %c4_i32_225 : i32
    %1077 = arith.index_cast %1076 : i32 to index
    %1078 = memref.load %arg1[%1077] : memref<384xf32, #tpu.memory_space<smem>>
    %c5_i32_226 = arith.constant 5 : i32
    %1079 = arith.addi %1063, %c5_i32_226 : i32
    %1080 = arith.index_cast %1079 : i32 to index
    %1081 = memref.load %arg1[%1080] : memref<384xf32, #tpu.memory_space<smem>>
    %c6_i32_227 = arith.constant 6 : i32
    %1082 = arith.addi %1063, %c6_i32_227 : i32
    %1083 = arith.index_cast %1082 : i32 to index
    %1084 = memref.load %arg1[%1083] : memref<384xf32, #tpu.memory_space<smem>>
    %c7_i32_228 = arith.constant 7 : i32
    %1085 = arith.addi %1063, %c7_i32_228 : i32
    %1086 = arith.index_cast %1085 : i32 to index
    %1087 = memref.load %arg1[%1086] : memref<384xf32, #tpu.memory_space<smem>>
    %c8_i32_229 = arith.constant 8 : i32
    %1088 = arith.addi %1063, %c8_i32_229 : i32
    %1089 = arith.index_cast %1088 : i32 to index
    %1090 = memref.load %arg1[%1089] : memref<384xf32, #tpu.memory_space<smem>>
    %c9_i32_230 = arith.constant 9 : i32
    %1091 = arith.addi %1063, %c9_i32_230 : i32
    %1092 = arith.index_cast %1091 : i32 to index
    %1093 = memref.load %arg1[%1092] : memref<384xf32, #tpu.memory_space<smem>>
    %c10_i32_231 = arith.constant 10 : i32
    %1094 = arith.addi %1063, %c10_i32_231 : i32
    %1095 = arith.index_cast %1094 : i32 to index
    %1096 = memref.load %arg1[%1095] : memref<384xf32, #tpu.memory_space<smem>>
    %c11_i32_232 = arith.constant 11 : i32
    %1097 = arith.addi %1063, %c11_i32_232 : i32
    %1098 = arith.index_cast %1097 : i32 to index
    %1099 = memref.load %arg1[%1098] : memref<384xf32, #tpu.memory_space<smem>>
    %1100 = vector.broadcast %1066 : f32 to vector<32x128xf32>
    %1101 = arith.mulf %1100, %31 : vector<32x128xf32>
    %1102 = vector.broadcast %1069 : f32 to vector<32x128xf32>
    %1103 = arith.mulf %1102, %21 : vector<32x128xf32>
    %1104 = arith.addf %1101, %1103 : vector<32x128xf32>
    %1105 = vector.broadcast %1072 : f32 to vector<32x128xf32>
    %1106 = arith.addf %1104, %1105 : vector<32x128xf32>
    %1107 = vector.broadcast %1075 : f32 to vector<32x128xf32>
    %1108 = arith.mulf %1107, %31 : vector<32x128xf32>
    %1109 = vector.broadcast %1078 : f32 to vector<32x128xf32>
    %1110 = arith.mulf %1109, %21 : vector<32x128xf32>
    %1111 = arith.addf %1108, %1110 : vector<32x128xf32>
    %1112 = vector.broadcast %1081 : f32 to vector<32x128xf32>
    %1113 = arith.addf %1111, %1112 : vector<32x128xf32>
    %1114 = vector.broadcast %1084 : f32 to vector<32x128xf32>
    %1115 = arith.mulf %1114, %31 : vector<32x128xf32>
    %1116 = vector.broadcast %1087 : f32 to vector<32x128xf32>
    %1117 = arith.mulf %1116, %21 : vector<32x128xf32>
    %1118 = arith.addf %1115, %1117 : vector<32x128xf32>
    %1119 = vector.broadcast %1090 : f32 to vector<32x128xf32>
    %1120 = arith.addf %1118, %1119 : vector<32x128xf32>
    %1121 = vector.broadcast %1093 : f32 to vector<32x128xf32>
    %1122 = arith.mulf %1121, %31 : vector<32x128xf32>
    %1123 = vector.broadcast %1096 : f32 to vector<32x128xf32>
    %1124 = arith.mulf %1123, %21 : vector<32x128xf32>
    %1125 = arith.addf %1122, %1124 : vector<32x128xf32>
    %1126 = vector.broadcast %1099 : f32 to vector<32x128xf32>
    %1127 = arith.addf %1125, %1126 : vector<32x128xf32>
    %1128 = arith.minimumf %1106, %1113 : vector<32x128xf32>
    %1129 = arith.minimumf %1128, %1120 : vector<32x128xf32>
    %cst_233 = arith.constant 0.000000e+00 : f32
    %1130 = vector.broadcast %cst_233 : f32 to vector<32x128xf32>
    %1131 = arith.cmpf ogt, %1129, %1130 : vector<32x128xf32>
    %cst_234 = arith.constant 0.000000e+00 : f32
    %1132 = vector.broadcast %cst_234 : f32 to vector<32x128xf32>
    %1133 = arith.cmpf oge, %1127, %1132 : vector<32x128xf32>
    %1134 = arith.andi %1131, %1133 : vector<32x128xi1>
    %1135 = arith.cmpf olt, %1127, %1058 : vector<32x128xf32>
    %1136 = arith.andi %1134, %1135 : vector<32x128xi1>
    %1137 = arith.select %1136, %1127, %1058 : vector<32x128xi1>, vector<32x128xf32>
    %1138 = vector.broadcast %1062 : i32 to vector<32x128xi32>
    %1139 = arith.select %1136, %1138, %1060 : vector<32x128xi1>, vector<32x128xi32>
    %c14_i32 = arith.constant 14 : i32
    %c16_i32_235 = arith.constant 16 : i32
    %1140 = arith.muli %arg0, %c16_i32_235 : i32
    %1141 = arith.addi %1140, %c14_i32 : i32
    %c12_i32_236 = arith.constant 12 : i32
    %1142 = arith.muli %1141, %c12_i32_236 : i32
    %c0_i32_237 = arith.constant 0 : i32
    %1143 = arith.addi %1142, %c0_i32_237 : i32
    %1144 = arith.index_cast %1143 : i32 to index
    %1145 = memref.load %arg1[%1144] : memref<384xf32, #tpu.memory_space<smem>>
    %c1_i32_238 = arith.constant 1 : i32
    %1146 = arith.addi %1142, %c1_i32_238 : i32
    %1147 = arith.index_cast %1146 : i32 to index
    %1148 = memref.load %arg1[%1147] : memref<384xf32, #tpu.memory_space<smem>>
    %c2_i32_239 = arith.constant 2 : i32
    %1149 = arith.addi %1142, %c2_i32_239 : i32
    %1150 = arith.index_cast %1149 : i32 to index
    %1151 = memref.load %arg1[%1150] : memref<384xf32, #tpu.memory_space<smem>>
    %c3_i32_240 = arith.constant 3 : i32
    %1152 = arith.addi %1142, %c3_i32_240 : i32
    %1153 = arith.index_cast %1152 : i32 to index
    %1154 = memref.load %arg1[%1153] : memref<384xf32, #tpu.memory_space<smem>>
    %c4_i32_241 = arith.constant 4 : i32
    %1155 = arith.addi %1142, %c4_i32_241 : i32
    %1156 = arith.index_cast %1155 : i32 to index
    %1157 = memref.load %arg1[%1156] : memref<384xf32, #tpu.memory_space<smem>>
    %c5_i32_242 = arith.constant 5 : i32
    %1158 = arith.addi %1142, %c5_i32_242 : i32
    %1159 = arith.index_cast %1158 : i32 to index
    %1160 = memref.load %arg1[%1159] : memref<384xf32, #tpu.memory_space<smem>>
    %c6_i32_243 = arith.constant 6 : i32
    %1161 = arith.addi %1142, %c6_i32_243 : i32
    %1162 = arith.index_cast %1161 : i32 to index
    %1163 = memref.load %arg1[%1162] : memref<384xf32, #tpu.memory_space<smem>>
    %c7_i32_244 = arith.constant 7 : i32
    %1164 = arith.addi %1142, %c7_i32_244 : i32
    %1165 = arith.index_cast %1164 : i32 to index
    %1166 = memref.load %arg1[%1165] : memref<384xf32, #tpu.memory_space<smem>>
    %c8_i32_245 = arith.constant 8 : i32
    %1167 = arith.addi %1142, %c8_i32_245 : i32
    %1168 = arith.index_cast %1167 : i32 to index
    %1169 = memref.load %arg1[%1168] : memref<384xf32, #tpu.memory_space<smem>>
    %c9_i32_246 = arith.constant 9 : i32
    %1170 = arith.addi %1142, %c9_i32_246 : i32
    %1171 = arith.index_cast %1170 : i32 to index
    %1172 = memref.load %arg1[%1171] : memref<384xf32, #tpu.memory_space<smem>>
    %c10_i32_247 = arith.constant 10 : i32
    %1173 = arith.addi %1142, %c10_i32_247 : i32
    %1174 = arith.index_cast %1173 : i32 to index
    %1175 = memref.load %arg1[%1174] : memref<384xf32, #tpu.memory_space<smem>>
    %c11_i32_248 = arith.constant 11 : i32
    %1176 = arith.addi %1142, %c11_i32_248 : i32
    %1177 = arith.index_cast %1176 : i32 to index
    %1178 = memref.load %arg1[%1177] : memref<384xf32, #tpu.memory_space<smem>>
    %1179 = vector.broadcast %1145 : f32 to vector<32x128xf32>
    %1180 = arith.mulf %1179, %31 : vector<32x128xf32>
    %1181 = vector.broadcast %1148 : f32 to vector<32x128xf32>
    %1182 = arith.mulf %1181, %21 : vector<32x128xf32>
    %1183 = arith.addf %1180, %1182 : vector<32x128xf32>
    %1184 = vector.broadcast %1151 : f32 to vector<32x128xf32>
    %1185 = arith.addf %1183, %1184 : vector<32x128xf32>
    %1186 = vector.broadcast %1154 : f32 to vector<32x128xf32>
    %1187 = arith.mulf %1186, %31 : vector<32x128xf32>
    %1188 = vector.broadcast %1157 : f32 to vector<32x128xf32>
    %1189 = arith.mulf %1188, %21 : vector<32x128xf32>
    %1190 = arith.addf %1187, %1189 : vector<32x128xf32>
    %1191 = vector.broadcast %1160 : f32 to vector<32x128xf32>
    %1192 = arith.addf %1190, %1191 : vector<32x128xf32>
    %1193 = vector.broadcast %1163 : f32 to vector<32x128xf32>
    %1194 = arith.mulf %1193, %31 : vector<32x128xf32>
    %1195 = vector.broadcast %1166 : f32 to vector<32x128xf32>
    %1196 = arith.mulf %1195, %21 : vector<32x128xf32>
    %1197 = arith.addf %1194, %1196 : vector<32x128xf32>
    %1198 = vector.broadcast %1169 : f32 to vector<32x128xf32>
    %1199 = arith.addf %1197, %1198 : vector<32x128xf32>
    %1200 = vector.broadcast %1172 : f32 to vector<32x128xf32>
    %1201 = arith.mulf %1200, %31 : vector<32x128xf32>
    %1202 = vector.broadcast %1175 : f32 to vector<32x128xf32>
    %1203 = arith.mulf %1202, %21 : vector<32x128xf32>
    %1204 = arith.addf %1201, %1203 : vector<32x128xf32>
    %1205 = vector.broadcast %1178 : f32 to vector<32x128xf32>
    %1206 = arith.addf %1204, %1205 : vector<32x128xf32>
    %1207 = arith.minimumf %1185, %1192 : vector<32x128xf32>
    %1208 = arith.minimumf %1207, %1199 : vector<32x128xf32>
    %cst_249 = arith.constant 0.000000e+00 : f32
    %1209 = vector.broadcast %cst_249 : f32 to vector<32x128xf32>
    %1210 = arith.cmpf ogt, %1208, %1209 : vector<32x128xf32>
    %cst_250 = arith.constant 0.000000e+00 : f32
    %1211 = vector.broadcast %cst_250 : f32 to vector<32x128xf32>
    %1212 = arith.cmpf oge, %1206, %1211 : vector<32x128xf32>
    %1213 = arith.andi %1210, %1212 : vector<32x128xi1>
    %1214 = arith.cmpf olt, %1206, %1137 : vector<32x128xf32>
    %1215 = arith.andi %1213, %1214 : vector<32x128xi1>
    %1216 = arith.select %1215, %1206, %1137 : vector<32x128xi1>, vector<32x128xf32>
    %1217 = vector.broadcast %1141 : i32 to vector<32x128xi32>
    %1218 = arith.select %1215, %1217, %1139 : vector<32x128xi1>, vector<32x128xi32>
    %c15_i32 = arith.constant 15 : i32
    %c16_i32_251 = arith.constant 16 : i32
    %1219 = arith.muli %arg0, %c16_i32_251 : i32
    %1220 = arith.addi %1219, %c15_i32 : i32
    %c12_i32_252 = arith.constant 12 : i32
    %1221 = arith.muli %1220, %c12_i32_252 : i32
    %c0_i32_253 = arith.constant 0 : i32
    %1222 = arith.addi %1221, %c0_i32_253 : i32
    %1223 = arith.index_cast %1222 : i32 to index
    %1224 = memref.load %arg1[%1223] : memref<384xf32, #tpu.memory_space<smem>>
    %c1_i32_254 = arith.constant 1 : i32
    %1225 = arith.addi %1221, %c1_i32_254 : i32
    %1226 = arith.index_cast %1225 : i32 to index
    %1227 = memref.load %arg1[%1226] : memref<384xf32, #tpu.memory_space<smem>>
    %c2_i32_255 = arith.constant 2 : i32
    %1228 = arith.addi %1221, %c2_i32_255 : i32
    %1229 = arith.index_cast %1228 : i32 to index
    %1230 = memref.load %arg1[%1229] : memref<384xf32, #tpu.memory_space<smem>>
    %c3_i32_256 = arith.constant 3 : i32
    %1231 = arith.addi %1221, %c3_i32_256 : i32
    %1232 = arith.index_cast %1231 : i32 to index
    %1233 = memref.load %arg1[%1232] : memref<384xf32, #tpu.memory_space<smem>>
    %c4_i32_257 = arith.constant 4 : i32
    %1234 = arith.addi %1221, %c4_i32_257 : i32
    %1235 = arith.index_cast %1234 : i32 to index
    %1236 = memref.load %arg1[%1235] : memref<384xf32, #tpu.memory_space<smem>>
    %c5_i32_258 = arith.constant 5 : i32
    %1237 = arith.addi %1221, %c5_i32_258 : i32
    %1238 = arith.index_cast %1237 : i32 to index
    %1239 = memref.load %arg1[%1238] : memref<384xf32, #tpu.memory_space<smem>>
    %c6_i32_259 = arith.constant 6 : i32
    %1240 = arith.addi %1221, %c6_i32_259 : i32
    %1241 = arith.index_cast %1240 : i32 to index
    %1242 = memref.load %arg1[%1241] : memref<384xf32, #tpu.memory_space<smem>>
    %c7_i32_260 = arith.constant 7 : i32
    %1243 = arith.addi %1221, %c7_i32_260 : i32
    %1244 = arith.index_cast %1243 : i32 to index
    %1245 = memref.load %arg1[%1244] : memref<384xf32, #tpu.memory_space<smem>>
    %c8_i32_261 = arith.constant 8 : i32
    %1246 = arith.addi %1221, %c8_i32_261 : i32
    %1247 = arith.index_cast %1246 : i32 to index
    %1248 = memref.load %arg1[%1247] : memref<384xf32, #tpu.memory_space<smem>>
    %c9_i32_262 = arith.constant 9 : i32
    %1249 = arith.addi %1221, %c9_i32_262 : i32
    %1250 = arith.index_cast %1249 : i32 to index
    %1251 = memref.load %arg1[%1250] : memref<384xf32, #tpu.memory_space<smem>>
    %c10_i32_263 = arith.constant 10 : i32
    %1252 = arith.addi %1221, %c10_i32_263 : i32
    %1253 = arith.index_cast %1252 : i32 to index
    %1254 = memref.load %arg1[%1253] : memref<384xf32, #tpu.memory_space<smem>>
    %c11_i32_264 = arith.constant 11 : i32
    %1255 = arith.addi %1221, %c11_i32_264 : i32
    %1256 = arith.index_cast %1255 : i32 to index
    %1257 = memref.load %arg1[%1256] : memref<384xf32, #tpu.memory_space<smem>>
    %1258 = vector.broadcast %1224 : f32 to vector<32x128xf32>
    %1259 = arith.mulf %1258, %31 : vector<32x128xf32>
    %1260 = vector.broadcast %1227 : f32 to vector<32x128xf32>
    %1261 = arith.mulf %1260, %21 : vector<32x128xf32>
    %1262 = arith.addf %1259, %1261 : vector<32x128xf32>
    %1263 = vector.broadcast %1230 : f32 to vector<32x128xf32>
    %1264 = arith.addf %1262, %1263 : vector<32x128xf32>
    %1265 = vector.broadcast %1233 : f32 to vector<32x128xf32>
    %1266 = arith.mulf %1265, %31 : vector<32x128xf32>
    %1267 = vector.broadcast %1236 : f32 to vector<32x128xf32>
    %1268 = arith.mulf %1267, %21 : vector<32x128xf32>
    %1269 = arith.addf %1266, %1268 : vector<32x128xf32>
    %1270 = vector.broadcast %1239 : f32 to vector<32x128xf32>
    %1271 = arith.addf %1269, %1270 : vector<32x128xf32>
    %1272 = vector.broadcast %1242 : f32 to vector<32x128xf32>
    %1273 = arith.mulf %1272, %31 : vector<32x128xf32>
    %1274 = vector.broadcast %1245 : f32 to vector<32x128xf32>
    %1275 = arith.mulf %1274, %21 : vector<32x128xf32>
    %1276 = arith.addf %1273, %1275 : vector<32x128xf32>
    %1277 = vector.broadcast %1248 : f32 to vector<32x128xf32>
    %1278 = arith.addf %1276, %1277 : vector<32x128xf32>
    %1279 = vector.broadcast %1251 : f32 to vector<32x128xf32>
    %1280 = arith.mulf %1279, %31 : vector<32x128xf32>
    %1281 = vector.broadcast %1254 : f32 to vector<32x128xf32>
    %1282 = arith.mulf %1281, %21 : vector<32x128xf32>
    %1283 = arith.addf %1280, %1282 : vector<32x128xf32>
    %1284 = vector.broadcast %1257 : f32 to vector<32x128xf32>
    %1285 = arith.addf %1283, %1284 : vector<32x128xf32>
    %1286 = arith.minimumf %1264, %1271 : vector<32x128xf32>
    %1287 = arith.minimumf %1286, %1278 : vector<32x128xf32>
    %cst_265 = arith.constant 0.000000e+00 : f32
    %1288 = vector.broadcast %cst_265 : f32 to vector<32x128xf32>
    %1289 = arith.cmpf ogt, %1287, %1288 : vector<32x128xf32>
    %cst_266 = arith.constant 0.000000e+00 : f32
    %1290 = vector.broadcast %cst_266 : f32 to vector<32x128xf32>
    %1291 = arith.cmpf oge, %1285, %1290 : vector<32x128xf32>
    %1292 = arith.andi %1289, %1291 : vector<32x128xi1>
    %1293 = arith.cmpf olt, %1285, %1216 : vector<32x128xf32>
    %1294 = arith.andi %1292, %1293 : vector<32x128xi1>
    %1295 = arith.select %1294, %1285, %1216 : vector<32x128xi1>, vector<32x128xf32>
    %1296 = vector.broadcast %1220 : i32 to vector<32x128xi32>
    %1297 = arith.select %1294, %1296, %1218 : vector<32x128xi1>, vector<32x128xi32>
    %c16_i32_267 = arith.constant 16 : i32
    %c0 = arith.constant 0 : index
    %c0_268 = arith.constant 0 : index
    %c0_269 = arith.constant 0 : index
    %1298 = vector.load %arg2[%c0, %c0_268, %c0_269] : memref<1x32x128xi32, #tpu.memory_space<vmem>>, vector<1x32x128xi32>
    %1299 = vector.shape_cast %1298 : vector<1x32x128xi32> to vector<32x128xi32>
    %1300 = vector.shape_cast %1297 : vector<32x128xi32> to vector<1x32x128xi32>
    tpu.vector_store %arg2[%c0, %c0_268, %c0_269], %1300 {strides = array<i32>} : memref<1x32x128xi32, #tpu.memory_space<vmem>>, vector<1x32x128xi32>,
    return
  }
  func.func @transform_0(%arg0: i32) -> i32 {
    %c0_i32 = arith.constant 0 : i32
    %c0_i32_0 = arith.constant 0 : i32
    return %c0_i32 : i32
  }
  func.func @transform_1(%arg0: i32) -> (i32, i32, i32) {
    %c0_i32 = arith.constant 0 : i32
    %c0_i32_0 = arith.constant 0 : i32
    %c0_i32_1 = arith.constant 0 : i32
    return %arg0, %c0_i32, %c0_i32_0 : i32, i32, i32
  }
}

</mosaic_0001>

<llo_original>
// kernel: tpu_custom_call.1
$region0: #{tpu_custom_call.1}
  #allocation0 [shape = 'u32[]', space=smem, size = 0x4, offset = 0x4, fixed_abs, tag = 'smem constant byte address 0x4 - core index']
  #allocation1 [shape = 'u32[72,128]{1,0:T(1,128)}', space=vmem, size = 0x9000, scoped, tag = 'internal scratch']
  %s0 = inlined_call_operand.hbm [shape: f32[384], index: 0, kind: input, shape index: {}]
  %s1 = inlined_call_operand.hbm [shape: s32[2,32,128], index: 1, kind: output, shape index: {}]
  %s2 = sld [smem:[#allocation0]]
  $region41: #{tpu_custom_call.1} parent=0
    _
  %s4 = ssub.s32 1, %s2
  %s5 = scalar_select 0, %s4, %s2
  $region1: #{tpu_custom_call.1} parent=0
    #allocation2 [shape = 'u8[1536]{0}', space=smem, size = 0x600, scoped, tag = 'input window, operand 0, single buffered']
    #allocation3 [shape = 's32[2]{0}', space=sflag, size = 0x8, scoped, tag = 'scoped memory for tpu_custom_call.1']
    #allocation4 [shape = 's32[2]{0}', space=sflag, size = 0x8, scoped, tag = 'scoped memory for tpu_custom_call.1']
    #allocation5 [shape = 'u8[32768]{0}', space=vmem, size = 0x8000, scoped, tag = 'output window, operand 0']
    %6 = vsyncpa [#allocation4], 0
    %7 = vsyncpa [#allocation3], 0
    %s8 = scalar_lea.sflag [#allocation3], 1
    %9 = vsyncpa %s8, 0
    loop: start=0, step=1, limit=4
    $region2: #{tpu_custom_call.1} parent=1 // loop_pre_header
      _
    $region3: #{tpu_custom_call.1} parent=1 // loop_header
      %s11 = sphi 0, %s15
      %p12 = scmp.ge.s32.totalorder %s11, 4
      %s19 = sphi 0, %s19
      %s21 = sphi 0, %s19
      %s22 = sphi 0, %s21
      %s36 = sphi 0, %s22
      %s42 = sphi 0, %s44
      %s45 = sphi 0, %s42
      %s46 = sphi 0, %s45
      %s62 = sphi 0, %s46
    $region4: #{tpu_custom_call.1} parent=1 // loop_header_branch
      %14 = sbr.rel (%p12) target = $region8
    $region5: #{tpu_custom_call.1} parent=1 // loop_body
      %s16 = ssub.s32 %s11, 1
      %s17 = ssub.s32 %s11, 2
      %s18 = sadd.s32 %s11, 1
      %s20 = sadd.s32 %s19, 1
      %p23 = scmp.eq.s32.totalorder %s11, 1
      %p24 = scmp.ne.s32.totalorder %s19, %s21
      %p25 = scmp.eq.s32.totalorder %s11, 0
      %p26 = por %p24, %p25
      %p27 = scmp.ne.s32.totalorder %s19, %s21
      %p28 = scmp.eq.s32.totalorder %s16, 1
      %p29 = por %p27, %p28
      %p30 = scmp.ne.s32.totalorder %s21, %s22
      %p31 = scmp.eq.s32.totalorder %s16, 0
      %p32 = por %p30, %p31
      %p33 = scmp.ne.s32.totalorder %s21, %s22
      %p34 = scmp.eq.s32.totalorder %s17, 1
      %p35 = por %p33, %p34
      %p37 = scmp.ne.s32.totalorder %s22, %s36
      %p38 = scmp.eq.s32.totalorder %s17, 0
      %p39 = por %p37, %p38
      %s40 = ssub.s32 %s11, %s18
      %p41 = scmp.eq.s32.totalorder %s40, 0
      %s43 = sadd.s32 %s42, 1
      %s44 = scalar_select %p41, %s42, %s43
      %p47 = pneg %p41
      %p48 = scmp.eq.s32.totalorder %s11, 1
      %p49 = por %p47, %p48
      %p50 = scmp.ne.s32.totalorder %s42, %s45
      %p51 = scmp.eq.s32.totalorder %s11, 0
      %p52 = por %p50, %p51
      %p53 = scmp.ne.s32.totalorder %s42, %s45
      %p54 = scmp.eq.s32.totalorder %s16, 1
      %p55 = por %p53, %p54
      %p56 = scmp.ne.s32.totalorder %s45, %s46
      %p57 = scmp.eq.s32.totalorder %s16, 0
      %p58 = por %p56, %p57
      %p59 = scmp.ne.s32.totalorder %s45, %s46
      %p60 = scmp.eq.s32.totalorder %s17, 1
      %p61 = por %p59, %p60
      %p63 = scmp.ne.s32.totalorder %s46, %s62
      %p64 = scmp.eq.s32.totalorder %s17, 0
      %p65 = por %p63, %p64
      %p66 = scmp.le.s32.totalorder 1, %s11
      %p67 = scmp.lt.s32.totalorder %s11, 3
      %p68 = pnand %p66, %p67
      %p69 = pneg %p68
      // Predicated region
      $region9: #{tpu_custom_call.1} parent=5 // pred_check
        _
      $region10: #{tpu_custom_call.1} parent=5 // pred_check_branch
        %71 = sbr.rel (%p68) target = $region12
      $region11: #{tpu_custom_call.1} parent=5 // pred_region
        %s72 = ssub.s32 %s11, 1
        // Predicated region
        $region13: #{tpu_custom_call.1} parent=11 // pred_check
          %p73 = pneg %p32
        $region14: #{tpu_custom_call.1} parent=11 // pred_check_branch
          %75 = sbr.rel (%p73) target = $region16
        $region15: #{tpu_custom_call.1} parent=11 // pred_region
          %77 = vsyncadd [#allocation4], 0
          %s79 = sshll.u32 %s0, 4
          %s80 = int_to_ptr.hbm [resolvable:$true] %s79
          %82 = dma.hbm_to_smem %s80, 48, [#allocation2], [#allocation4]
        $region16: #{tpu_custom_call.1} parent=11 // pred_fallthru
          _
      $region12: #{tpu_custom_call.1} parent=5 // pred_fallthru
        _
      %p83 = scmp.lt.s32.totalorder %s11, 2
      // Predicated region
      $region17: #{tpu_custom_call.1} parent=5 // pred_check
        %p84 = pneg %p83
      $region18: #{tpu_custom_call.1} parent=5 // pred_check_branch
        %86 = sbr.rel (%p84) target = $region20
      $region19: #{tpu_custom_call.1} parent=5 // pred_region
        _
      $region20: #{tpu_custom_call.1} parent=5 // pred_fallthru
        _
      %p87 = scmp.le.s32.totalorder 1, %s11
      %p88 = scmp.lt.s32.totalorder %s11, 3
      %p89 = pnand %p87, %p88
      %p90 = pneg %p89
      // Predicated region
      $region21: #{tpu_custom_call.1} parent=5 // pred_check
        _
      $region22: #{tpu_custom_call.1} parent=5 // pred_check_branch
        %92 = sbr.rel (%p89) target = $region24
      $region23: #{tpu_custom_call.1} parent=5 // pred_region
        %s93 = ssub.s32 %s11, 1
        // Predicated region
        $region25: #{tpu_custom_call.1} parent=23 // pred_check
          %p94 = pneg %p32
        $region26: #{tpu_custom_call.1} parent=23 // pred_check_branch
          %96 = sbr.rel (%p94) target = $region28
        $region27: #{tpu_custom_call.1} parent=23 // pred_region
          %98 = dma.done [#allocation4], 48
        $region28: #{tpu_custom_call.1} parent=23 // pred_fallthru
          _
        %99 = sfence
        %p100 = pneg %p32
        %p101 = pneg %p29
        %p102 = pneg %p58
        %p103 = pneg %p55
        %s104 = sand.u32 %s45, 1
        %s105 = scalar_lea.sflag [#allocation3], %s104
        %s106 = sand.u32 %s45, 1
        %s107 = smul.addr %s106, 32
        %s108 = scalar_lea.vmem [#allocation5], %s107
        %v109 = vlaneseq
        %v110 = vshrl.u32 %v109, 7
        %v111 = vadd.s32 %v110, 8
        %v112 = vadd.s32 %v110, 16
        %v113 = vadd.s32 %v110, 24
        %v114 = vlaneseq
        %v115 = vand.u32 %v114, 127
        %v116 = vmul.u32 %v110, 128
        %v117 = vmul.u32 %v111, 128
        %v118 = vmul.u32 %v112, 128
        %v119 = vmul.u32 %v113, 128
        %v120 = vadd.s32 %v116, %v115
        %v121 = vadd.s32 %v117, %v115
        %v122 = vadd.s32 %v118, %v115
        %v123 = vadd.s32 %v119, %v115
        %v124 = vcvt.s32.f32 %v120
        %v125 = vcvt.s32.f32 %v121
        %v126 = vcvt.s32.f32 %v122
        %v127 = vcvt.s32.f32 %v123
        %v128 = vmul.f32 %v124, 0.015625
        %v129 = vmul.f32 %v125, 0.015625
        %v130 = vmul.f32 %v126, 0.015625
        %v131 = vmul.f32 %v127, 0.015625
        %v132 = vfloor.f32 %v128
        %v133 = vfloor.f32 %v129
        %v134 = vfloor.f32 %v130
        %v135 = vfloor.f32 %v131
        %v136 = vmul.f32 %v132, 64.0
        %v137 = vmul.f32 %v133, 64.0
        %v138 = vmul.f32 %v134, 64.0
        %v139 = vmul.f32 %v135, 64.0
        %v140 = vsub.f32 %v124, %v136
        %v141 = vsub.f32 %v125, %v137
        %v142 = vsub.f32 %v126, %v138
        %v143 = vsub.f32 %v127, %v139
        %v144 = vsub.f32 63.0, %v132
        %v145 = vsub.f32 63.0, %v133
        %v146 = vsub.f32 63.0, %v134
        %v147 = vsub.f32 63.0, %v135
        %v148 = vmul.f32 %v144, 2.0
        %v149 = vmul.f32 %v145, 2.0
        %v150 = vmul.f32 %v146, 2.0
        %v151 = vmul.f32 %v147, 2.0
        %v152 = vadd.f32 %v148, 1.0
        %v153 = vadd.f32 %v149, 1.0
        %v154 = vadd.f32 %v150, 1.0
        %v155 = vadd.f32 %v151, 1.0
        %v156 = vrcp.pop 64.0
        %v157 = vmul.f32 64.0, %v156
        %v158 = vsub.f32 1.0, %v157
        %v159 = vmul.f32 %v156, %v158
        %v160 = vadd.f32 %v156, %v159
        %vm161 = vweird.f32 %v156
        %v162 = vsel %vm161, %v156, %v160
        %v163 = vmul.f32 %v152, %v162
        %v164 = vmul.f32 %v153, %v162
        %v165 = vmul.f32 %v154, %v162
        %v166 = vmul.f32 %v155, %v162
        %v167 = vsub.f32 %v163, 1.0
        %v168 = vsub.f32 %v164, 1.0
        %v169 = vsub.f32 %v165, 1.0
        %v170 = vsub.f32 %v166, 1.0
        %v171 = vsub.f32 63.0, %v140
        %v172 = vsub.f32 63.0, %v141
        %v173 = vsub.f32 63.0, %v142
        %v174 = vsub.f32 63.0, %v143
        %v175 = vmul.f32 %v171, 2.0
        %v176 = vmul.f32 %v172, 2.0
        %v177 = vmul.f32 %v173, 2.0
        %v178 = vmul.f32 %v174, 2.0
        %v179 = vadd.f32 %v175, 1.0
        %v180 = vadd.f32 %v176, 1.0
        %v181 = vadd.f32 %v177, 1.0
        %v182 = vadd.f32 %v178, 1.0
        %v183 = vmul.f32 %v179, %v162
        %v184 = vmul.f32 %v180, %v162
        %v185 = vmul.f32 %v181, %v162
        %v186 = vmul.f32 %v182, %v162
        %v187 = vsub.f32 %v183, 1.0
        %v188 = vsub.f32 %v184, 1.0
        %v189 = vsub.f32 %v185, 1.0
        %v190 = vsub.f32 %v186, 1.0
        %s191 = smul.u32 %s16, 16
        %s192 = smul.u32 %s16, 192
        %s193 = sld [smem:[#allocation2 + %s192]]
        %s194 = sadd.s32 %s192, 1
        %s195 = sld [smem:[#allocation2 + %s194]]
        %s196 = sadd.s32 %s192, 2
        %s197 = sld [smem:[#allocation2 + %s196]]
        %s198 = sadd.s32 %s192, 3
        %s199 = sld [smem:[#allocation2 + %s198]]
        %s200 = sadd.s32 %s192, 4
        %s201 = sld [smem:[#allocation2 + %s200]]
        %s202 = sadd.s32 %s192, 5
        %s203 = sld [smem:[#allocation2 + %s202]]
        %s204 = sadd.s32 %s192, 6
        %s205 = sld [smem:[#allocation2 + %s204]]
        %s206 = sadd.s32 %s192, 7
        %s207 = sld [smem:[#allocation2 + %s206]]
        %s208 = sadd.s32 %s192, 8
        %s209 = sld [smem:[#allocation2 + %s208]]
        %s210 = sadd.s32 %s192, 9
        %s211 = sld [smem:[#allocation2 + %s210]]
        %s212 = sadd.s32 %s192, 10
        %s213 = sld [smem:[#allocation2 + %s212]]
        %s214 = sadd.s32 %s192, 11
        %s215 = sld [smem:[#allocation2 + %s214]]
        %v216 = vstv %s193
        %v217 = vmul.f32 %v216, %v187
        %v218 = vmul.f32 %v216, %v188
        %v219 = vmul.f32 %v216, %v189
        %v220 = vmul.f32 %v216, %v190
        %v221 = vstv %s195
        %v222 = vmul.f32 %v221, %v167
        %v223 = vmul.f32 %v221, %v168
        %v224 = vmul.f32 %v221, %v169
        %v225 = vmul.f32 %v221, %v170
        %v226 = vadd.f32 %v217, %v222
        %v227 = vadd.f32 %v218, %v223
        %v228 = vadd.f32 %v219, %v224
        %v229 = vadd.f32 %v220, %v225
        %v230 = vstv %s197
        %v231 = vadd.f32 %v226, %v230
        %v232 = vadd.f32 %v227, %v230
        %v233 = vadd.f32 %v228, %v230
        %v234 = vadd.f32 %v229, %v230
        %v235 = vstv %s199
        %v236 = vmul.f32 %v235, %v187
        %v237 = vmul.f32 %v235, %v188
        %v238 = vmul.f32 %v235, %v189
        %v239 = vmul.f32 %v235, %v190
        %v240 = vstv %s201
        %v241 = vmul.f32 %v240, %v167
        %v242 = vmul.f32 %v240, %v168
        %v243 = vmul.f32 %v240, %v169
        %v244 = vmul.f32 %v240, %v170
        %v245 = vadd.f32 %v236, %v241
        %v246 = vadd.f32 %v237, %v242
        %v247 = vadd.f32 %v238, %v243
        %v248 = vadd.f32 %v239, %v244
        %v249 = vstv %s203
        %v250 = vadd.f32 %v245, %v249
        %v251 = vadd.f32 %v246, %v249
        %v252 = vadd.f32 %v247, %v249
        %v253 = vadd.f32 %v248, %v249
        %v254 = vstv %s205
        %v255 = vmul.f32 %v254, %v187
        %v256 = vmul.f32 %v254, %v188
        %v257 = vmul.f32 %v254, %v189
        %v258 = vmul.f32 %v254, %v190
        %v259 = vstv %s207
        %v260 = vmul.f32 %v259, %v167
        %v261 = vmul.f32 %v259, %v168
        %v262 = vmul.f32 %v259, %v169
        %v263 = vmul.f32 %v259, %v170
        %v264 = vadd.f32 %v255, %v260
        %v265 = vadd.f32 %v256, %v261
        %v266 = vadd.f32 %v257, %v262
        %v267 = vadd.f32 %v258, %v263
        %v268 = vstv %s209
        %v269 = vadd.f32 %v264, %v268
        %v270 = vadd.f32 %v265, %v268
        %v271 = vadd.f32 %v266, %v268
        %v272 = vadd.f32 %v267, %v268
        %v273 = vstv %s211
        %v274 = vmul.f32 %v273, %v187
        %v275 = vmul.f32 %v273, %v188
        %v276 = vmul.f32 %v273, %v189
        %v277 = vmul.f32 %v273, %v190
        %v278 = vstv %s213
        %v279 = vmul.f32 %v278, %v167
        %v280 = vmul.f32 %v278, %v168
        %v281 = vmul.f32 %v278, %v169
        %v282 = vmul.f32 %v278, %v170
        %v283 = vadd.f32 %v274, %v279
        %v284 = vadd.f32 %v275, %v280
        %v285 = vadd.f32 %v276, %v281
        %v286 = vadd.f32 %v277, %v282
        %v287 = vstv %s215
        %v288 = vadd.f32 %v283, %v287
        %v289 = vadd.f32 %v284, %v287
        %v290 = vadd.f32 %v285, %v287
        %v291 = vadd.f32 %v286, %v287
        %v292 = vmin.f32 %v231, %v250
        %v293 = vmin.f32 %v232, %v251
        %v294 = vmin.f32 %v233, %v252
        %v295 = vmin.f32 %v234, %v253
        %v296 = vmin.f32 %v292, %v269
        %v297 = vmin.f32 %v293, %v270
        %v298 = vmin.f32 %v294, %v271
        %v299 = vmin.f32 %v295, %v272
        %vm300 = vcmp.gt.f32.partialorder %v296, 0.0
        %vm301 = vcmp.gt.f32.partialorder %v297, 0.0
        %vm302 = vcmp.gt.f32.partialorder %v298, 0.0
        %vm303 = vcmp.gt.f32.partialorder %v299, 0.0
        %vm304 = vcmp.ge.f32.partialorder %v288, 0.0
        %vm305 = vcmp.ge.f32.partialorder %v289, 0.0
        %vm306 = vcmp.ge.f32.partialorder %v290, 0.0
        %vm307 = vcmp.ge.f32.partialorder %v291, 0.0
        %vm308 = vmand %vm300, %vm304
        %vm309 = vmand %vm301, %vm305
        %vm310 = vmand %vm302, %vm306
        %vm311 = vmand %vm303, %vm307
        %vm312 = vcmp.lt.f32.partialorder %v288, inf
        %vm313 = vcmp.lt.f32.partialorder %v289, inf
        %vm314 = vcmp.lt.f32.partialorder %v290, inf
        %vm315 = vcmp.lt.f32.partialorder %v291, inf
        %vm316 = vmand %vm308, %vm312
        %vm317 = vmand %vm309, %vm313
        %vm318 = vmand %vm310, %vm314
        %vm319 = vmand %vm311, %vm315
        %v320 = vsel %vm316, %v288, inf
        %v321 = vsel %vm317, %v289, inf
        %v322 = vsel %vm318, %v290, inf
        %v323 = vsel %vm319, %v291, inf
        %v324 = vstv %s191
        %v325 = vsel %vm316, %v324, 4294967295
        %v326 = vsel %vm317, %v324, 4294967295
        %v327 = vsel %vm318, %v324, 4294967295
        %v328 = vsel %vm319, %v324, 4294967295
        %s329 = sadd.s32 %s191, 1
        %s330 = smul.u32 %s329, 12
        %s331 = sld [smem:[#allocation2 + %s330]]
        %s332 = sadd.s32 %s330, 1
        %s333 = sld [smem:[#allocation2 + %s332]]
        %s334 = sadd.s32 %s330, 2
        %s335 = sld [smem:[#allocation2 + %s334]]
        %s336 = sadd.s32 %s330, 3
        %s337 = sld [smem:[#allocation2 + %s336]]
        %s338 = sadd.s32 %s330, 4
        %s339 = sld [smem:[#allocation2 + %s338]]
        %s340 = sadd.s32 %s330, 5
        %s341 = sld [smem:[#allocation2 + %s340]]
        %s342 = sadd.s32 %s330, 6
        %s343 = sld [smem:[#allocation2 + %s342]]
        %s344 = sadd.s32 %s330, 7
        %s345 = sld [smem:[#allocation2 + %s344]]
        %s346 = sadd.s32 %s330, 8
        %s347 = sld [smem:[#allocation2 + %s346]]
        %s348 = sadd.s32 %s330, 9
        %s349 = sld [smem:[#allocation2 + %s348]]
        %s350 = sadd.s32 %s330, 10
        %s351 = sld [smem:[#allocation2 + %s350]]
        %s352 = sadd.s32 %s330, 11
        %s353 = sld [smem:[#allocation2 + %s352]]
        %v354 = vstv %s331
        %v355 = vmul.f32 %v354, %v187
        %v356 = vmul.f32 %v354, %v188
        %v357 = vmul.f32 %v354, %v189
        %v358 = vmul.f32 %v354, %v190
        %v359 = vstv %s333
        %v360 = vmul.f32 %v359, %v167
        %v361 = vmul.f32 %v359, %v168
        %v362 = vmul.f32 %v359, %v169
        %v363 = vmul.f32 %v359, %v170
        %v364 = vadd.f32 %v355, %v360
        %v365 = vadd.f32 %v356, %v361
        %v366 = vadd.f32 %v357, %v362
        %v367 = vadd.f32 %v358, %v363
        %v368 = vstv %s335
        %v369 = vadd.f32 %v364, %v368
        %v370 = vadd.f32 %v365, %v368
        %v371 = vadd.f32 %v366, %v368
        %v372 = vadd.f32 %v367, %v368
        %v373 = vstv %s337
        %v374 = vmul.f32 %v373, %v187
        %v375 = vmul.f32 %v373, %v188
        %v376 = vmul.f32 %v373, %v189
        %v377 = vmul.f32 %v373, %v190
        %v378 = vstv %s339
        %v379 = vmul.f32 %v378, %v167
        %v380 = vmul.f32 %v378, %v168
        %v381 = vmul.f32 %v378, %v169
        %v382 = vmul.f32 %v378, %v170
        %v383 = vadd.f32 %v374, %v379
        %v384 = vadd.f32 %v375, %v380
        %v385 = vadd.f32 %v376, %v381
        %v386 = vadd.f32 %v377, %v382
        %v387 = vstv %s341
        %v388 = vadd.f32 %v383, %v387
        %v389 = vadd.f32 %v384, %v387
        %v390 = vadd.f32 %v385, %v387
        %v391 = vadd.f32 %v386, %v387
        %v392 = vstv %s343
        %v393 = vmul.f32 %v392, %v187
        %v394 = vmul.f32 %v392, %v188
        %v395 = vmul.f32 %v392, %v189
        %v396 = vmul.f32 %v392, %v190
        %v397 = vstv %s345
        %v398 = vmul.f32 %v397, %v167
        %v399 = vmul.f32 %v397, %v168
        %v400 = vmul.f32 %v397, %v169
        %v401 = vmul.f32 %v397, %v170
        %v402 = vadd.f32 %v393, %v398
        %v403 = vadd.f32 %v394, %v399
        %v404 = vadd.f32 %v395, %v400
        %v405 = vadd.f32 %v396, %v401
        %v406 = vstv %s347
        %v407 = vadd.f32 %v402, %v406
        %v408 = vadd.f32 %v403, %v406
        %v409 = vadd.f32 %v404, %v406
        %v410 = vadd.f32 %v405, %v406
        %v411 = vstv %s349
        %v412 = vmul.f32 %v411, %v187
        %v413 = vmul.f32 %v411, %v188
        %v414 = vmul.f32 %v411, %v189
        %v415 = vmul.f32 %v411, %v190
        %v416 = vstv %s351
        %v417 = vmul.f32 %v416, %v167
        %v418 = vmul.f32 %v416, %v168
        %v419 = vmul.f32 %v416, %v169
        %v420 = vmul.f32 %v416, %v170
        %v421 = vadd.f32 %v412, %v417
        %v422 = vadd.f32 %v413, %v418
        %v423 = vadd.f32 %v414, %v419
        %v424 = vadd.f32 %v415, %v420
        %v425 = vstv %s353
        %v426 = vadd.f32 %v421, %v425
        %v427 = vadd.f32 %v422, %v425
        %v428 = vadd.f32 %v423, %v425
        %v429 = vadd.f32 %v424, %v425
        %v430 = vmin.f32 %v369, %v388
        %v431 = vmin.f32 %v370, %v389
        %v432 = vmin.f32 %v371, %v390
        %v433 = vmin.f32 %v372, %v391
        %v434 = vmin.f32 %v430, %v407
        %v435 = vmin.f32 %v431, %v408
        %v436 = vmin.f32 %v432, %v409
        %v437 = vmin.f32 %v433, %v410
        %vm438 = vcmp.gt.f32.partialorder %v434, 0.0
        %vm439 = vcmp.gt.f32.partialorder %v435, 0.0
        %vm440 = vcmp.gt.f32.partialorder %v436, 0.0
        %vm441 = vcmp.gt.f32.partialorder %v437, 0.0
        %vm442 = vcmp.ge.f32.partialorder %v426, 0.0
        %vm443 = vcmp.ge.f32.partialorder %v427, 0.0
        %vm444 = vcmp.ge.f32.partialorder %v428, 0.0
        %vm445 = vcmp.ge.f32.partialorder %v429, 0.0
        %vm446 = vmand %vm438, %vm442
        %vm447 = vmand %vm439, %vm443
        %vm448 = vmand %vm440, %vm444
        %vm449 = vmand %vm441, %vm445
        %vm450 = vcmp.lt.f32.partialorder %v426, %v320
        %vm451 = vcmp.lt.f32.partialorder %v427, %v321
        %vm452 = vcmp.lt.f32.partialorder %v428, %v322
        %vm453 = vcmp.lt.f32.partialorder %v429, %v323
        %vm454 = vmand %vm446, %vm450
        %vm455 = vmand %vm447, %vm451
        %vm456 = vmand %vm448, %vm452
        %vm457 = vmand %vm449, %vm453
        %v458 = vsel %vm454, %v426, %v320
        %v459 = vsel %vm455, %v427, %v321
        %v460 = vsel %vm456, %v428, %v322
        %v461 = vsel %vm457, %v429, %v323
        %v462 = vstv %s329
        %v463 = vsel %vm454, %v462, %v325
        %v464 = vsel %vm455, %v462, %v326
        %v465 = vsel %vm456, %v462, %v327
        %v466 = vsel %vm457, %v462, %v328
        %s467 = sadd.s32 %s191, 2
        %s468 = smul.u32 %s467, 12
        %s469 = sld [smem:[#allocation2 + %s468]]
        %s470 = sadd.s32 %s468, 1
        %s471 = sld [smem:[#allocation2 + %s470]]
        %s472 = sadd.s32 %s468, 2
        %s473 = sld [smem:[#allocation2 + %s472]]
        %s474 = sadd.s32 %s468, 3
        %s475 = sld [smem:[#allocation2 + %s474]]
        %s476 = sadd.s32 %s468, 4
        %s477 = sld [smem:[#allocation2 + %s476]]
        %s478 = sadd.s32 %s468, 5
        %s479 = sld [smem:[#allocation2 + %s478]]
        %s480 = sadd.s32 %s468, 6
        %s481 = sld [smem:[#allocation2 + %s480]]
        %s482 = sadd.s32 %s468, 7
        %s483 = sld [smem:[#allocation2 + %s482]]
        %s484 = sadd.s32 %s468, 8
        %s485 = sld [smem:[#allocation2 + %s484]]
        %s486 = sadd.s32 %s468, 9
        %s487 = sld [smem:[#allocation2 + %s486]]
        %s488 = sadd.s32 %s468, 10
        %s489 = sld [smem:[#allocation2 + %s488]]
        %s490 = sadd.s32 %s468, 11
        %s491 = sld [smem:[#allocation2 + %s490]]
        %v492 = vstv %s469
        %v493 = vmul.f32 %v492, %v187
        %v494 = vmul.f32 %v492, %v188
        %v495 = vmul.f32 %v492, %v189
        %v496 = vmul.f32 %v492, %v190
        %v497 = vstv %s471
        %v498 = vmul.f32 %v497, %v167
        %v499 = vmul.f32 %v497, %v168
        %v500 = vmul.f32 %v497, %v169
        %v501 = vmul.f32 %v497, %v170
        %v502 = vadd.f32 %v493, %v498
        %v503 = vadd.f32 %v494, %v499
        %v504 = vadd.f32 %v495, %v500
        %v505 = vadd.f32 %v496, %v501
        %v506 = vstv %s473
        %v507 = vadd.f32 %v502, %v506
        %v508 = vadd.f32 %v503, %v506
        %v509 = vadd.f32 %v504, %v506
        %v510 = vadd.f32 %v505, %v506
        %v511 = vstv %s475
        %v512 = vmul.f32 %v511, %v187
        %v513 = vmul.f32 %v511, %v188
        %v514 = vmul.f32 %v511, %v189
        %v515 = vmul.f32 %v511, %v190
        %v516 = vstv %s477
        %v517 = vmul.f32 %v516, %v167
        %v518 = vmul.f32 %v516, %v168
        %v519 = vmul.f32 %v516, %v169
        %v520 = vmul.f32 %v516, %v170
        %v521 = vadd.f32 %v512, %v517
        %v522 = vadd.f32 %v513, %v518
        %v523 = vadd.f32 %v514, %v519
        %v524 = vadd.f32 %v515, %v520
        %v525 = vstv %s479
        %v526 = vadd.f32 %v521, %v525
        %v527 = vadd.f32 %v522, %v525
        %v528 = vadd.f32 %v523, %v525
        %v529 = vadd.f32 %v524, %v525
        %v530 = vstv %s481
        %v531 = vmul.f32 %v530, %v187
        %v532 = vmul.f32 %v530, %v188
        %v533 = vmul.f32 %v530, %v189
        %v534 = vmul.f32 %v530, %v190
        %v535 = vstv %s483
        %v536 = vmul.f32 %v535, %v167
        %v537 = vmul.f32 %v535, %v168
        %v538 = vmul.f32 %v535, %v169
        %v539 = vmul.f32 %v535, %v170
        %v540 = vadd.f32 %v531, %v536
        %v541 = vadd.f32 %v532, %v537
        %v542 = vadd.f32 %v533, %v538
        %v543 = vadd.f32 %v534, %v539
        %v544 = vstv %s485
        %v545 = vadd.f32 %v540, %v544
        %v546 = vadd.f32 %v541, %v544
        %v547 = vadd.f32 %v542, %v544
        %v548 = vadd.f32 %v543, %v544
        %v549 = vstv %s487
        %v550 = vmul.f32 %v549, %v187
        %v551 = vmul.f32 %v549, %v188
        %v552 = vmul.f32 %v549, %v189
        %v553 = vmul.f32 %v549, %v190
        %v554 = vstv %s489
        %v555 = vmul.f32 %v554, %v167
        %v556 = vmul.f32 %v554, %v168
        %v557 = vmul.f32 %v554, %v169
        %v558 = vmul.f32 %v554, %v170
        %v559 = vadd.f32 %v550, %v555
        %v560 = vadd.f32 %v551, %v556
        %v561 = vadd.f32 %v552, %v557
        %v562 = vadd.f32 %v553, %v558
        %v563 = vstv %s491
        %v564 = vadd.f32 %v559, %v563
        %v565 = vadd.f32 %v560, %v563
        %v566 = vadd.f32 %v561, %v563
        %v567 = vadd.f32 %v562, %v563
        %v568 = vmin.f32 %v507, %v526
        %v569 = vmin.f32 %v508, %v527
        %v570 = vmin.f32 %v509, %v528
        %v571 = vmin.f32 %v510, %v529
        %v572 = vmin.f32 %v568, %v545
        %v573 = vmin.f32 %v569, %v546
        %v574 = vmin.f32 %v570, %v547
        %v575 = vmin.f32 %v571, %v548
        %vm576 = vcmp.gt.f32.partialorder %v572, 0.0
        %vm577 = vcmp.gt.f32.partialorder %v573, 0.0
        %vm578 = vcmp.gt.f32.partialorder %v574, 0.0
        %vm579 = vcmp.gt.f32.partialorder %v575, 0.0
        %vm580 = vcmp.ge.f32.partialorder %v564, 0.0
        %vm581 = vcmp.ge.f32.partialorder %v565, 0.0
        %vm582 = vcmp.ge.f32.partialorder %v566, 0.0
        %vm583 = vcmp.ge.f32.partialorder %v567, 0.0
        %vm584 = vmand %vm576, %vm580
        %vm585 = vmand %vm577, %vm581
        %vm586 = vmand %vm578, %vm582
        %vm587 = vmand %vm579, %vm583
        %vm588 = vcmp.lt.f32.partialorder %v564, %v458
        %vm589 = vcmp.lt.f32.partialorder %v565, %v459
        %vm590 = vcmp.lt.f32.partialorder %v566, %v460
        %vm591 = vcmp.lt.f32.partialorder %v567, %v461
        %vm592 = vmand %vm584, %vm588
        %vm593 = vmand %vm585, %vm589
        %vm594 = vmand %vm586, %vm590
        %vm595 = vmand %vm587, %vm591
        %v596 = vsel %vm592, %v564, %v458
        %v597 = vsel %vm593, %v565, %v459
        %v598 = vsel %vm594, %v566, %v460
        %v599 = vsel %vm595, %v567, %v461
        %v600 = vstv %s467
        %v601 = vsel %vm592, %v600, %v463
        %v602 = vsel %vm593, %v600, %v464
        %v603 = vsel %vm594, %v600, %v465
        %v604 = vsel %vm595, %v600, %v466
        %s605 = sadd.s32 %s191, 3
        %s606 = smul.u32 %s605, 12
        %s607 = sld [smem:[#allocation2 + %s606]]
        %s608 = sadd.s32 %s606, 1
        %s609 = sld [smem:[#allocation2 + %s608]]
        %s610 = sadd.s32 %s606, 2
        %s611 = sld [smem:[#allocation2 + %s610]]
        %s612 = sadd.s32 %s606, 3
        %s613 = sld [smem:[#allocation2 + %s612]]
        %s614 = sadd.s32 %s606, 4
        %s615 = sld [smem:[#allocation2 + %s614]]
        %s616 = sadd.s32 %s606, 5
        %s617 = sld [smem:[#allocation2 + %s616]]
        %s618 = sadd.s32 %s606, 6
        %s619 = sld [smem:[#allocation2 + %s618]]
        %s620 = sadd.s32 %s606, 7
        %s621 = sld [smem:[#allocation2 + %s620]]
        %s622 = sadd.s32 %s606, 8
        %s623 = sld [smem:[#allocation2 + %s622]]
        %s624 = sadd.s32 %s606, 9
        %s625 = sld [smem:[#allocation2 + %s624]]
        %s626 = sadd.s32 %s606, 10
        %s627 = sld [smem:[#allocation2 + %s626]]
        %s628 = sadd.s32 %s606, 11
        %s629 = sld [smem:[#allocation2 + %s628]]
        %v630 = vstv %s607
        %v631 = vmul.f32 %v630, %v187
        %v632 = vmul.f32 %v630, %v188
        %v633 = vmul.f32 %v630, %v189
        %v634 = vmul.f32 %v630, %v190
        %v635 = vstv %s609
        %v636 = vmul.f32 %v635, %v167
        %v637 = vmul.f32 %v635, %v168
        %v638 = vmul.f32 %v635, %v169
        %v639 = vmul.f32 %v635, %v170
        %v640 = vadd.f32 %v631, %v636
        %v641 = vadd.f32 %v632, %v637
        %v642 = vadd.f32 %v633, %v638
        %v643 = vadd.f32 %v634, %v639
        %v644 = vstv %s611
        %v645 = vadd.f32 %v640, %v644
        %v646 = vadd.f32 %v641, %v644
        %v647 = vadd.f32 %v642, %v644
        %v648 = vadd.f32 %v643, %v644
        %v649 = vstv %s613
        %v650 = vmul.f32 %v649, %v187
        %v651 = vmul.f32 %v649, %v188
        %v652 = vmul.f32 %v649, %v189
        %v653 = vmul.f32 %v649, %v190
        %v654 = vstv %s615
        %v655 = vmul.f32 %v654, %v167
        %v656 = vmul.f32 %v654, %v168
        %v657 = vmul.f32 %v654, %v169
        %v658 = vmul.f32 %v654, %v170
        %v659 = vadd.f32 %v650, %v655
        %v660 = vadd.f32 %v651, %v656
        %v661 = vadd.f32 %v652, %v657
        %v662 = vadd.f32 %v653, %v658
        %v663 = vstv %s617
        %v664 = vadd.f32 %v659, %v663
        %v665 = vadd.f32 %v660, %v663
        %v666 = vadd.f32 %v661, %v663
        %v667 = vadd.f32 %v662, %v663
        %v668 = vstv %s619
        %v669 = vmul.f32 %v668, %v187
        %v670 = vmul.f32 %v668, %v188
        %v671 = vmul.f32 %v668, %v189
        %v672 = vmul.f32 %v668, %v190
        %v673 = vstv %s621
        %v674 = vmul.f32 %v673, %v167
        %v675 = vmul.f32 %v673, %v168
        %v676 = vmul.f32 %v673, %v169
        %v677 = vmul.f32 %v673, %v170
        %v678 = vadd.f32 %v669, %v674
        %v679 = vadd.f32 %v670, %v675
        %v680 = vadd.f32 %v671, %v676
        %v681 = vadd.f32 %v672, %v677
        %v682 = vstv %s623
        %v683 = vadd.f32 %v678, %v682
        %v684 = vadd.f32 %v679, %v682
        %v685 = vadd.f32 %v680, %v682
        %v686 = vadd.f32 %v681, %v682
        %v687 = vstv %s625
        %v688 = vmul.f32 %v687, %v187
        %v689 = vmul.f32 %v687, %v188
        %v690 = vmul.f32 %v687, %v189
        %v691 = vmul.f32 %v687, %v190
        %v692 = vstv %s627
        %v693 = vmul.f32 %v692, %v167
        %v694 = vmul.f32 %v692, %v168
        %v695 = vmul.f32 %v692, %v169
        %v696 = vmul.f32 %v692, %v170
        %v697 = vadd.f32 %v688, %v693
        %v698 = vadd.f32 %v689, %v694
        %v699 = vadd.f32 %v690, %v695
        %v700 = vadd.f32 %v691, %v696
        %v701 = vstv %s629
        %v702 = vadd.f32 %v697, %v701
        %v703 = vadd.f32 %v698, %v701
        %v704 = vadd.f32 %v699, %v701
        %v705 = vadd.f32 %v700, %v701
        %v706 = vmin.f32 %v645, %v664
        %v707 = vmin.f32 %v646, %v665
        %v708 = vmin.f32 %v647, %v666
        %v709 = vmin.f32 %v648, %v667
        %v710 = vmin.f32 %v706, %v683
        %v711 = vmin.f32 %v707, %v684
        %v712 = vmin.f32 %v708, %v685
        %v713 = vmin.f32 %v709, %v686
        %vm714 = vcmp.gt.f32.partialorder %v710, 0.0
        %vm715 = vcmp.gt.f32.partialorder %v711, 0.0
        %vm716 = vcmp.gt.f32.partialorder %v712, 0.0
        %vm717 = vcmp.gt.f32.partialorder %v713, 0.0
        %vm718 = vcmp.ge.f32.partialorder %v702, 0.0
        %vm719 = vcmp.ge.f32.partialorder %v703, 0.0
        %vm720 = vcmp.ge.f32.partialorder %v704, 0.0
        %vm721 = vcmp.ge.f32.partialorder %v705, 0.0
        %vm722 = vmand %vm714, %vm718
        %vm723 = vmand %vm715, %vm719
        %vm724 = vmand %vm716, %vm720
        %vm725 = vmand %vm717, %vm721
        %vm726 = vcmp.lt.f32.partialorder %v702, %v596
        %vm727 = vcmp.lt.f32.partialorder %v703, %v597
        %vm728 = vcmp.lt.f32.partialorder %v704, %v598
        %vm729 = vcmp.lt.f32.partialorder %v705, %v599
        %vm730 = vmand %vm722, %vm726
        %vm731 = vmand %vm723, %vm727
        %vm732 = vmand %vm724, %vm728
        %vm733 = vmand %vm725, %vm729
        %v734 = vsel %vm730, %v702, %v596
        %v735 = vsel %vm731, %v703, %v597
        %v736 = vsel %vm732, %v704, %v598
        %v737 = vsel %vm733, %v705, %v599
        %v738 = vstv %s605
        %v739 = vsel %vm730, %v738, %v601
        %v740 = vsel %vm731, %v738, %v602
        %v741 = vsel %vm732, %v738, %v603
        %v742 = vsel %vm733, %v738, %v604
        %s743 = sadd.s32 %s191, 4
        %s744 = smul.u32 %s743, 12
        %s745 = sld [smem:[#allocation2 + %s744]]
        %s746 = sadd.s32 %s744, 1
        %s747 = sld [smem:[#allocation2 + %s746]]
        %s748 = sadd.s32 %s744, 2
        %s749 = sld [smem:[#allocation2 + %s748]]
        %s750 = sadd.s32 %s744, 3
        %s751 = sld [smem:[#allocation2 + %s750]]
        %s752 = sadd.s32 %s744, 4
        %s753 = sld [smem:[#allocation2 + %s752]]
        %s754 = sadd.s32 %s744, 5
        %s755 = sld [smem:[#allocation2 + %s754]]
        %s756 = sadd.s32 %s744, 6
        %s757 = sld [smem:[#allocation2 + %s756]]
        %s758 = sadd.s32 %s744, 7
        %s759 = sld [smem:[#allocation2 + %s758]]
        %s760 = sadd.s32 %s744, 8
        %s761 = sld [smem:[#allocation2 + %s760]]
        %s762 = sadd.s32 %s744, 9
        %s763 = sld [smem:[#allocation2 + %s762]]
        %s764 = sadd.s32 %s744, 10
        %s765 = sld [smem:[#allocation2 + %s764]]
        %s766 = sadd.s32 %s744, 11
        %s767 = sld [smem:[#allocation2 + %s766]]
        %v768 = vstv %s745
        %v769 = vmul.f32 %v768, %v187
        %v770 = vmul.f32 %v768, %v188
        %v771 = vmul.f32 %v768, %v189
        %v772 = vmul.f32 %v768, %v190
        %v773 = vstv %s747
        %v774 = vmul.f32 %v773, %v167
        %v775 = vmul.f32 %v773, %v168
        %v776 = vmul.f32 %v773, %v169
        %v777 = vmul.f32 %v773, %v170
        %v778 = vadd.f32 %v769, %v774
        %v779 = vadd.f32 %v770, %v775
        %v780 = vadd.f32 %v771, %v776
        %v781 = vadd.f32 %v772, %v777
        %v782 = vstv %s749
        %v783 = vadd.f32 %v778, %v782
        %v784 = vadd.f32 %v779, %v782
        %v785 = vadd.f32 %v780, %v782
        %v786 = vadd.f32 %v781, %v782
        %v787 = vstv %s751
        %v788 = vmul.f32 %v787, %v187
        %v789 = vmul.f32 %v787, %v188
        %v790 = vmul.f32 %v787, %v189
        %v791 = vmul.f32 %v787, %v190
        %v792 = vstv %s753
        %v793 = vmul.f32 %v792, %v167
        %v794 = vmul.f32 %v792, %v168
        %v795 = vmul.f32 %v792, %v169
        %v796 = vmul.f32 %v792, %v170
        %v797 = vadd.f32 %v788, %v793
        %v798 = vadd.f32 %v789, %v794
        %v799 = vadd.f32 %v790, %v795
        %v800 = vadd.f32 %v791, %v796
        %v801 = vstv %s755
        %v802 = vadd.f32 %v797, %v801
        %v803 = vadd.f32 %v798, %v801
        %v804 = vadd.f32 %v799, %v801
        %v805 = vadd.f32 %v800, %v801
        %v806 = vstv %s757
        %v807 = vmul.f32 %v806, %v187
        %v808 = vmul.f32 %v806, %v188
        %v809 = vmul.f32 %v806, %v189
        %v810 = vmul.f32 %v806, %v190
        %v811 = vstv %s759
        %v812 = vmul.f32 %v811, %v167
        %v813 = vmul.f32 %v811, %v168
        %v814 = vmul.f32 %v811, %v169
        %v815 = vmul.f32 %v811, %v170
        %v816 = vadd.f32 %v807, %v812
        %v817 = vadd.f32 %v808, %v813
        %v818 = vadd.f32 %v809, %v814
        %v819 = vadd.f32 %v810, %v815
        %v820 = vstv %s761
        %v821 = vadd.f32 %v816, %v820
        %v822 = vadd.f32 %v817, %v820
        %v823 = vadd.f32 %v818, %v820
        %v824 = vadd.f32 %v819, %v820
        %v825 = vstv %s763
        %v826 = vmul.f32 %v825, %v187
        %v827 = vmul.f32 %v825, %v188
        %v828 = vmul.f32 %v825, %v189
        %v829 = vmul.f32 %v825, %v190
        %v830 = vstv %s765
        %v831 = vmul.f32 %v830, %v167
        %v832 = vmul.f32 %v830, %v168
        %v833 = vmul.f32 %v830, %v169
        %v834 = vmul.f32 %v830, %v170
        %v835 = vadd.f32 %v826, %v831
        %v836 = vadd.f32 %v827, %v832
        %v837 = vadd.f32 %v828, %v833
        %v838 = vadd.f32 %v829, %v834
        %v839 = vstv %s767
        %v840 = vadd.f32 %v835, %v839
        %v841 = vadd.f32 %v836, %v839
        %v842 = vadd.f32 %v837, %v839
        %v843 = vadd.f32 %v838, %v839
        %v844 = vmin.f32 %v783, %v802
        %v845 = vmin.f32 %v784, %v803
        %v846 = vmin.f32 %v785, %v804
        %v847 = vmin.f32 %v786, %v805
        %v848 = vmin.f32 %v844, %v821
        %v849 = vmin.f32 %v845, %v822
        %v850 = vmin.f32 %v846, %v823
        %v851 = vmin.f32 %v847, %v824
        %vm852 = vcmp.gt.f32.partialorder %v848, 0.0
        %vm853 = vcmp.gt.f32.partialorder %v849, 0.0
        %vm854 = vcmp.gt.f32.partialorder %v850, 0.0
        %vm855 = vcmp.gt.f32.partialorder %v851, 0.0
        %vm856 = vcmp.ge.f32.partialorder %v840, 0.0
        %vm857 = vcmp.ge.f32.partialorder %v841, 0.0
        %vm858 = vcmp.ge.f32.partialorder %v842, 0.0
        %vm859 = vcmp.ge.f32.partialorder %v843, 0.0
        %vm860 = vmand %vm852, %vm856
        %vm861 = vmand %vm853, %vm857
        %vm862 = vmand %vm854, %vm858
        %vm863 = vmand %vm855, %vm859
        %vm864 = vcmp.lt.f32.partialorder %v840, %v734
        %vm865 = vcmp.lt.f32.partialorder %v841, %v735
        %vm866 = vcmp.lt.f32.partialorder %v842, %v736
        %vm867 = vcmp.lt.f32.partialorder %v843, %v737
        %vm868 = vmand %vm860, %vm864
        %vm869 = vmand %vm861, %vm865
        %vm870 = vmand %vm862, %vm866
        %vm871 = vmand %vm863, %vm867
        %v872 = vsel %vm868, %v840, %v734
        %v873 = vsel %vm869, %v841, %v735
        %v874 = vsel %vm870, %v842, %v736
        %v875 = vsel %vm871, %v843, %v737
        %v876 = vstv %s743
        %v877 = vsel %vm868, %v876, %v739
        %v878 = vsel %vm869, %v876, %v740
        %v879 = vsel %vm870, %v876, %v741
        %v880 = vsel %vm871, %v876, %v742
        %s881 = sadd.s32 %s191, 5
        %s882 = smul.u32 %s881, 12
        %s883 = sld [smem:[#allocation2 + %s882]]
        %s884 = sadd.s32 %s882, 1
        %s885 = sld [smem:[#allocation2 + %s884]]
        %s886 = sadd.s32 %s882, 2
        %s887 = sld [smem:[#allocation2 + %s886]]
        %s888 = sadd.s32 %s882, 3
        %s889 = sld [smem:[#allocation2 + %s888]]
        %s890 = sadd.s32 %s882, 4
        %s891 = sld [smem:[#allocation2 + %s890]]
        %s892 = sadd.s32 %s882, 5
        %s893 = sld [smem:[#allocation2 + %s892]]
        %s894 = sadd.s32 %s882, 6
        %s895 = sld [smem:[#allocation2 + %s894]]
        %s896 = sadd.s32 %s882, 7
        %s897 = sld [smem:[#allocation2 + %s896]]
        %s898 = sadd.s32 %s882, 8
        %s899 = sld [smem:[#allocation2 + %s898]]
        %s900 = sadd.s32 %s882, 9
        %s901 = sld [smem:[#allocation2 + %s900]]
        %s902 = sadd.s32 %s882, 10
        %s903 = sld [smem:[#allocation2 + %s902]]
        %s904 = sadd.s32 %s882, 11
        %s905 = sld [smem:[#allocation2 + %s904]]
        %v906 = vstv %s883
        %v907 = vmul.f32 %v906, %v187
        %v908 = vmul.f32 %v906, %v188
        %v909 = vmul.f32 %v906, %v189
        %v910 = vmul.f32 %v906, %v190
        %v911 = vstv %s885
        %v912 = vmul.f32 %v911, %v167
        %v913 = vmul.f32 %v911, %v168
        %v914 = vmul.f32 %v911, %v169
        %v915 = vmul.f32 %v911, %v170
        %v916 = vadd.f32 %v907, %v912
        %v917 = vadd.f32 %v908, %v913
        %v918 = vadd.f32 %v909, %v914
        %v919 = vadd.f32 %v910, %v915
        %v920 = vstv %s887
        %v921 = vadd.f32 %v916, %v920
        %v922 = vadd.f32 %v917, %v920
        %v923 = vadd.f32 %v918, %v920
        %v924 = vadd.f32 %v919, %v920
        %v925 = vstv %s889
        %v926 = vmul.f32 %v925, %v187
        %v927 = vmul.f32 %v925, %v188
        %v928 = vmul.f32 %v925, %v189
        %v929 = vmul.f32 %v925, %v190
        %v930 = vstv %s891
        %v931 = vmul.f32 %v930, %v167
        %v932 = vmul.f32 %v930, %v168
        %v933 = vmul.f32 %v930, %v169
        %v934 = vmul.f32 %v930, %v170
        %v935 = vadd.f32 %v926, %v931
        %v936 = vadd.f32 %v927, %v932
        %v937 = vadd.f32 %v928, %v933
        %v938 = vadd.f32 %v929, %v934
        %v939 = vstv %s893
        %v940 = vadd.f32 %v935, %v939
        %v941 = vadd.f32 %v936, %v939
        %v942 = vadd.f32 %v937, %v939
        %v943 = vadd.f32 %v938, %v939
        %v944 = vstv %s895
        %v945 = vmul.f32 %v944, %v187
        %v946 = vmul.f32 %v944, %v188
        %v947 = vmul.f32 %v944, %v189
        %v948 = vmul.f32 %v944, %v190
        %v949 = vstv %s897
        %v950 = vmul.f32 %v949, %v167
        %v951 = vmul.f32 %v949, %v168
        %v952 = vmul.f32 %v949, %v169
        %v953 = vmul.f32 %v949, %v170
        %v954 = vadd.f32 %v945, %v950
        %v955 = vadd.f32 %v946, %v951
        %v956 = vadd.f32 %v947, %v952
        %v957 = vadd.f32 %v948, %v953
        %v958 = vstv %s899
        %v959 = vadd.f32 %v954, %v958
        %v960 = vadd.f32 %v955, %v958
        %v961 = vadd.f32 %v956, %v958
        %v962 = vadd.f32 %v957, %v958
        %v963 = vstv %s901
        %v964 = vmul.f32 %v963, %v187
        %v965 = vmul.f32 %v963, %v188
        %v966 = vmul.f32 %v963, %v189
        %v967 = vmul.f32 %v963, %v190
        %v968 = vstv %s903
        %v969 = vmul.f32 %v968, %v167
        %v970 = vmul.f32 %v968, %v168
        %v971 = vmul.f32 %v968, %v169
        %v972 = vmul.f32 %v968, %v170
        %v973 = vadd.f32 %v964, %v969
        %v974 = vadd.f32 %v965, %v970
        %v975 = vadd.f32 %v966, %v971
        %v976 = vadd.f32 %v967, %v972
        %v977 = vstv %s905
        %v978 = vadd.f32 %v973, %v977
        %v979 = vadd.f32 %v974, %v977
        %v980 = vadd.f32 %v975, %v977
        %v981 = vadd.f32 %v976, %v977
        %v982 = vmin.f32 %v921, %v940
        %v983 = vmin.f32 %v922, %v941
        %v984 = vmin.f32 %v923, %v942
        %v985 = vmin.f32 %v924, %v943
        %v986 = vmin.f32 %v982, %v959
        %v987 = vmin.f32 %v983, %v960
        %v988 = vmin.f32 %v984, %v961
        %v989 = vmin.f32 %v985, %v962
        %vm990 = vcmp.gt.f32.partialorder %v986, 0.0
        %vm991 = vcmp.gt.f32.partialorder %v987, 0.0
        %vm992 = vcmp.gt.f32.partialorder %v988, 0.0
        %vm993 = vcmp.gt.f32.partialorder %v989, 0.0
        %vm994 = vcmp.ge.f32.partialorder %v978, 0.0
        %vm995 = vcmp.ge.f32.partialorder %v979, 0.0
        %vm996 = vcmp.ge.f32.partialorder %v980, 0.0
        %vm997 = vcmp.ge.f32.partialorder %v981, 0.0
        %vm998 = vmand %vm990, %vm994
        %vm999 = vmand %vm991, %vm995
        %vm1000 = vmand %vm992, %vm996
        %vm1001 = vmand %vm993, %vm997
        %vm1002 = vcmp.lt.f32.partialorder %v978, %v872
        %vm1003 = vcmp.lt.f32.partialorder %v979, %v873
        %vm1004 = vcmp.lt.f32.partialorder %v980, %v874
        %vm1005 = vcmp.lt.f32.partialorder %v981, %v875
        %vm1006 = vmand %vm998, %vm1002
        %vm1007 = vmand %vm999, %vm1003
        %vm1008 = vmand %vm1000, %vm1004
        %vm1009 = vmand %vm1001, %vm1005
        %v1010 = vsel %vm1006, %v978, %v872
        %v1011 = vsel %vm1007, %v979, %v873
        %v1012 = vsel %vm1008, %v980, %v874
        %v1013 = vsel %vm1009, %v981, %v875
        %v1014 = vstv %s881
        %v1015 = vsel %vm1006, %v1014, %v877
        %v1016 = vsel %vm1007, %v1014, %v878
        %v1017 = vsel %vm1008, %v1014, %v879
        %v1018 = vsel %vm1009, %v1014, %v880
        %s1019 = sadd.s32 %s191, 6
        %s1020 = smul.u32 %s1019, 12
        %s1021 = sld [smem:[#allocation2 + %s1020]]
        %s1022 = sadd.s32 %s1020, 1
        %s1023 = sld [smem:[#allocation2 + %s1022]]
        %s1024 = sadd.s32 %s1020, 2
        %s1025 = sld [smem:[#allocation2 + %s1024]]
        %s1026 = sadd.s32 %s1020, 3
        %s1027 = sld [smem:[#allocation2 + %s1026]]
        %s1028 = sadd.s32 %s1020, 4
        %s1029 = sld [smem:[#allocation2 + %s1028]]
        %s1030 = sadd.s32 %s1020, 5
        %s1031 = sld [smem:[#allocation2 + %s1030]]
        %s1032 = sadd.s32 %s1020, 6
        %s1033 = sld [smem:[#allocation2 + %s1032]]
        %s1034 = sadd.s32 %s1020, 7
        %s1035 = sld [smem:[#allocation2 + %s1034]]
        %s1036 = sadd.s32 %s1020, 8
        %s1037 = sld [smem:[#allocation2 + %s1036]]
        %s1038 = sadd.s32 %s1020, 9
        %s1039 = sld [smem:[#allocation2 + %s1038]]
        %s1040 = sadd.s32 %s1020, 10
        %s1041 = sld [smem:[#allocation2 + %s1040]]
        %s1042 = sadd.s32 %s1020, 11
        %s1043 = sld [smem:[#allocation2 + %s1042]]
        %v1044 = vstv %s1021
        %v1045 = vmul.f32 %v1044, %v187
        %v1046 = vmul.f32 %v1044, %v188
        %v1047 = vmul.f32 %v1044, %v189
        %v1048 = vmul.f32 %v1044, %v190
        %v1049 = vstv %s1023
        %v1050 = vmul.f32 %v1049, %v167
        %v1051 = vmul.f32 %v1049, %v168
        %v1052 = vmul.f32 %v1049, %v169
        %v1053 = vmul.f32 %v1049, %v170
        %v1054 = vadd.f32 %v1045, %v1050
        %v1055 = vadd.f32 %v1046, %v1051
        %v1056 = vadd.f32 %v1047, %v1052
        %v1057 = vadd.f32 %v1048, %v1053
        %v1058 = vstv %s1025
        %v1059 = vadd.f32 %v1054, %v1058
        %v1060 = vadd.f32 %v1055, %v1058
        %v1061 = vadd.f32 %v1056, %v1058
        %v1062 = vadd.f32 %v1057, %v1058
        %v1063 = vstv %s1027
        %v1064 = vmul.f32 %v1063, %v187
        %v1065 = vmul.f32 %v1063, %v188
        %v1066 = vmul.f32 %v1063, %v189
        %v1067 = vmul.f32 %v1063, %v190
        %v1068 = vstv %s1029
        %v1069 = vmul.f32 %v1068, %v167
        %v1070 = vmul.f32 %v1068, %v168
        %v1071 = vmul.f32 %v1068, %v169
        %v1072 = vmul.f32 %v1068, %v170
        %v1073 = vadd.f32 %v1064, %v1069
        %v1074 = vadd.f32 %v1065, %v1070
        %v1075 = vadd.f32 %v1066, %v1071
        %v1076 = vadd.f32 %v1067, %v1072
        %v1077 = vstv %s1031
        %v1078 = vadd.f32 %v1073, %v1077
        %v1079 = vadd.f32 %v1074, %v1077
        %v1080 = vadd.f32 %v1075, %v1077
        %v1081 = vadd.f32 %v1076, %v1077
        %v1082 = vstv %s1033
        %v1083 = vmul.f32 %v1082, %v187
        %v1084 = vmul.f32 %v1082, %v188
        %v1085 = vmul.f32 %v1082, %v189
        %v1086 = vmul.f32 %v1082, %v190
        %v1087 = vstv %s1035
        %v1088 = vmul.f32 %v1087, %v167
        %v1089 = vmul.f32 %v1087, %v168
        %v1090 = vmul.f32 %v1087, %v169
        %v1091 = vmul.f32 %v1087, %v170
        %v1092 = vadd.f32 %v1083, %v1088
        %v1093 = vadd.f32 %v1084, %v1089
        %v1094 = vadd.f32 %v1085, %v1090
        %v1095 = vadd.f32 %v1086, %v1091
        %v1096 = vstv %s1037
        %v1097 = vadd.f32 %v1092, %v1096
        %v1098 = vadd.f32 %v1093, %v1096
        %v1099 = vadd.f32 %v1094, %v1096
        %v1100 = vadd.f32 %v1095, %v1096
        %v1101 = vstv %s1039
        %v1102 = vmul.f32 %v1101, %v187
        %v1103 = vmul.f32 %v1101, %v188
        %v1104 = vmul.f32 %v1101, %v189
        %v1105 = vmul.f32 %v1101, %v190
        %v1106 = vstv %s1041
        %v1107 = vmul.f32 %v1106, %v167
        %v1108 = vmul.f32 %v1106, %v168
        %v1109 = vmul.f32 %v1106, %v169
        %v1110 = vmul.f32 %v1106, %v170
        %v1111 = vadd.f32 %v1102, %v1107
        %v1112 = vadd.f32 %v1103, %v1108
        %v1113 = vadd.f32 %v1104, %v1109
        %v1114 = vadd.f32 %v1105, %v1110
        %v1115 = vstv %s1043
        %v1116 = vadd.f32 %v1111, %v1115
        %v1117 = vadd.f32 %v1112, %v1115
        %v1118 = vadd.f32 %v1113, %v1115
        %v1119 = vadd.f32 %v1114, %v1115
        %v1120 = vmin.f32 %v1059, %v1078
        %v1121 = vmin.f32 %v1060, %v1079
        %v1122 = vmin.f32 %v1061, %v1080
        %v1123 = vmin.f32 %v1062, %v1081
        %v1124 = vmin.f32 %v1120, %v1097
        %v1125 = vmin.f32 %v1121, %v1098
        %v1126 = vmin.f32 %v1122, %v1099
        %v1127 = vmin.f32 %v1123, %v1100
        %vm1128 = vcmp.gt.f32.partialorder %v1124, 0.0
        %vm1129 = vcmp.gt.f32.partialorder %v1125, 0.0
        %vm1130 = vcmp.gt.f32.partialorder %v1126, 0.0
        %vm1131 = vcmp.gt.f32.partialorder %v1127, 0.0
        %vm1132 = vcmp.ge.f32.partialorder %v1116, 0.0
        %vm1133 = vcmp.ge.f32.partialorder %v1117, 0.0
        %vm1134 = vcmp.ge.f32.partialorder %v1118, 0.0
        %vm1135 = vcmp.ge.f32.partialorder %v1119, 0.0
        %vm1136 = vmand %vm1128, %vm1132
        %vm1137 = vmand %vm1129, %vm1133
        %vm1138 = vmand %vm1130, %vm1134
        %vm1139 = vmand %vm1131, %vm1135
        %vm1140 = vcmp.lt.f32.partialorder %v1116, %v1010
        %vm1141 = vcmp.lt.f32.partialorder %v1117, %v1011
        %vm1142 = vcmp.lt.f32.partialorder %v1118, %v1012
        %vm1143 = vcmp.lt.f32.partialorder %v1119, %v1013
        %vm1144 = vmand %vm1136, %vm1140
        %vm1145 = vmand %vm1137, %vm1141
        %vm1146 = vmand %vm1138, %vm1142
        %vm1147 = vmand %vm1139, %vm1143
        %v1148 = vsel %vm1144, %v1116, %v1010
        %v1149 = vsel %vm1145, %v1117, %v1011
        %v1150 = vsel %vm1146, %v1118, %v1012
        %v1151 = vsel %vm1147, %v1119, %v1013
        %v1152 = vstv %s1019
        %v1153 = vsel %vm1144, %v1152, %v1015
        %v1154 = vsel %vm1145, %v1152, %v1016
        %v1155 = vsel %vm1146, %v1152, %v1017
        %v1156 = vsel %vm1147, %v1152, %v1018
        %s1157 = sadd.s32 %s191, 7
        %s1158 = smul.u32 %s1157, 12
        %s1159 = sld [smem:[#allocation2 + %s1158]]
        %s1160 = sadd.s32 %s1158, 1
        %s1161 = sld [smem:[#allocation2 + %s1160]]
        %s1162 = sadd.s32 %s1158, 2
        %s1163 = sld [smem:[#allocation2 + %s1162]]
        %s1164 = sadd.s32 %s1158, 3
        %s1165 = sld [smem:[#allocation2 + %s1164]]
        %s1166 = sadd.s32 %s1158, 4
        %s1167 = sld [smem:[#allocation2 + %s1166]]
        %s1168 = sadd.s32 %s1158, 5
        %s1169 = sld [smem:[#allocation2 + %s1168]]
        %s1170 = sadd.s32 %s1158, 6
        %s1171 = sld [smem:[#allocation2 + %s1170]]
        %s1172 = sadd.s32 %s1158, 7
        %s1173 = sld [smem:[#allocation2 + %s1172]]
        %s1174 = sadd.s32 %s1158, 8
        %s1175 = sld [smem:[#allocation2 + %s1174]]
        %s1176 = sadd.s32 %s1158, 9
        %s1177 = sld [smem:[#allocation2 + %s1176]]
        %s1178 = sadd.s32 %s1158, 10
        %s1179 = sld [smem:[#allocation2 + %s1178]]
        %s1180 = sadd.s32 %s1158, 11
        %s1181 = sld [smem:[#allocation2 + %s1180]]
        %v1182 = vstv %s1159
        %v1183 = vmul.f32 %v1182, %v187
        %v1184 = vmul.f32 %v1182, %v188
        %v1185 = vmul.f32 %v1182, %v189
        %v1186 = vmul.f32 %v1182, %v190
        %v1187 = vstv %s1161
        %v1188 = vmul.f32 %v1187, %v167
        %v1189 = vmul.f32 %v1187, %v168
        %v1190 = vmul.f32 %v1187, %v169
        %v1191 = vmul.f32 %v1187, %v170
        %v1192 = vadd.f32 %v1183, %v1188
        %v1193 = vadd.f32 %v1184, %v1189
        %v1194 = vadd.f32 %v1185, %v1190
        %v1195 = vadd.f32 %v1186, %v1191
        %v1196 = vstv %s1163
        %v1197 = vadd.f32 %v1192, %v1196
        %v1198 = vadd.f32 %v1193, %v1196
        %v1199 = vadd.f32 %v1194, %v1196
        %v1200 = vadd.f32 %v1195, %v1196
        %v1201 = vstv %s1165
        %v1202 = vmul.f32 %v1201, %v187
        %v1203 = vmul.f32 %v1201, %v188
        %v1204 = vmul.f32 %v1201, %v189
        %v1205 = vmul.f32 %v1201, %v190
        %v1206 = vstv %s1167
        %v1207 = vmul.f32 %v1206, %v167
        %v1208 = vmul.f32 %v1206, %v168
        %v1209 = vmul.f32 %v1206, %v169
        %v1210 = vmul.f32 %v1206, %v170
        %v1211 = vadd.f32 %v1202, %v1207
        %v1212 = vadd.f32 %v1203, %v1208
        %v1213 = vadd.f32 %v1204, %v1209
        %v1214 = vadd.f32 %v1205, %v1210
        %v1215 = vstv %s1169
        %v1216 = vadd.f32 %v1211, %v1215
        %v1217 = vadd.f32 %v1212, %v1215
        %v1218 = vadd.f32 %v1213, %v1215
        %v1219 = vadd.f32 %v1214, %v1215
        %v1220 = vstv %s1171
        %v1221 = vmul.f32 %v1220, %v187
        %v1222 = vmul.f32 %v1220, %v188
        %v1223 = vmul.f32 %v1220, %v189
        %v1224 = vmul.f32 %v1220, %v190
        %v1225 = vstv %s1173
        %v1226 = vmul.f32 %v1225, %v167
        %v1227 = vmul.f32 %v1225, %v168
        %v1228 = vmul.f32 %v1225, %v169
        %v1229 = vmul.f32 %v1225, %v170
        %v1230 = vadd.f32 %v1221, %v1226
        %v1231 = vadd.f32 %v1222, %v1227
        %v1232 = vadd.f32 %v1223, %v1228
        %v1233 = vadd.f32 %v1224, %v1229
        %v1234 = vstv %s1175
        %v1235 = vadd.f32 %v1230, %v1234
        %v1236 = vadd.f32 %v1231, %v1234
        %v1237 = vadd.f32 %v1232, %v1234
        %v1238 = vadd.f32 %v1233, %v1234
        %v1239 = vstv %s1177
        %v1240 = vmul.f32 %v1239, %v187
        %v1241 = vmul.f32 %v1239, %v188
        %v1242 = vmul.f32 %v1239, %v189
        %v1243 = vmul.f32 %v1239, %v190
        %v1244 = vstv %s1179
        %v1245 = vmul.f32 %v1244, %v167
        %v1246 = vmul.f32 %v1244, %v168
        %v1247 = vmul.f32 %v1244, %v169
        %v1248 = vmul.f32 %v1244, %v170
        %v1249 = vadd.f32 %v1240, %v1245
        %v1250 = vadd.f32 %v1241, %v1246
        %v1251 = vadd.f32 %v1242, %v1247
        %v1252 = vadd.f32 %v1243, %v1248
        %v1253 = vstv %s1181
        %v1254 = vadd.f32 %v1249, %v1253
        %v1255 = vadd.f32 %v1250, %v1253
        %v1256 = vadd.f32 %v1251, %v1253
        %v1257 = vadd.f32 %v1252, %v1253
        %v1258 = vmin.f32 %v1197, %v1216
        %v1259 = vmin.f32 %v1198, %v1217
        %v1260 = vmin.f32 %v1199, %v1218
        %v1261 = vmin.f32 %v1200, %v1219
        %v1262 = vmin.f32 %v1258, %v1235
        %v1263 = vmin.f32 %v1259, %v1236
        %v1264 = vmin.f32 %v1260, %v1237
        %v1265 = vmin.f32 %v1261, %v1238
        %vm1266 = vcmp.gt.f32.partialorder %v1262, 0.0
        %vm1267 = vcmp.gt.f32.partialorder %v1263, 0.0
        %vm1268 = vcmp.gt.f32.partialorder %v1264, 0.0
        %vm1269 = vcmp.gt.f32.partialorder %v1265, 0.0
        %vm1270 = vcmp.ge.f32.partialorder %v1254, 0.0
        %vm1271 = vcmp.ge.f32.partialorder %v1255, 0.0
        %vm1272 = vcmp.ge.f32.partialorder %v1256, 0.0
        %vm1273 = vcmp.ge.f32.partialorder %v1257, 0.0
        %vm1274 = vmand %vm1266, %vm1270
        %vm1275 = vmand %vm1267, %vm1271
        %vm1276 = vmand %vm1268, %vm1272
        %vm1277 = vmand %vm1269, %vm1273
        %vm1278 = vcmp.lt.f32.partialorder %v1254, %v1148
        %vm1279 = vcmp.lt.f32.partialorder %v1255, %v1149
        %vm1280 = vcmp.lt.f32.partialorder %v1256, %v1150
        %vm1281 = vcmp.lt.f32.partialorder %v1257, %v1151
        %vm1282 = vmand %vm1274, %vm1278
        %vm1283 = vmand %vm1275, %vm1279
        %vm1284 = vmand %vm1276, %vm1280
        %vm1285 = vmand %vm1277, %vm1281
        %v1286 = vsel %vm1282, %v1254, %v1148
        %v1287 = vsel %vm1283, %v1255, %v1149
        %v1288 = vsel %vm1284, %v1256, %v1150
        %v1289 = vsel %vm1285, %v1257, %v1151
        %v1290 = vstv %s1157
        %v1291 = vsel %vm1282, %v1290, %v1153
        %v1292 = vsel %vm1283, %v1290, %v1154
        %v1293 = vsel %vm1284, %v1290, %v1155
        %v1294 = vsel %vm1285, %v1290, %v1156
        %s1295 = sadd.s32 %s191, 8
        %s1296 = smul.u32 %s1295, 12
        %s1297 = sld [smem:[#allocation2 + %s1296]]
        %s1298 = sadd.s32 %s1296, 1
        %s1299 = sld [smem:[#allocation2 + %s1298]]
        %s1300 = sadd.s32 %s1296, 2
        %s1301 = sld [smem:[#allocation2 + %s1300]]
        %s1302 = sadd.s32 %s1296, 3
        %s1303 = sld [smem:[#allocation2 + %s1302]]
        %s1304 = sadd.s32 %s1296, 4
        %s1305 = sld [smem:[#allocation2 + %s1304]]
        %s1306 = sadd.s32 %s1296, 5
        %s1307 = sld [smem:[#allocation2 + %s1306]]
        %s1308 = sadd.s32 %s1296, 6
        %s1309 = sld [smem:[#allocation2 + %s1308]]
        %s1310 = sadd.s32 %s1296, 7
        %s1311 = sld [smem:[#allocation2 + %s1310]]
        %s1312 = sadd.s32 %s1296, 8
        %s1313 = sld [smem:[#allocation2 + %s1312]]
        %s1314 = sadd.s32 %s1296, 9
        %s1315 = sld [smem:[#allocation2 + %s1314]]
        %s1316 = sadd.s32 %s1296, 10
        %s1317 = sld [smem:[#allocation2 + %s1316]]
        %s1318 = sadd.s32 %s1296, 11
        %s1319 = sld [smem:[#allocation2 + %s1318]]
        %v1320 = vstv %s1297
        %v1321 = vmul.f32 %v1320, %v187
        %v1322 = vmul.f32 %v1320, %v188
        %v1323 = vmul.f32 %v1320, %v189
        %v1324 = vmul.f32 %v1320, %v190
        %v1325 = vstv %s1299
        %v1326 = vmul.f32 %v1325, %v167
        %v1327 = vmul.f32 %v1325, %v168
        %v1328 = vmul.f32 %v1325, %v169
        %v1329 = vmul.f32 %v1325, %v170
        %v1330 = vadd.f32 %v1321, %v1326
        %v1331 = vadd.f32 %v1322, %v1327
        %v1332 = vadd.f32 %v1323, %v1328
        %v1333 = vadd.f32 %v1324, %v1329
        %v1334 = vstv %s1301
        %v1335 = vadd.f32 %v1330, %v1334
        %v1336 = vadd.f32 %v1331, %v1334
        %v1337 = vadd.f32 %v1332, %v1334
        %v1338 = vadd.f32 %v1333, %v1334
        %v1339 = vstv %s1303
        %v1340 = vmul.f32 %v1339, %v187
        %v1341 = vmul.f32 %v1339, %v188
        %v1342 = vmul.f32 %v1339, %v189
        %v1343 = vmul.f32 %v1339, %v190
        %v1344 = vstv %s1305
        %v1345 = vmul.f32 %v1344, %v167
        %v1346 = vmul.f32 %v1344, %v168
        %v1347 = vmul.f32 %v1344, %v169
        %v1348 = vmul.f32 %v1344, %v170
        %v1349 = vadd.f32 %v1340, %v1345
        %v1350 = vadd.f32 %v1341, %v1346
        %v1351 = vadd.f32 %v1342, %v1347
        %v1352 = vadd.f32 %v1343, %v1348
        %v1353 = vstv %s1307
        %v1354 = vadd.f32 %v1349, %v1353
        %v1355 = vadd.f32 %v1350, %v1353
        %v1356 = vadd.f32 %v1351, %v1353
        %v1357 = vadd.f32 %v1352, %v1353
        %v1358 = vstv %s1309
        %v1359 = vmul.f32 %v1358, %v187
        %v1360 = vmul.f32 %v1358, %v188
        %v1361 = vmul.f32 %v1358, %v189
        %v1362 = vmul.f32 %v1358, %v190
        %v1363 = vstv %s1311
        %v1364 = vmul.f32 %v1363, %v167
        %v1365 = vmul.f32 %v1363, %v168
        %v1366 = vmul.f32 %v1363, %v169
        %v1367 = vmul.f32 %v1363, %v170
        %v1368 = vadd.f32 %v1359, %v1364
        %v1369 = vadd.f32 %v1360, %v1365
        %v1370 = vadd.f32 %v1361, %v1366
        %v1371 = vadd.f32 %v1362, %v1367
        %v1372 = vstv %s1313
        %v1373 = vadd.f32 %v1368, %v1372
        %v1374 = vadd.f32 %v1369, %v1372
        %v1375 = vadd.f32 %v1370, %v1372
        %v1376 = vadd.f32 %v1371, %v1372
        %v1377 = vstv %s1315
        %v1378 = vmul.f32 %v1377, %v187
        %v1379 = vmul.f32 %v1377, %v188
        %v1380 = vmul.f32 %v1377, %v189
        %v1381 = vmul.f32 %v1377, %v190
        %v1382 = vstv %s1317
        %v1383 = vmul.f32 %v1382, %v167
        %v1384 = vmul.f32 %v1382, %v168
        %v1385 = vmul.f32 %v1382, %v169
        %v1386 = vmul.f32 %v1382, %v170
        %v1387 = vadd.f32 %v1378, %v1383
        %v1388 = vadd.f32 %v1379, %v1384
        %v1389 = vadd.f32 %v1380, %v1385
        %v1390 = vadd.f32 %v1381, %v1386
        %v1391 = vstv %s1319
        %v1392 = vadd.f32 %v1387, %v1391
        %v1393 = vadd.f32 %v1388, %v1391
        %v1394 = vadd.f32 %v1389, %v1391
        %v1395 = vadd.f32 %v1390, %v1391
        %v1396 = vmin.f32 %v1335, %v1354
        %v1397 = vmin.f32 %v1336, %v1355
        %v1398 = vmin.f32 %v1337, %v1356
        %v1399 = vmin.f32 %v1338, %v1357
        %v1400 = vmin.f32 %v1396, %v1373
        %v1401 = vmin.f32 %v1397, %v1374
        %v1402 = vmin.f32 %v1398, %v1375
        %v1403 = vmin.f32 %v1399, %v1376
        %vm1404 = vcmp.gt.f32.partialorder %v1400, 0.0
        %vm1405 = vcmp.gt.f32.partialorder %v1401, 0.0
        %vm1406 = vcmp.gt.f32.partialorder %v1402, 0.0
        %vm1407 = vcmp.gt.f32.partialorder %v1403, 0.0
        %vm1408 = vcmp.ge.f32.partialorder %v1392, 0.0
        %vm1409 = vcmp.ge.f32.partialorder %v1393, 0.0
        %vm1410 = vcmp.ge.f32.partialorder %v1394, 0.0
        %vm1411 = vcmp.ge.f32.partialorder %v1395, 0.0
        %vm1412 = vmand %vm1404, %vm1408
        %vm1413 = vmand %vm1405, %vm1409
        %vm1414 = vmand %vm1406, %vm1410
        %vm1415 = vmand %vm1407, %vm1411
        %vm1416 = vcmp.lt.f32.partialorder %v1392, %v1286
        %vm1417 = vcmp.lt.f32.partialorder %v1393, %v1287
        %vm1418 = vcmp.lt.f32.partialorder %v1394, %v1288
        %vm1419 = vcmp.lt.f32.partialorder %v1395, %v1289
        %vm1420 = vmand %vm1412, %vm1416
        %vm1421 = vmand %vm1413, %vm1417
        %vm1422 = vmand %vm1414, %vm1418
        %vm1423 = vmand %vm1415, %vm1419
        %v1424 = vsel %vm1420, %v1392, %v1286
        %v1425 = vsel %vm1421, %v1393, %v1287
        %v1426 = vsel %vm1422, %v1394, %v1288
        %v1427 = vsel %vm1423, %v1395, %v1289
        %v1428 = vstv %s1295
        %v1429 = vsel %vm1420, %v1428, %v1291
        %v1430 = vsel %vm1421, %v1428, %v1292
        %v1431 = vsel %vm1422, %v1428, %v1293
        %v1432 = vsel %vm1423, %v1428, %v1294
        %s1433 = sadd.s32 %s191, 9
        %s1434 = smul.u32 %s1433, 12
        %s1435 = sld [smem:[#allocation2 + %s1434]]
        %s1436 = sadd.s32 %s1434, 1
        %s1437 = sld [smem:[#allocation2 + %s1436]]
        %s1438 = sadd.s32 %s1434, 2
        %s1439 = sld [smem:[#allocation2 + %s1438]]
        %s1440 = sadd.s32 %s1434, 3
        %s1441 = sld [smem:[#allocation2 + %s1440]]
        %s1442 = sadd.s32 %s1434, 4
        %s1443 = sld [smem:[#allocation2 + %s1442]]
        %s1444 = sadd.s32 %s1434, 5
        %s1445 = sld [smem:[#allocation2 + %s1444]]
        %s1446 = sadd.s32 %s1434, 6
        %s1447 = sld [smem:[#allocation2 + %s1446]]
        %s1448 = sadd.s32 %s1434, 7
        %s1449 = sld [smem:[#allocation2 + %s1448]]
        %s1450 = sadd.s32 %s1434, 8
        %s1451 = sld [smem:[#allocation2 + %s1450]]
        %s1452 = sadd.s32 %s1434, 9
        %s1453 = sld [smem:[#allocation2 + %s1452]]
        %s1454 = sadd.s32 %s1434, 10
        %s1455 = sld [smem:[#allocation2 + %s1454]]
        %s1456 = sadd.s32 %s1434, 11
        %s1457 = sld [smem:[#allocation2 + %s1456]]
        %v1458 = vstv %s1435
        %v1459 = vmul.f32 %v1458, %v187
        %v1460 = vmul.f32 %v1458, %v188
        %v1461 = vmul.f32 %v1458, %v189
        %v1462 = vmul.f32 %v1458, %v190
        %v1463 = vstv %s1437
        %v1464 = vmul.f32 %v1463, %v167
        %v1465 = vmul.f32 %v1463, %v168
        %v1466 = vmul.f32 %v1463, %v169
        %v1467 = vmul.f32 %v1463, %v170
        %v1468 = vadd.f32 %v1459, %v1464
        %v1469 = vadd.f32 %v1460, %v1465
        %v1470 = vadd.f32 %v1461, %v1466
        %v1471 = vadd.f32 %v1462, %v1467
        %v1472 = vstv %s1439
        %v1473 = vadd.f32 %v1468, %v1472
        %v1474 = vadd.f32 %v1469, %v1472
        %v1475 = vadd.f32 %v1470, %v1472
        %v1476 = vadd.f32 %v1471, %v1472
        %v1477 = vstv %s1441
        %v1478 = vmul.f32 %v1477, %v187
        %v1479 = vmul.f32 %v1477, %v188
        %v1480 = vmul.f32 %v1477, %v189
        %v1481 = vmul.f32 %v1477, %v190
        %v1482 = vstv %s1443
        %v1483 = vmul.f32 %v1482, %v167
        %v1484 = vmul.f32 %v1482, %v168
        %v1485 = vmul.f32 %v1482, %v169
        %v1486 = vmul.f32 %v1482, %v170
        %v1487 = vadd.f32 %v1478, %v1483
        %v1488 = vadd.f32 %v1479, %v1484
        %v1489 = vadd.f32 %v1480, %v1485
        %v1490 = vadd.f32 %v1481, %v1486
        %v1491 = vstv %s1445
        %v1492 = vadd.f32 %v1487, %v1491
        %v1493 = vadd.f32 %v1488, %v1491
        %v1494 = vadd.f32 %v1489, %v1491
        %v1495 = vadd.f32 %v1490, %v1491
        %v1496 = vstv %s1447
        %v1497 = vmul.f32 %v1496, %v187
        %v1498 = vmul.f32 %v1496, %v188
        %v1499 = vmul.f32 %v1496, %v189
        %v1500 = vmul.f32 %v1496, %v190
        %v1501 = vstv %s1449
        %v1502 = vmul.f32 %v1501, %v167
        %v1503 = vmul.f32 %v1501, %v168
        %v1504 = vmul.f32 %v1501, %v169
        %v1505 = vmul.f32 %v1501, %v170
        %v1506 = vadd.f32 %v1497, %v1502
        %v1507 = vadd.f32 %v1498, %v1503
        %v1508 = vadd.f32 %v1499, %v1504
        %v1509 = vadd.f32 %v1500, %v1505
        %v1510 = vstv %s1451
        %v1511 = vadd.f32 %v1506, %v1510
        %v1512 = vadd.f32 %v1507, %v1510
        %v1513 = vadd.f32 %v1508, %v1510
        %v1514 = vadd.f32 %v1509, %v1510
        %v1515 = vstv %s1453
        %v1516 = vmul.f32 %v1515, %v187
        %v1517 = vmul.f32 %v1515, %v188
        %v1518 = vmul.f32 %v1515, %v189
        %v1519 = vmul.f32 %v1515, %v190
        %v1520 = vstv %s1455
        %v1521 = vmul.f32 %v1520, %v167
        %v1522 = vmul.f32 %v1520, %v168
        %v1523 = vmul.f32 %v1520, %v169
        %v1524 = vmul.f32 %v1520, %v170
        %v1525 = vadd.f32 %v1516, %v1521
        %v1526 = vadd.f32 %v1517, %v1522
        %v1527 = vadd.f32 %v1518, %v1523
        %v1528 = vadd.f32 %v1519, %v1524
        %v1529 = vstv %s1457
        %v1530 = vadd.f32 %v1525, %v1529
        %v1531 = vadd.f32 %v1526, %v1529
        %v1532 = vadd.f32 %v1527, %v1529
        %v1533 = vadd.f32 %v1528, %v1529
        %v1534 = vmin.f32 %v1473, %v1492
        %v1535 = vmin.f32 %v1474, %v1493
        %v1536 = vmin.f32 %v1475, %v1494
        %v1537 = vmin.f32 %v1476, %v1495
        %v1538 = vmin.f32 %v1534, %v1511
        %v1539 = vmin.f32 %v1535, %v1512
        %v1540 = vmin.f32 %v1536, %v1513
        %v1541 = vmin.f32 %v1537, %v1514
        %vm1542 = vcmp.gt.f32.partialorder %v1538, 0.0
        %vm1543 = vcmp.gt.f32.partialorder %v1539, 0.0
        %vm1544 = vcmp.gt.f32.partialorder %v1540, 0.0
        %vm1545 = vcmp.gt.f32.partialorder %v1541, 0.0
        %vm1546 = vcmp.ge.f32.partialorder %v1530, 0.0
        %vm1547 = vcmp.ge.f32.partialorder %v1531, 0.0
        %vm1548 = vcmp.ge.f32.partialorder %v1532, 0.0
        %vm1549 = vcmp.ge.f32.partialorder %v1533, 0.0
        %vm1550 = vmand %vm1542, %vm1546
        %vm1551 = vmand %vm1543, %vm1547
        %vm1552 = vmand %vm1544, %vm1548
        %vm1553 = vmand %vm1545, %vm1549
        %vm1554 = vcmp.lt.f32.partialorder %v1530, %v1424
        %vm1555 = vcmp.lt.f32.partialorder %v1531, %v1425
        %vm1556 = vcmp.lt.f32.partialorder %v1532, %v1426
        %vm1557 = vcmp.lt.f32.partialorder %v1533, %v1427
        %vm1558 = vmand %vm1550, %vm1554
        %vm1559 = vmand %vm1551, %vm1555
        %vm1560 = vmand %vm1552, %vm1556
        %vm1561 = vmand %vm1553, %vm1557
        %v1562 = vsel %vm1558, %v1530, %v1424
        %v1563 = vsel %vm1559, %v1531, %v1425
        %v1564 = vsel %vm1560, %v1532, %v1426
        %v1565 = vsel %vm1561, %v1533, %v1427
        %v1566 = vstv %s1433
        %v1567 = vsel %vm1558, %v1566, %v1429
        %v1568 = vsel %vm1559, %v1566, %v1430
        %v1569 = vsel %vm1560, %v1566, %v1431
        %v1570 = vsel %vm1561, %v1566, %v1432
        %s1571 = sadd.s32 %s191, 10
        %s1572 = smul.u32 %s1571, 12
        %s1573 = sld [smem:[#allocation2 + %s1572]]
        %s1574 = sadd.s32 %s1572, 1
        %s1575 = sld [smem:[#allocation2 + %s1574]]
        %s1576 = sadd.s32 %s1572, 2
        %s1577 = sld [smem:[#allocation2 + %s1576]]
        %s1578 = sadd.s32 %s1572, 3
        %s1579 = sld [smem:[#allocation2 + %s1578]]
        %s1580 = sadd.s32 %s1572, 4
        %s1581 = sld [smem:[#allocation2 + %s1580]]
        %s1582 = sadd.s32 %s1572, 5
        %s1583 = sld [smem:[#allocation2 + %s1582]]
        %s1584 = sadd.s32 %s1572, 6
        %s1585 = sld [smem:[#allocation2 + %s1584]]
        %s1586 = sadd.s32 %s1572, 7
        %s1587 = sld [smem:[#allocation2 + %s1586]]
        %s1588 = sadd.s32 %s1572, 8
        %s1589 = sld [smem:[#allocation2 + %s1588]]
        %s1590 = sadd.s32 %s1572, 9
        %s1591 = sld [smem:[#allocation2 + %s1590]]
        %s1592 = sadd.s32 %s1572, 10
        %s1593 = sld [smem:[#allocation2 + %s1592]]
        %s1594 = sadd.s32 %s1572, 11
        %s1595 = sld [smem:[#allocation2 + %s1594]]
        %v1596 = vstv %s1573
        %v1597 = vmul.f32 %v1596, %v187
        %v1598 = vmul.f32 %v1596, %v188
        %v1599 = vmul.f32 %v1596, %v189
        %v1600 = vmul.f32 %v1596, %v190
        %v1601 = vstv %s1575
        %v1602 = vmul.f32 %v1601, %v167
        %v1603 = vmul.f32 %v1601, %v168
        %v1604 = vmul.f32 %v1601, %v169
        %v1605 = vmul.f32 %v1601, %v170
        %v1606 = vadd.f32 %v1597, %v1602
        %v1607 = vadd.f32 %v1598, %v1603
        %v1608 = vadd.f32 %v1599, %v1604
        %v1609 = vadd.f32 %v1600, %v1605
        %v1610 = vstv %s1577
        %v1611 = vadd.f32 %v1606, %v1610
        %v1612 = vadd.f32 %v1607, %v1610
        %v1613 = vadd.f32 %v1608, %v1610
        %v1614 = vadd.f32 %v1609, %v1610
        %v1615 = vstv %s1579
        %v1616 = vmul.f32 %v1615, %v187
        %v1617 = vmul.f32 %v1615, %v188
        %v1618 = vmul.f32 %v1615, %v189
        %v1619 = vmul.f32 %v1615, %v190
        %v1620 = vstv %s1581
        %v1621 = vmul.f32 %v1620, %v167
        %v1622 = vmul.f32 %v1620, %v168
        %v1623 = vmul.f32 %v1620, %v169
        %v1624 = vmul.f32 %v1620, %v170
        %v1625 = vadd.f32 %v1616, %v1621
        %v1626 = vadd.f32 %v1617, %v1622
        %v1627 = vadd.f32 %v1618, %v1623
        %v1628 = vadd.f32 %v1619, %v1624
        %v1629 = vstv %s1583
        %v1630 = vadd.f32 %v1625, %v1629
        %v1631 = vadd.f32 %v1626, %v1629
        %v1632 = vadd.f32 %v1627, %v1629
        %v1633 = vadd.f32 %v1628, %v1629
        %v1634 = vstv %s1585
        %v1635 = vmul.f32 %v1634, %v187
        %v1636 = vmul.f32 %v1634, %v188
        %v1637 = vmul.f32 %v1634, %v189
        %v1638 = vmul.f32 %v1634, %v190
        %v1639 = vstv %s1587
        %v1640 = vmul.f32 %v1639, %v167
        %v1641 = vmul.f32 %v1639, %v168
        %v1642 = vmul.f32 %v1639, %v169
        %v1643 = vmul.f32 %v1639, %v170
        %v1644 = vadd.f32 %v1635, %v1640
        %v1645 = vadd.f32 %v1636, %v1641
        %v1646 = vadd.f32 %v1637, %v1642
        %v1647 = vadd.f32 %v1638, %v1643
        %v1648 = vstv %s1589
        %v1649 = vadd.f32 %v1644, %v1648
        %v1650 = vadd.f32 %v1645, %v1648
        %v1651 = vadd.f32 %v1646, %v1648
        %v1652 = vadd.f32 %v1647, %v1648
        %v1653 = vstv %s1591
        %v1654 = vmul.f32 %v1653, %v187
        %v1655 = vmul.f32 %v1653, %v188
        %v1656 = vmul.f32 %v1653, %v189
        %v1657 = vmul.f32 %v1653, %v190
        %v1658 = vstv %s1593
        %v1659 = vmul.f32 %v1658, %v167
        %v1660 = vmul.f32 %v1658, %v168
        %v1661 = vmul.f32 %v1658, %v169
        %v1662 = vmul.f32 %v1658, %v170
        %v1663 = vadd.f32 %v1654, %v1659
        %v1664 = vadd.f32 %v1655, %v1660
        %v1665 = vadd.f32 %v1656, %v1661
        %v1666 = vadd.f32 %v1657, %v1662
        %v1667 = vstv %s1595
        %v1668 = vadd.f32 %v1663, %v1667
        %v1669 = vadd.f32 %v1664, %v1667
        %v1670 = vadd.f32 %v1665, %v1667
        %v1671 = vadd.f32 %v1666, %v1667
        %v1672 = vmin.f32 %v1611, %v1630
        %v1673 = vmin.f32 %v1612, %v1631
        %v1674 = vmin.f32 %v1613, %v1632
        %v1675 = vmin.f32 %v1614, %v1633
        %v1676 = vmin.f32 %v1672, %v1649
        %v1677 = vmin.f32 %v1673, %v1650
        %v1678 = vmin.f32 %v1674, %v1651
        %v1679 = vmin.f32 %v1675, %v1652
        %vm1680 = vcmp.gt.f32.partialorder %v1676, 0.0
        %vm1681 = vcmp.gt.f32.partialorder %v1677, 0.0
        %vm1682 = vcmp.gt.f32.partialorder %v1678, 0.0
        %vm1683 = vcmp.gt.f32.partialorder %v1679, 0.0
        %vm1684 = vcmp.ge.f32.partialorder %v1668, 0.0
        %vm1685 = vcmp.ge.f32.partialorder %v1669, 0.0
        %vm1686 = vcmp.ge.f32.partialorder %v1670, 0.0
        %vm1687 = vcmp.ge.f32.partialorder %v1671, 0.0
        %vm1688 = vmand %vm1680, %vm1684
        %vm1689 = vmand %vm1681, %vm1685
        %vm1690 = vmand %vm1682, %vm1686
        %vm1691 = vmand %vm1683, %vm1687
        %vm1692 = vcmp.lt.f32.partialorder %v1668, %v1562
        %vm1693 = vcmp.lt.f32.partialorder %v1669, %v1563
        %vm1694 = vcmp.lt.f32.partialorder %v1670, %v1564
        %vm1695 = vcmp.lt.f32.partialorder %v1671, %v1565
        %vm1696 = vmand %vm1688, %vm1692
        %vm1697 = vmand %vm1689, %vm1693
        %vm1698 = vmand %vm1690, %vm1694
        %vm1699 = vmand %vm1691, %vm1695
        %v1700 = vsel %vm1696, %v1668, %v1562
        %v1701 = vsel %vm1697, %v1669, %v1563
        %v1702 = vsel %vm1698, %v1670, %v1564
        %v1703 = vsel %vm1699, %v1671, %v1565
        %v1704 = vstv %s1571
        %v1705 = vsel %vm1696, %v1704, %v1567
        %v1706 = vsel %vm1697, %v1704, %v1568
        %v1707 = vsel %vm1698, %v1704, %v1569
        %v1708 = vsel %vm1699, %v1704, %v1570
        %s1709 = sadd.s32 %s191, 11
        %s1710 = smul.u32 %s1709, 12
        %s1711 = sld [smem:[#allocation2 + %s1710]]
        %s1712 = sadd.s32 %s1710, 1
        %s1713 = sld [smem:[#allocation2 + %s1712]]
        %s1714 = sadd.s32 %s1710, 2
        %s1715 = sld [smem:[#allocation2 + %s1714]]
        %s1716 = sadd.s32 %s1710, 3
        %s1717 = sld [smem:[#allocation2 + %s1716]]
        %s1718 = sadd.s32 %s1710, 4
        %s1719 = sld [smem:[#allocation2 + %s1718]]
        %s1720 = sadd.s32 %s1710, 5
        %s1721 = sld [smem:[#allocation2 + %s1720]]
        %s1722 = sadd.s32 %s1710, 6
        %s1723 = sld [smem:[#allocation2 + %s1722]]
        %s1724 = sadd.s32 %s1710, 7
        %s1725 = sld [smem:[#allocation2 + %s1724]]
        %s1726 = sadd.s32 %s1710, 8
        %s1727 = sld [smem:[#allocation2 + %s1726]]
        %s1728 = sadd.s32 %s1710, 9
        %s1729 = sld [smem:[#allocation2 + %s1728]]
        %s1730 = sadd.s32 %s1710, 10
        %s1731 = sld [smem:[#allocation2 + %s1730]]
        %s1732 = sadd.s32 %s1710, 11
        %s1733 = sld [smem:[#allocation2 + %s1732]]
        %v1734 = vstv %s1711
        %v1735 = vmul.f32 %v1734, %v187
        %v1736 = vmul.f32 %v1734, %v188
        %v1737 = vmul.f32 %v1734, %v189
        %v1738 = vmul.f32 %v1734, %v190
        %v1739 = vstv %s1713
        %v1740 = vmul.f32 %v1739, %v167
        %v1741 = vmul.f32 %v1739, %v168
        %v1742 = vmul.f32 %v1739, %v169
        %v1743 = vmul.f32 %v1739, %v170
        %v1744 = vadd.f32 %v1735, %v1740
        %v1745 = vadd.f32 %v1736, %v1741
        %v1746 = vadd.f32 %v1737, %v1742
        %v1747 = vadd.f32 %v1738, %v1743
        %v1748 = vstv %s1715
        %v1749 = vadd.f32 %v1744, %v1748
        %v1750 = vadd.f32 %v1745, %v1748
        %v1751 = vadd.f32 %v1746, %v1748
        %v1752 = vadd.f32 %v1747, %v1748
        %v1753 = vstv %s1717
        %v1754 = vmul.f32 %v1753, %v187
        %v1755 = vmul.f32 %v1753, %v188
        %v1756 = vmul.f32 %v1753, %v189
        %v1757 = vmul.f32 %v1753, %v190
        %v1758 = vstv %s1719
        %v1759 = vmul.f32 %v1758, %v167
        %v1760 = vmul.f32 %v1758, %v168
        %v1761 = vmul.f32 %v1758, %v169
        %v1762 = vmul.f32 %v1758, %v170
        %v1763 = vadd.f32 %v1754, %v1759
        %v1764 = vadd.f32 %v1755, %v1760
        %v1765 = vadd.f32 %v1756, %v1761
        %v1766 = vadd.f32 %v1757, %v1762
        %v1767 = vstv %s1721
        %v1768 = vadd.f32 %v1763, %v1767
        %v1769 = vadd.f32 %v1764, %v1767
        %v1770 = vadd.f32 %v1765, %v1767
        %v1771 = vadd.f32 %v1766, %v1767
        %v1772 = vstv %s1723
        %v1773 = vmul.f32 %v1772, %v187
        %v1774 = vmul.f32 %v1772, %v188
        %v1775 = vmul.f32 %v1772, %v189
        %v1776 = vmul.f32 %v1772, %v190
        %v1777 = vstv %s1725
        %v1778 = vmul.f32 %v1777, %v167
        %v1779 = vmul.f32 %v1777, %v168
        %v1780 = vmul.f32 %v1777, %v169
        %v1781 = vmul.f32 %v1777, %v170
        %v1782 = vadd.f32 %v1773, %v1778
        %v1783 = vadd.f32 %v1774, %v1779
        %v1784 = vadd.f32 %v1775, %v1780
        %v1785 = vadd.f32 %v1776, %v1781
        %v1786 = vstv %s1727
        %v1787 = vadd.f32 %v1782, %v1786
        %v1788 = vadd.f32 %v1783, %v1786
        %v1789 = vadd.f32 %v1784, %v1786
        %v1790 = vadd.f32 %v1785, %v1786
        %v1791 = vstv %s1729
        %v1792 = vmul.f32 %v1791, %v187
        %v1793 = vmul.f32 %v1791, %v188
        %v1794 = vmul.f32 %v1791, %v189
        %v1795 = vmul.f32 %v1791, %v190
        %v1796 = vstv %s1731
        %v1797 = vmul.f32 %v1796, %v167
        %v1798 = vmul.f32 %v1796, %v168
        %v1799 = vmul.f32 %v1796, %v169
        %v1800 = vmul.f32 %v1796, %v170
        %v1801 = vadd.f32 %v1792, %v1797
        %v1802 = vadd.f32 %v1793, %v1798
        %v1803 = vadd.f32 %v1794, %v1799
        %v1804 = vadd.f32 %v1795, %v1800
        %v1805 = vstv %s1733
        %v1806 = vadd.f32 %v1801, %v1805
        %v1807 = vadd.f32 %v1802, %v1805
        %v1808 = vadd.f32 %v1803, %v1805
        %v1809 = vadd.f32 %v1804, %v1805
        %v1810 = vmin.f32 %v1749, %v1768
        %v1811 = vmin.f32 %v1750, %v1769
        %v1812 = vmin.f32 %v1751, %v1770
        %v1813 = vmin.f32 %v1752, %v1771
        %v1814 = vmin.f32 %v1810, %v1787
        %v1815 = vmin.f32 %v1811, %v1788
        %v1816 = vmin.f32 %v1812, %v1789
        %v1817 = vmin.f32 %v1813, %v1790
        %vm1818 = vcmp.gt.f32.partialorder %v1814, 0.0
        %vm1819 = vcmp.gt.f32.partialorder %v1815, 0.0
        %vm1820 = vcmp.gt.f32.partialorder %v1816, 0.0
        %vm1821 = vcmp.gt.f32.partialorder %v1817, 0.0
        %vm1822 = vcmp.ge.f32.partialorder %v1806, 0.0
        %vm1823 = vcmp.ge.f32.partialorder %v1807, 0.0
        %vm1824 = vcmp.ge.f32.partialorder %v1808, 0.0
        %vm1825 = vcmp.ge.f32.partialorder %v1809, 0.0
        %vm1826 = vmand %vm1818, %vm1822
        %vm1827 = vmand %vm1819, %vm1823
        %vm1828 = vmand %vm1820, %vm1824
        %vm1829 = vmand %vm1821, %vm1825
        %vm1830 = vcmp.lt.f32.partialorder %v1806, %v1700
        %vm1831 = vcmp.lt.f32.partialorder %v1807, %v1701
        %vm1832 = vcmp.lt.f32.partialorder %v1808, %v1702
        %vm1833 = vcmp.lt.f32.partialorder %v1809, %v1703
        %vm1834 = vmand %vm1826, %vm1830
        %vm1835 = vmand %vm1827, %vm1831
        %vm1836 = vmand %vm1828, %vm1832
        %vm1837 = vmand %vm1829, %vm1833
        %v1838 = vsel %vm1834, %v1806, %v1700
        %v1839 = vsel %vm1835, %v1807, %v1701
        %v1840 = vsel %vm1836, %v1808, %v1702
        %v1841 = vsel %vm1837, %v1809, %v1703
        %v1842 = vstv %s1709
        %v1843 = vsel %vm1834, %v1842, %v1705
        %v1844 = vsel %vm1835, %v1842, %v1706
        %v1845 = vsel %vm1836, %v1842, %v1707
        %v1846 = vsel %vm1837, %v1842, %v1708
        %s1847 = sadd.s32 %s191, 12
        %s1848 = smul.u32 %s1847, 12
        %s1849 = sld [smem:[#allocation2 + %s1848]]
        %s1850 = sadd.s32 %s1848, 1
        %s1851 = sld [smem:[#allocation2 + %s1850]]
        %s1852 = sadd.s32 %s1848, 2
        %s1853 = sld [smem:[#allocation2 + %s1852]]
        %s1854 = sadd.s32 %s1848, 3
        %s1855 = sld [smem:[#allocation2 + %s1854]]
        %s1856 = sadd.s32 %s1848, 4
        %s1857 = sld [smem:[#allocation2 + %s1856]]
        %s1858 = sadd.s32 %s1848, 5
        %s1859 = sld [smem:[#allocation2 + %s1858]]
        %s1860 = sadd.s32 %s1848, 6
        %s1861 = sld [smem:[#allocation2 + %s1860]]
        %s1862 = sadd.s32 %s1848, 7
        %s1863 = sld [smem:[#allocation2 + %s1862]]
        %s1864 = sadd.s32 %s1848, 8
        %s1865 = sld [smem:[#allocation2 + %s1864]]
        %s1866 = sadd.s32 %s1848, 9
        %s1867 = sld [smem:[#allocation2 + %s1866]]
        %s1868 = sadd.s32 %s1848, 10
        %s1869 = sld [smem:[#allocation2 + %s1868]]
        %s1870 = sadd.s32 %s1848, 11
        %s1871 = sld [smem:[#allocation2 + %s1870]]
        %v1872 = vstv %s1849
        %v1873 = vmul.f32 %v1872, %v187
        %v1874 = vmul.f32 %v1872, %v188
        %v1875 = vmul.f32 %v1872, %v189
        %v1876 = vmul.f32 %v1872, %v190
        %v1877 = vstv %s1851
        %v1878 = vmul.f32 %v1877, %v167
        %v1879 = vmul.f32 %v1877, %v168
        %v1880 = vmul.f32 %v1877, %v169
        %v1881 = vmul.f32 %v1877, %v170
        %v1882 = vadd.f32 %v1873, %v1878
        %v1883 = vadd.f32 %v1874, %v1879
        %v1884 = vadd.f32 %v1875, %v1880
        %v1885 = vadd.f32 %v1876, %v1881
        %v1886 = vstv %s1853
        %v1887 = vadd.f32 %v1882, %v1886
        %v1888 = vadd.f32 %v1883, %v1886
        %v1889 = vadd.f32 %v1884, %v1886
        %v1890 = vadd.f32 %v1885, %v1886
        %v1891 = vstv %s1855
        %v1892 = vmul.f32 %v1891, %v187
        %v1893 = vmul.f32 %v1891, %v188
        %v1894 = vmul.f32 %v1891, %v189
        %v1895 = vmul.f32 %v1891, %v190
        %v1896 = vstv %s1857
        %v1897 = vmul.f32 %v1896, %v167
        %v1898 = vmul.f32 %v1896, %v168
        %v1899 = vmul.f32 %v1896, %v169
        %v1900 = vmul.f32 %v1896, %v170
        %v1901 = vadd.f32 %v1892, %v1897
        %v1902 = vadd.f32 %v1893, %v1898
        %v1903 = vadd.f32 %v1894, %v1899
        %v1904 = vadd.f32 %v1895, %v1900
        %v1905 = vstv %s1859
        %v1906 = vadd.f32 %v1901, %v1905
        %v1907 = vadd.f32 %v1902, %v1905
        %v1908 = vadd.f32 %v1903, %v1905
        %v1909 = vadd.f32 %v1904, %v1905
        %v1910 = vstv %s1861
        %v1911 = vmul.f32 %v1910, %v187
        %v1912 = vmul.f32 %v1910, %v188
        %v1913 = vmul.f32 %v1910, %v189
        %v1914 = vmul.f32 %v1910, %v190
        %v1915 = vstv %s1863
        %v1916 = vmul.f32 %v1915, %v167
        %v1917 = vmul.f32 %v1915, %v168
        %v1918 = vmul.f32 %v1915, %v169
        %v1919 = vmul.f32 %v1915, %v170
        %v1920 = vadd.f32 %v1911, %v1916
        %v1921 = vadd.f32 %v1912, %v1917
        %v1922 = vadd.f32 %v1913, %v1918
        %v1923 = vadd.f32 %v1914, %v1919
        %v1924 = vstv %s1865
        %v1925 = vadd.f32 %v1920, %v1924
        %v1926 = vadd.f32 %v1921, %v1924
        %v1927 = vadd.f32 %v1922, %v1924
        %v1928 = vadd.f32 %v1923, %v1924
        %v1929 = vstv %s1867
        %v1930 = vmul.f32 %v1929, %v187
        %v1931 = vmul.f32 %v1929, %v188
        %v1932 = vmul.f32 %v1929, %v189
        %v1933 = vmul.f32 %v1929, %v190
        %v1934 = vstv %s1869
        %v1935 = vmul.f32 %v1934, %v167
        %v1936 = vmul.f32 %v1934, %v168
        %v1937 = vmul.f32 %v1934, %v169
        %v1938 = vmul.f32 %v1934, %v170
        %v1939 = vadd.f32 %v1930, %v1935
        %v1940 = vadd.f32 %v1931, %v1936
        %v1941 = vadd.f32 %v1932, %v1937
        %v1942 = vadd.f32 %v1933, %v1938
        %v1943 = vstv %s1871
        %v1944 = vadd.f32 %v1939, %v1943
        %v1945 = vadd.f32 %v1940, %v1943
        %v1946 = vadd.f32 %v1941, %v1943
        %v1947 = vadd.f32 %v1942, %v1943
        %v1948 = vmin.f32 %v1887, %v1906
        %v1949 = vmin.f32 %v1888, %v1907
        %v1950 = vmin.f32 %v1889, %v1908
        %v1951 = vmin.f32 %v1890, %v1909
        %v1952 = vmin.f32 %v1948, %v1925
        %v1953 = vmin.f32 %v1949, %v1926
        %v1954 = vmin.f32 %v1950, %v1927
        %v1955 = vmin.f32 %v1951, %v1928
        %vm1956 = vcmp.gt.f32.partialorder %v1952, 0.0
        %vm1957 = vcmp.gt.f32.partialorder %v1953, 0.0
        %vm1958 = vcmp.gt.f32.partialorder %v1954, 0.0
        %vm1959 = vcmp.gt.f32.partialorder %v1955, 0.0
        %vm1960 = vcmp.ge.f32.partialorder %v1944, 0.0
        %vm1961 = vcmp.ge.f32.partialorder %v1945, 0.0
        %vm1962 = vcmp.ge.f32.partialorder %v1946, 0.0
        %vm1963 = vcmp.ge.f32.partialorder %v1947, 0.0
        %vm1964 = vmand %vm1956, %vm1960
        %vm1965 = vmand %vm1957, %vm1961
        %vm1966 = vmand %vm1958, %vm1962
        %vm1967 = vmand %vm1959, %vm1963
        %vm1968 = vcmp.lt.f32.partialorder %v1944, %v1838
        %vm1969 = vcmp.lt.f32.partialorder %v1945, %v1839
        %vm1970 = vcmp.lt.f32.partialorder %v1946, %v1840
        %vm1971 = vcmp.lt.f32.partialorder %v1947, %v1841
        %vm1972 = vmand %vm1964, %vm1968
        %vm1973 = vmand %vm1965, %vm1969
        %vm1974 = vmand %vm1966, %vm1970
        %vm1975 = vmand %vm1967, %vm1971
        %v1976 = vsel %vm1972, %v1944, %v1838
        %v1977 = vsel %vm1973, %v1945, %v1839
        %v1978 = vsel %vm1974, %v1946, %v1840
        %v1979 = vsel %vm1975, %v1947, %v1841
        %v1980 = vstv %s1847
        %v1981 = vsel %vm1972, %v1980, %v1843
        %v1982 = vsel %vm1973, %v1980, %v1844
        %v1983 = vsel %vm1974, %v1980, %v1845
        %v1984 = vsel %vm1975, %v1980, %v1846
        %s1985 = sadd.s32 %s191, 13
        %s1986 = smul.u32 %s1985, 12
        %s1987 = sld [smem:[#allocation2 + %s1986]]
        %s1988 = sadd.s32 %s1986, 1
        %s1989 = sld [smem:[#allocation2 + %s1988]]
        %s1990 = sadd.s32 %s1986, 2
        %s1991 = sld [smem:[#allocation2 + %s1990]]
        %s1992 = sadd.s32 %s1986, 3
        %s1993 = sld [smem:[#allocation2 + %s1992]]
        %s1994 = sadd.s32 %s1986, 4
        %s1995 = sld [smem:[#allocation2 + %s1994]]
        %s1996 = sadd.s32 %s1986, 5
        %s1997 = sld [smem:[#allocation2 + %s1996]]
        %s1998 = sadd.s32 %s1986, 6
        %s1999 = sld [smem:[#allocation2 + %s1998]]
        %s2000 = sadd.s32 %s1986, 7
        %s2001 = sld [smem:[#allocation2 + %s2000]]
        %s2002 = sadd.s32 %s1986, 8
        %s2003 = sld [smem:[#allocation2 + %s2002]]
        %s2004 = sadd.s32 %s1986, 9
        %s2005 = sld [smem:[#allocation2 + %s2004]]
        %s2006 = sadd.s32 %s1986, 10
        %s2007 = sld [smem:[#allocation2 + %s2006]]
        %s2008 = sadd.s32 %s1986, 11
        %s2009 = sld [smem:[#allocation2 + %s2008]]
        %v2010 = vstv %s1987
        %v2011 = vmul.f32 %v2010, %v187
        %v2012 = vmul.f32 %v2010, %v188
        %v2013 = vmul.f32 %v2010, %v189
        %v2014 = vmul.f32 %v2010, %v190
        %v2015 = vstv %s1989
        %v2016 = vmul.f32 %v2015, %v167
        %v2017 = vmul.f32 %v2015, %v168
        %v2018 = vmul.f32 %v2015, %v169
        %v2019 = vmul.f32 %v2015, %v170
        %v2020 = vadd.f32 %v2011, %v2016
        %v2021 = vadd.f32 %v2012, %v2017
        %v2022 = vadd.f32 %v2013, %v2018
        %v2023 = vadd.f32 %v2014, %v2019
        %v2024 = vstv %s1991
        %v2025 = vadd.f32 %v2020, %v2024
        %v2026 = vadd.f32 %v2021, %v2024
        %v2027 = vadd.f32 %v2022, %v2024
        %v2028 = vadd.f32 %v2023, %v2024
        %v2029 = vstv %s1993
        %v2030 = vmul.f32 %v2029, %v187
        %v2031 = vmul.f32 %v2029, %v188
        %v2032 = vmul.f32 %v2029, %v189
        %v2033 = vmul.f32 %v2029, %v190
        %v2034 = vstv %s1995
        %v2035 = vmul.f32 %v2034, %v167
        %v2036 = vmul.f32 %v2034, %v168
        %v2037 = vmul.f32 %v2034, %v169
        %v2038 = vmul.f32 %v2034, %v170
        %v2039 = vadd.f32 %v2030, %v2035
        %v2040 = vadd.f32 %v2031, %v2036
        %v2041 = vadd.f32 %v2032, %v2037
        %v2042 = vadd.f32 %v2033, %v2038
        %v2043 = vstv %s1997
        %v2044 = vadd.f32 %v2039, %v2043
        %v2045 = vadd.f32 %v2040, %v2043
        %v2046 = vadd.f32 %v2041, %v2043
        %v2047 = vadd.f32 %v2042, %v2043
        %v2048 = vstv %s1999
        %v2049 = vmul.f32 %v2048, %v187
        %v2050 = vmul.f32 %v2048, %v188
        %v2051 = vmul.f32 %v2048, %v189
        %v2052 = vmul.f32 %v2048, %v190
        %v2053 = vstv %s2001
        %v2054 = vmul.f32 %v2053, %v167
        %v2055 = vmul.f32 %v2053, %v168
        %v2056 = vmul.f32 %v2053, %v169
        %v2057 = vmul.f32 %v2053, %v170
        %v2058 = vadd.f32 %v2049, %v2054
        %v2059 = vadd.f32 %v2050, %v2055
        %v2060 = vadd.f32 %v2051, %v2056
        %v2061 = vadd.f32 %v2052, %v2057
        %v2062 = vstv %s2003
        %v2063 = vadd.f32 %v2058, %v2062
        %v2064 = vadd.f32 %v2059, %v2062
        %v2065 = vadd.f32 %v2060, %v2062
        %v2066 = vadd.f32 %v2061, %v2062
        %v2067 = vstv %s2005
        %v2068 = vmul.f32 %v2067, %v187
        %v2069 = vmul.f32 %v2067, %v188
        %v2070 = vmul.f32 %v2067, %v189
        %v2071 = vmul.f32 %v2067, %v190
        %v2072 = vstv %s2007
        %v2073 = vmul.f32 %v2072, %v167
        %v2074 = vmul.f32 %v2072, %v168
        %v2075 = vmul.f32 %v2072, %v169
        %v2076 = vmul.f32 %v2072, %v170
        %v2077 = vadd.f32 %v2068, %v2073
        %v2078 = vadd.f32 %v2069, %v2074
        %v2079 = vadd.f32 %v2070, %v2075
        %v2080 = vadd.f32 %v2071, %v2076
        %v2081 = vstv %s2009
        %v2082 = vadd.f32 %v2077, %v2081
        %v2083 = vadd.f32 %v2078, %v2081
        %v2084 = vadd.f32 %v2079, %v2081
        %v2085 = vadd.f32 %v2080, %v2081
        %v2086 = vmin.f32 %v2025, %v2044
        %v2087 = vmin.f32 %v2026, %v2045
        %v2088 = vmin.f32 %v2027, %v2046
        %v2089 = vmin.f32 %v2028, %v2047
        %v2090 = vmin.f32 %v2086, %v2063
        %v2091 = vmin.f32 %v2087, %v2064
        %v2092 = vmin.f32 %v2088, %v2065
        %v2093 = vmin.f32 %v2089, %v2066
        %vm2094 = vcmp.gt.f32.partialorder %v2090, 0.0
        %vm2095 = vcmp.gt.f32.partialorder %v2091, 0.0
        %vm2096 = vcmp.gt.f32.partialorder %v2092, 0.0
        %vm2097 = vcmp.gt.f32.partialorder %v2093, 0.0
        %vm2098 = vcmp.ge.f32.partialorder %v2082, 0.0
        %vm2099 = vcmp.ge.f32.partialorder %v2083, 0.0
        %vm2100 = vcmp.ge.f32.partialorder %v2084, 0.0
        %vm2101 = vcmp.ge.f32.partialorder %v2085, 0.0
        %vm2102 = vmand %vm2094, %vm2098
        %vm2103 = vmand %vm2095, %vm2099
        %vm2104 = vmand %vm2096, %vm2100
        %vm2105 = vmand %vm2097, %vm2101
        %vm2106 = vcmp.lt.f32.partialorder %v2082, %v1976
        %vm2107 = vcmp.lt.f32.partialorder %v2083, %v1977
        %vm2108 = vcmp.lt.f32.partialorder %v2084, %v1978
        %vm2109 = vcmp.lt.f32.partialorder %v2085, %v1979
        %vm2110 = vmand %vm2102, %vm2106
        %vm2111 = vmand %vm2103, %vm2107
        %vm2112 = vmand %vm2104, %vm2108
        %vm2113 = vmand %vm2105, %vm2109
        %v2114 = vsel %vm2110, %v2082, %v1976
        %v2115 = vsel %vm2111, %v2083, %v1977
        %v2116 = vsel %vm2112, %v2084, %v1978
        %v2117 = vsel %vm2113, %v2085, %v1979
        %v2118 = vstv %s1985
        %v2119 = vsel %vm2110, %v2118, %v1981
        %v2120 = vsel %vm2111, %v2118, %v1982
        %v2121 = vsel %vm2112, %v2118, %v1983
        %v2122 = vsel %vm2113, %v2118, %v1984
        %s2123 = sadd.s32 %s191, 14
        %s2124 = smul.u32 %s2123, 12
        %s2125 = sld [smem:[#allocation2 + %s2124]]
        %s2126 = sadd.s32 %s2124, 1
        %s2127 = sld [smem:[#allocation2 + %s2126]]
        %s2128 = sadd.s32 %s2124, 2
        %s2129 = sld [smem:[#allocation2 + %s2128]]
        %s2130 = sadd.s32 %s2124, 3
        %s2131 = sld [smem:[#allocation2 + %s2130]]
        %s2132 = sadd.s32 %s2124, 4
        %s2133 = sld [smem:[#allocation2 + %s2132]]
        %s2134 = sadd.s32 %s2124, 5
        %s2135 = sld [smem:[#allocation2 + %s2134]]
        %s2136 = sadd.s32 %s2124, 6
        %s2137 = sld [smem:[#allocation2 + %s2136]]
        %s2138 = sadd.s32 %s2124, 7
        %s2139 = sld [smem:[#allocation2 + %s2138]]
        %s2140 = sadd.s32 %s2124, 8
        %s2141 = sld [smem:[#allocation2 + %s2140]]
        %s2142 = sadd.s32 %s2124, 9
        %s2143 = sld [smem:[#allocation2 + %s2142]]
        %s2144 = sadd.s32 %s2124, 10
        %s2145 = sld [smem:[#allocation2 + %s2144]]
        %s2146 = sadd.s32 %s2124, 11
        %s2147 = sld [smem:[#allocation2 + %s2146]]
        %v2148 = vstv %s2125
        %v2149 = vmul.f32 %v2148, %v187
        %v2150 = vmul.f32 %v2148, %v188
        %v2151 = vmul.f32 %v2148, %v189
        %v2152 = vmul.f32 %v2148, %v190
        %v2153 = vstv %s2127
        %v2154 = vmul.f32 %v2153, %v167
        %v2155 = vmul.f32 %v2153, %v168
        %v2156 = vmul.f32 %v2153, %v169
        %v2157 = vmul.f32 %v2153, %v170
        %v2158 = vadd.f32 %v2149, %v2154
        %v2159 = vadd.f32 %v2150, %v2155
        %v2160 = vadd.f32 %v2151, %v2156
        %v2161 = vadd.f32 %v2152, %v2157
        %v2162 = vstv %s2129
        %v2163 = vadd.f32 %v2158, %v2162
        %v2164 = vadd.f32 %v2159, %v2162
        %v2165 = vadd.f32 %v2160, %v2162
        %v2166 = vadd.f32 %v2161, %v2162
        %v2167 = vstv %s2131
        %v2168 = vmul.f32 %v2167, %v187
        %v2169 = vmul.f32 %v2167, %v188
        %v2170 = vmul.f32 %v2167, %v189
        %v2171 = vmul.f32 %v2167, %v190
        %v2172 = vstv %s2133
        %v2173 = vmul.f32 %v2172, %v167
        %v2174 = vmul.f32 %v2172, %v168
        %v2175 = vmul.f32 %v2172, %v169
        %v2176 = vmul.f32 %v2172, %v170
        %v2177 = vadd.f32 %v2168, %v2173
        %v2178 = vadd.f32 %v2169, %v2174
        %v2179 = vadd.f32 %v2170, %v2175
        %v2180 = vadd.f32 %v2171, %v2176
        %v2181 = vstv %s2135
        %v2182 = vadd.f32 %v2177, %v2181
        %v2183 = vadd.f32 %v2178, %v2181
        %v2184 = vadd.f32 %v2179, %v2181
        %v2185 = vadd.f32 %v2180, %v2181
        %v2186 = vstv %s2137
        %v2187 = vmul.f32 %v2186, %v187
        %v2188 = vmul.f32 %v2186, %v188
        %v2189 = vmul.f32 %v2186, %v189
        %v2190 = vmul.f32 %v2186, %v190
        %v2191 = vstv %s2139
        %v2192 = vmul.f32 %v2191, %v167
        %v2193 = vmul.f32 %v2191, %v168
        %v2194 = vmul.f32 %v2191, %v169
        %v2195 = vmul.f32 %v2191, %v170
        %v2196 = vadd.f32 %v2187, %v2192
        %v2197 = vadd.f32 %v2188, %v2193
        %v2198 = vadd.f32 %v2189, %v2194
        %v2199 = vadd.f32 %v2190, %v2195
        %v2200 = vstv %s2141
        %v2201 = vadd.f32 %v2196, %v2200
        %v2202 = vadd.f32 %v2197, %v2200
        %v2203 = vadd.f32 %v2198, %v2200
        %v2204 = vadd.f32 %v2199, %v2200
        %v2205 = vstv %s2143
        %v2206 = vmul.f32 %v2205, %v187
        %v2207 = vmul.f32 %v2205, %v188
        %v2208 = vmul.f32 %v2205, %v189
        %v2209 = vmul.f32 %v2205, %v190
        %v2210 = vstv %s2145
        %v2211 = vmul.f32 %v2210, %v167
        %v2212 = vmul.f32 %v2210, %v168
        %v2213 = vmul.f32 %v2210, %v169
        %v2214 = vmul.f32 %v2210, %v170
        %v2215 = vadd.f32 %v2206, %v2211
        %v2216 = vadd.f32 %v2207, %v2212
        %v2217 = vadd.f32 %v2208, %v2213
        %v2218 = vadd.f32 %v2209, %v2214
        %v2219 = vstv %s2147
        %v2220 = vadd.f32 %v2215, %v2219
        %v2221 = vadd.f32 %v2216, %v2219
        %v2222 = vadd.f32 %v2217, %v2219
        %v2223 = vadd.f32 %v2218, %v2219
        %v2224 = vmin.f32 %v2163, %v2182
        %v2225 = vmin.f32 %v2164, %v2183
        %v2226 = vmin.f32 %v2165, %v2184
        %v2227 = vmin.f32 %v2166, %v2185
        %v2228 = vmin.f32 %v2224, %v2201
        %v2229 = vmin.f32 %v2225, %v2202
        %v2230 = vmin.f32 %v2226, %v2203
        %v2231 = vmin.f32 %v2227, %v2204
        %vm2232 = vcmp.gt.f32.partialorder %v2228, 0.0
        %vm2233 = vcmp.gt.f32.partialorder %v2229, 0.0
        %vm2234 = vcmp.gt.f32.partialorder %v2230, 0.0
        %vm2235 = vcmp.gt.f32.partialorder %v2231, 0.0
        %vm2236 = vcmp.ge.f32.partialorder %v2220, 0.0
        %vm2237 = vcmp.ge.f32.partialorder %v2221, 0.0
        %vm2238 = vcmp.ge.f32.partialorder %v2222, 0.0
        %vm2239 = vcmp.ge.f32.partialorder %v2223, 0.0
        %vm2240 = vmand %vm2232, %vm2236
        %vm2241 = vmand %vm2233, %vm2237
        %vm2242 = vmand %vm2234, %vm2238
        %vm2243 = vmand %vm2235, %vm2239
        %vm2244 = vcmp.lt.f32.partialorder %v2220, %v2114
        %vm2245 = vcmp.lt.f32.partialorder %v2221, %v2115
        %vm2246 = vcmp.lt.f32.partialorder %v2222, %v2116
        %vm2247 = vcmp.lt.f32.partialorder %v2223, %v2117
        %vm2248 = vmand %vm2240, %vm2244
        %vm2249 = vmand %vm2241, %vm2245
        %vm2250 = vmand %vm2242, %vm2246
        %vm2251 = vmand %vm2243, %vm2247
        %v2252 = vsel %vm2248, %v2220, %v2114
        %v2253 = vsel %vm2249, %v2221, %v2115
        %v2254 = vsel %vm2250, %v2222, %v2116
        %v2255 = vsel %vm2251, %v2223, %v2117
        %v2256 = vstv %s2123
        %v2257 = vsel %vm2248, %v2256, %v2119
        %v2258 = vsel %vm2249, %v2256, %v2120
        %v2259 = vsel %vm2250, %v2256, %v2121
        %v2260 = vsel %vm2251, %v2256, %v2122
        %s2261 = sadd.s32 %s191, 15
        %s2262 = smul.u32 %s2261, 12
        %s2263 = sld [smem:[#allocation2 + %s2262]]
        %s2264 = sadd.s32 %s2262, 1
        %s2265 = sld [smem:[#allocation2 + %s2264]]
        %s2266 = sadd.s32 %s2262, 2
        %s2267 = sld [smem:[#allocation2 + %s2266]]
        %s2268 = sadd.s32 %s2262, 3
        %s2269 = sld [smem:[#allocation2 + %s2268]]
        %s2270 = sadd.s32 %s2262, 4
        %s2271 = sld [smem:[#allocation2 + %s2270]]
        %s2272 = sadd.s32 %s2262, 5
        %s2273 = sld [smem:[#allocation2 + %s2272]]
        %s2274 = sadd.s32 %s2262, 6
        %s2275 = sld [smem:[#allocation2 + %s2274]]
        %s2276 = sadd.s32 %s2262, 7
        %s2277 = sld [smem:[#allocation2 + %s2276]]
        %s2278 = sadd.s32 %s2262, 8
        %s2279 = sld [smem:[#allocation2 + %s2278]]
        %s2280 = sadd.s32 %s2262, 9
        %s2281 = sld [smem:[#allocation2 + %s2280]]
        %s2282 = sadd.s32 %s2262, 10
        %s2283 = sld [smem:[#allocation2 + %s2282]]
        %s2284 = sadd.s32 %s2262, 11
        %s2285 = sld [smem:[#allocation2 + %s2284]]
        %v2286 = vstv %s2263
        %v2287 = vmul.f32 %v2286, %v187
        %v2288 = vmul.f32 %v2286, %v188
        %v2289 = vmul.f32 %v2286, %v189
        %v2290 = vmul.f32 %v2286, %v190
        %v2291 = vstv %s2265
        %v2292 = vmul.f32 %v2291, %v167
        %v2293 = vmul.f32 %v2291, %v168
        %v2294 = vmul.f32 %v2291, %v169
        %v2295 = vmul.f32 %v2291, %v170
        %v2296 = vadd.f32 %v2287, %v2292
        %v2297 = vadd.f32 %v2288, %v2293
        %v2298 = vadd.f32 %v2289, %v2294
        %v2299 = vadd.f32 %v2290, %v2295
        %v2300 = vstv %s2267
        %v2301 = vadd.f32 %v2296, %v2300
        %v2302 = vadd.f32 %v2297, %v2300
        %v2303 = vadd.f32 %v2298, %v2300
        %v2304 = vadd.f32 %v2299, %v2300
        %v2305 = vstv %s2269
        %v2306 = vmul.f32 %v2305, %v187
        %v2307 = vmul.f32 %v2305, %v188
        %v2308 = vmul.f32 %v2305, %v189
        %v2309 = vmul.f32 %v2305, %v190
        %v2310 = vstv %s2271
        %v2311 = vmul.f32 %v2310, %v167
        %v2312 = vmul.f32 %v2310, %v168
        %v2313 = vmul.f32 %v2310, %v169
        %v2314 = vmul.f32 %v2310, %v170
        %v2315 = vadd.f32 %v2306, %v2311
        %v2316 = vadd.f32 %v2307, %v2312
        %v2317 = vadd.f32 %v2308, %v2313
        %v2318 = vadd.f32 %v2309, %v2314
        %v2319 = vstv %s2273
        %v2320 = vadd.f32 %v2315, %v2319
        %v2321 = vadd.f32 %v2316, %v2319
        %v2322 = vadd.f32 %v2317, %v2319
        %v2323 = vadd.f32 %v2318, %v2319
        %v2324 = vstv %s2275
        %v2325 = vmul.f32 %v2324, %v187
        %v2326 = vmul.f32 %v2324, %v188
        %v2327 = vmul.f32 %v2324, %v189
        %v2328 = vmul.f32 %v2324, %v190
        %v2329 = vstv %s2277
        %v2330 = vmul.f32 %v2329, %v167
        %v2331 = vmul.f32 %v2329, %v168
        %v2332 = vmul.f32 %v2329, %v169
        %v2333 = vmul.f32 %v2329, %v170
        %v2334 = vadd.f32 %v2325, %v2330
        %v2335 = vadd.f32 %v2326, %v2331
        %v2336 = vadd.f32 %v2327, %v2332
        %v2337 = vadd.f32 %v2328, %v2333
        %v2338 = vstv %s2279
        %v2339 = vadd.f32 %v2334, %v2338
        %v2340 = vadd.f32 %v2335, %v2338
        %v2341 = vadd.f32 %v2336, %v2338
        %v2342 = vadd.f32 %v2337, %v2338
        %v2343 = vstv %s2281
        %v2344 = vmul.f32 %v2343, %v187
        %v2345 = vmul.f32 %v2343, %v188
        %v2346 = vmul.f32 %v2343, %v189
        %v2347 = vmul.f32 %v2343, %v190
        %v2348 = vstv %s2283
        %v2349 = vmul.f32 %v2348, %v167
        %v2350 = vmul.f32 %v2348, %v168
        %v2351 = vmul.f32 %v2348, %v169
        %v2352 = vmul.f32 %v2348, %v170
        %v2353 = vadd.f32 %v2344, %v2349
        %v2354 = vadd.f32 %v2345, %v2350
        %v2355 = vadd.f32 %v2346, %v2351
        %v2356 = vadd.f32 %v2347, %v2352
        %v2357 = vstv %s2285
        %v2358 = vadd.f32 %v2353, %v2357
        %v2359 = vadd.f32 %v2354, %v2357
        %v2360 = vadd.f32 %v2355, %v2357
        %v2361 = vadd.f32 %v2356, %v2357
        %v2362 = vmin.f32 %v2301, %v2320
        %v2363 = vmin.f32 %v2302, %v2321
        %v2364 = vmin.f32 %v2303, %v2322
        %v2365 = vmin.f32 %v2304, %v2323
        %v2366 = vmin.f32 %v2362, %v2339
        %v2367 = vmin.f32 %v2363, %v2340
        %v2368 = vmin.f32 %v2364, %v2341
        %v2369 = vmin.f32 %v2365, %v2342
        %vm2370 = vcmp.gt.f32.partialorder %v2366, 0.0
        %vm2371 = vcmp.gt.f32.partialorder %v2367, 0.0
        %vm2372 = vcmp.gt.f32.partialorder %v2368, 0.0
        %vm2373 = vcmp.gt.f32.partialorder %v2369, 0.0
        %vm2374 = vcmp.ge.f32.partialorder %v2358, 0.0
        %vm2375 = vcmp.ge.f32.partialorder %v2359, 0.0
        %vm2376 = vcmp.ge.f32.partialorder %v2360, 0.0
        %vm2377 = vcmp.ge.f32.partialorder %v2361, 0.0
        %vm2378 = vmand %vm2370, %vm2374
        %vm2379 = vmand %vm2371, %vm2375
        %vm2380 = vmand %vm2372, %vm2376
        %vm2381 = vmand %vm2373, %vm2377
        %vm2382 = vcmp.lt.f32.partialorder %v2358, %v2252
        %vm2383 = vcmp.lt.f32.partialorder %v2359, %v2253
        %vm2384 = vcmp.lt.f32.partialorder %v2360, %v2254
        %vm2385 = vcmp.lt.f32.partialorder %v2361, %v2255
        %vm2386 = vmand %vm2378, %vm2382
        %vm2387 = vmand %vm2379, %vm2383
        %vm2388 = vmand %vm2380, %vm2384
        %vm2389 = vmand %vm2381, %vm2385
        %v2390 = vstv %s2261
        %v2391 = vsel %vm2386, %v2390, %v2257
        %v2392 = vsel %vm2387, %v2390, %v2258
        %v2393 = vsel %vm2388, %v2390, %v2259
        %v2394 = vsel %vm2389, %v2390, %v2260
        %2395 = vst [vmem:[%s108] sm:$0xff] %v2391
        %2396 = vst [vmem:[%s108 + $0x8] sm:$0xff] %v2392
        %2397 = vst [vmem:[%s108 + $0x10] sm:$0xff] %v2393
        %2398 = vst [vmem:[%s108 + $0x18] sm:$0xff] %v2394
        %s2399 = sand.u32 %s45, 1
        %s2400 = scalar_lea.sflag [#allocation3], %s2399
        %s2401 = sand.u32 %s45, 1
        %s2402 = smul.addr %s2401, 32
        %s2403 = scalar_lea.vmem [#allocation5], %s2402
        // Predicated region
        $region29: #{tpu_custom_call.1} parent=23 // pred_check
          %p2404 = pneg %p55
        $region30: #{tpu_custom_call.1} parent=23 // pred_check_branch
          %2406 = sbr.rel (%p2404) target = $region32
        $region31: #{tpu_custom_call.1} parent=23 // pred_region
          %2408 = vsyncadd %s2400, 0
          %s2409 = smul.addr %s16, 4
          %s2410 = smul.addr %s2409, 8
          %s2411 = scalar_lea.hbm %s1, %s2410
          %s2412 = sshll.u32 %s2403, 4
          %s2413 = int_to_ptr.vmem [resolvable:$true] %s2412
          %s2414 = sshll.u32 %s2411, 4
          %s2415 = int_to_ptr.hbm [resolvable:$true] %s2414
          %2420 = dma.vmem_to_hbm [thread:$0]  %s2413, 512, %s2415, %s2400, 128, 128, 8
        $region32: #{tpu_custom_call.1} parent=23 // pred_fallthru
          _
      $region24: #{tpu_custom_call.1} parent=5 // pred_fallthru
        _
      %p2421 = scmp.le.s32.totalorder 2, %s11
      // Predicated region
      $region33: #{tpu_custom_call.1} parent=5 // pred_check
        %p2422 = pneg %p2421
      $region34: #{tpu_custom_call.1} parent=5 // pred_check_branch
        %2424 = sbr.rel (%p2422) target = $region36
      $region35: #{tpu_custom_call.1} parent=5 // pred_region
        %s2425 = ssub.s32 %s11, 2
        // Predicated region
        $region37: #{tpu_custom_call.1} parent=35 // pred_check
          %p2426 = pneg %p61
        $region38: #{tpu_custom_call.1} parent=35 // pred_check_branch
          %2428 = sbr.rel (%p2426) target = $region40
        $region39: #{tpu_custom_call.1} parent=35 // pred_region
          %s2429 = sand.u32 %s46, 1
          %s2430 = scalar_lea.sflag [#allocation3], %s2429
          %s2431 = sand.u32 %s46, 1
          %s2432 = smul.addr %s2431, 32
          %s2433 = scalar_lea.vmem [#allocation5], %s2432
          %2435 = dma.done %s2430, 512
        $region40: #{tpu_custom_call.1} parent=35 // pred_fallthru
          _
      $region36: #{tpu_custom_call.1} parent=5 // pred_fallthru
        _
    $region6: #{tpu_custom_call.1} parent=1 // loop_footer
      %s15 = sadd.s32 1, %s11
    $region7: #{tpu_custom_call.1} parent=1 // loop_footer_branch
      %10 = sbr.rel target = $region3
    $region8: #{tpu_custom_call.1} parent=1 // loop_exit
      _
    %2436 = vsyncpa [#allocation3], 1
    %s2437 = scalar_lea.sflag [#allocation3], 1
    %2438 = vsyncpa %s2437, 1
    %2439 = vsyncpa [#allocation4], 1
    %s2440 = scalar_lea.sflag [#allocation4], 1
    %2441 = vsyncpa %s2440, 1

</llo_original>
